<compile_context>
chip_gen: v6e
topology: v6e:2x2x1
jax: 0.10.0
libtpu: 0.0.40
codegen_flags: <defaults>
</compile_context>

<pallas_src>
import functools

import jax
import jax.numpy as jnp
from jax.experimental import pallas as pl
from jax.experimental.pallas import tpu as pltpu


def _conv_extractor_kernel(x_ref, w1_ref, t1_ref, w2_ref, t2_ref, o_ref, *, K, pad):
    # x_ref:  (N, H, W, Cin)        unpadded NHWC input (whole batch, f32)
    # w*_ref: (K*K*Cin, Cout)       conv weights, HWIO flat, BN-scale folded, bf16
    # t*_ref: (1, Cout)             folded shift = (bias - mean)*scale + beta
    # o_ref:  (N*H4*W4, C2)         pooled layer-2 output, rows in (n, h, w) order

    def conv_bn_relu_pool(x, w_ref, t_ref):
        N, H, W, Cin = x.shape
        Cout = w_ref.shape[-1]
        Ho = H + 2 * pad - (K - 1)   # "same" conv output size (stride 1)
        Wo = W + 2 * pad - (K - 1)

        # Zero "same" padding built in VMEM (no padded HBM copy).
        if pad:
            zr = jnp.zeros((N, pad, W, Cin), x.dtype)
            x = jnp.concatenate([zr, x, zr], axis=1)
            zc = jnp.zeros((N, H + 2 * pad, pad, Cin), x.dtype)
            x = jnp.concatenate([zc, x, zc], axis=2)

        # im2col: one (N*Ho*Wo, K*K*Cin) patch matrix -> single MXU matmul.
        # Tap order (ky, kx, cin) matches the wrapper's weight flattening.
        taps = [x[:, ky:ky + Ho, kx:kx + Wo, :]
                for ky in range(K) for kx in range(K)]
        patches = jnp.concatenate(taps, axis=-1).reshape(N * Ho * Wo, K * K * Cin)

        # bf16 operands, f32 accumulation (fast MXU path on v5e/v6e/v7x).
        acc = jnp.dot(patches.astype(jnp.bfloat16), w_ref[...],
                      preferred_element_type=jnp.float32)     # (N*Ho*Wo, Cout)

        # BN scale already folded into the weights; only shift + ReLU remain,
        # f32 elementwise (no bf16 VPU needed -> v5e safe).
        y = jnp.maximum(acc + t_ref[0], 0.0)

        # MaxPool2d(2, 2) via pairwise maxima (no cross-lane reduce).
        y = y.reshape(N * (Ho // 2), 2, Wo, Cout)
        y = jnp.maximum(y[:, 0], y[:, 1])                      # (N*Ho/2, Wo, Cout)
        y = y.reshape(N * (Ho // 2) * (Wo // 2), 2, Cout)
        y = jnp.maximum(y[:, 0], y[:, 1])                      # (N*Ho/2*Wo/2, Cout)
        return y, (N, Ho // 2, Wo // 2, Cout)

    x = x_ref[...]
    y1, (n, h2, w2, c1) = conv_bn_relu_pool(x, w1_ref, t1_ref)
    # Intermediate stays in VMEM/vregs; just reinterpret as NHWC for layer 2.
    y2, _ = conv_bn_relu_pool(y1.reshape(n, h2, w2, c1), w2_ref, t2_ref)
    o_ref[...] = y2.astype(o_ref.dtype)


def init_params(key, ninput, noutput, kernel_size):
    """Deterministic parameters mirroring the PyTorch module's shapes."""
    ks = jax.random.split(key, 8)
    eps = 1e-5

    def make_layer(k_w, k_b, k_g, k_beta, cin, cout):
        # PyTorch conv weight layout (Cout, Cin, K, K) -> HWIO -> flat (K*K*Cin, Cout).
        w_oihw = 0.1 * jax.random.normal(
            k_w, (cout, cin, kernel_size, kernel_size), jnp.float32)
        w_flat = jnp.transpose(w_oihw, (2, 3, 1, 0)).reshape(
            kernel_size * kernel_size * cin, cout)
        b = 0.1 * jax.random.normal(k_b, (cout,), jnp.float32)
        gamma = 1.0 + 0.1 * jax.random.normal(k_g, (cout,), jnp.float32)
        beta = 0.1 * jax.random.normal(k_beta, (cout,), jnp.float32)
        running_mean = jnp.zeros((cout,), jnp.float32)
        running_var = jnp.ones((cout,), jnp.float32)
        scale = gamma / jnp.sqrt(running_var + eps)
        # Fold BN scale into the conv weights (per output channel) and fold
        # conv bias + BN mean/beta into a single shift vector.
        w_folded = (w_flat * scale[None, :]).astype(jnp.bfloat16)
        shift = (b - running_mean) * scale + beta
        return w_folded, shift.reshape(1, cout)

    w1, t1 = make_layer(ks[0], ks[1], ks[2], ks[3], ninput, noutput)
    w2, t2 = make_layer(ks[4], ks[5], ks[6], ks[7], noutput, 32)
    return dict(w1=w1, shift1=t1, w2=w2, shift2=t2)


@functools.partial(jax.jit, static_argnames=("pad", "kernel_size"))
def conv_extractor_forward(x_nchw, params, pad, kernel_size):
    N, Cin, H, W = x_nchw.shape
    # NCHW -> NHWC (channels on the lane axis); cheap XLA transpose outside
    # the kernel instead of a large in-kernel relayout.
    x = jnp.transpose(x_nchw, (0, 2, 3, 1)).astype(jnp.float32)

    Ho1 = H + 2 * pad - (kernel_size - 1)
    Wo1 = W + 2 * pad - (kernel_size - 1)
    H2, W2 = Ho1 // 2, Wo1 // 2
    Ho2 = H2 + 2 * pad - (kernel_size - 1)
    Wo2 = W2 + 2 * pad - (kernel_size - 1)
    H4, W4 = Ho2 // 2, Wo2 // 2
    C2 = params["shift2"].shape[-1]

    kernel = functools.partial(_conv_extractor_kernel, K=kernel_size, pad=pad)

    out_flat = pl.pallas_call(
        kernel,
        out_shape=jax.ShapeDtypeStruct((N * H4 * W4, C2), jnp.float32),
        grid=(1,),   # whole (tiny) batch in one grid step; batch folded into matmul M
        in_specs=[
            pl.BlockSpec((N, H, W, Cin), lambda i: (0, 0, 0, 0)),
            pl.BlockSpec(params["w1"].shape, lambda i: (0, 0)),
            pl.BlockSpec(params["shift1"].shape, lambda i: (0, 0)),
            pl.BlockSpec(params["w2"].shape, lambda i: (0, 0)),
            pl.BlockSpec(params["shift2"].shape, lambda i: (0, 0)),
        ],
        out_specs=pl.BlockSpec((N * H4 * W4, C2), lambda i: (0, 0)),
        compiler_params=pltpu.CompilerParams(
            dimension_semantics=("arbitrary",)),
    )(x, params["w1"], params["shift1"], params["w2"], params["shift2"])

    # (N*H4*W4, C2) rows are in (n, h, w) order -> NHWC -> NCHW -> flatten,
    # matching PyTorch's out.view(len(input), -1).
    out = out_flat.reshape(N, H4, W4, C2)
    out = jnp.transpose(out, (0, 3, 1, 2))
    return out.reshape(N, -1)


if __name__ == "__main__":
    # Small, module-consistent shapes: batch=2, ninput=4, 16x16 spatial,
    # noutput=8, kernel_size=3 (padding = (3-1)//2 = 1, stride = 1).
    N, Cin, H, W = 2, 4, 16, 16
    noutput, kernel_size = 8, 3
    pad = (kernel_size - 1) // 2

    key = jax.random.PRNGKey(0)
    k_x, k_p = jax.random.split(key)
    x = jax.random.normal(k_x, (N, Cin, H, W), jnp.float32)
    params = init_params(k_p, Cin, noutput, kernel_size)

    out = conv_extractor_forward(x, params, pad, kernel_size)
    out = jax.block_until_ready(out)

    # After two 2x2 maxpools: (N, 32, H//4, W//4) flattened -> (N, 32*4*4).
    assert out.shape == (N, 32 * (H // 4) * (W // 4)), out.shape
    print("KERNEL_OK")
</pallas_src>

<mosaic_0001>
module attributes {stable_mosaic.version = 11 : i64} {
  func.func @_conv_extractor_kernel(%arg0: i32, %arg1: memref<2x16x16x4xf32, #tpu.memory_space<vmem>>, %arg2: memref<36x8xbf16, #tpu.memory_space<vmem>>, %arg3: memref<1x8xf32, #tpu.memory_space<vmem>>, %arg4: memref<72x32xbf16, #tpu.memory_space<vmem>>, %arg5: memref<1x32xf32, #tpu.memory_space<vmem>>, %arg6: memref<32x32xf32, #tpu.memory_space<vmem>>) attributes {dimension_semantics = [#tpu.dimension_semantics<arbitrary>], iteration_bounds = array<i64: 1>, scalar_prefetch = 0 : i64, scratch_operands = 0 : i64, tpu.core_type = #tpu.core_type<tc>, window_params = [{pipeline_mode = #tpu.pipeline_mode<synchronous>, transform_indices = @transform_0, window_bounds = array<i64: 2, 16, 16, 4>}, {pipeline_mode = #tpu.pipeline_mode<synchronous>, transform_indices = @transform_1, window_bounds = array<i64: 36, 8>}, {pipeline_mode = #tpu.pipeline_mode<synchronous>, transform_indices = @transform_2, window_bounds = array<i64: 1, 8>}, {pipeline_mode = #tpu.pipeline_mode<synchronous>, transform_indices = @transform_3, window_bounds = array<i64: 72, 32>}, {pipeline_mode = #tpu.pipeline_mode<synchronous>, transform_indices = @transform_4, window_bounds = array<i64: 1, 32>}, {pipeline_mode = #tpu.pipeline_mode<synchronous>, transform_indices = @transform_5, window_bounds = array<i64: 32, 32>}]} {
    %c0 = arith.constant 0 : index
    %c0_0 = arith.constant 0 : index
    %c0_1 = arith.constant 0 : index
    %c0_2 = arith.constant 0 : index
    %0 = vector.load %arg1[%c0, %c0_0, %c0_1, %c0_2] : memref<2x16x16x4xf32, #tpu.memory_space<vmem>>, vector<2x16x16x4xf32>
    %cst = arith.constant 0.000000e+00 : f32
    %1 = vector.broadcast %cst : f32 to vector<2x1x16x4xf32>
    %2 = tpu.concatenate %1, %0, %1 in 1 : vector<2x1x16x4xf32>, vector<2x16x16x4xf32>, vector<2x1x16x4xf32> -> vector<2x18x16x4xf32>
    %cst_3 = arith.constant 0.000000e+00 : f32
    %3 = vector.broadcast %cst_3 : f32 to vector<2x18x1x4xf32>
    %4 = tpu.concatenate %3, %2, %3 in 2 : vector<2x18x1x4xf32>, vector<2x18x16x4xf32>, vector<2x18x1x4xf32> -> vector<2x18x18x4xf32>
    %5 = vector.extract_strided_slice %4 {offsets = [0, 0, 0, 0], sizes = [2, 16, 16, 4], strides = [1, 1, 1, 1]} : vector<2x18x18x4xf32> to vector<2x16x16x4xf32>
    %6 = vector.extract_strided_slice %4 {offsets = [0, 0, 1, 0], sizes = [2, 16, 16, 4], strides = [1, 1, 1, 1]} : vector<2x18x18x4xf32> to vector<2x16x16x4xf32>
    %7 = vector.extract_strided_slice %4 {offsets = [0, 0, 2, 0], sizes = [2, 16, 16, 4], strides = [1, 1, 1, 1]} : vector<2x18x18x4xf32> to vector<2x16x16x4xf32>
    %8 = vector.extract_strided_slice %4 {offsets = [0, 1, 0, 0], sizes = [2, 16, 16, 4], strides = [1, 1, 1, 1]} : vector<2x18x18x4xf32> to vector<2x16x16x4xf32>
    %9 = vector.extract_strided_slice %4 {offsets = [0, 1, 1, 0], sizes = [2, 16, 16, 4], strides = [1, 1, 1, 1]} : vector<2x18x18x4xf32> to vector<2x16x16x4xf32>
    %10 = vector.extract_strided_slice %4 {offsets = [0, 1, 2, 0], sizes = [2, 16, 16, 4], strides = [1, 1, 1, 1]} : vector<2x18x18x4xf32> to vector<2x16x16x4xf32>
    %11 = vector.extract_strided_slice %4 {offsets = [0, 2, 0, 0], sizes = [2, 16, 16, 4], strides = [1, 1, 1, 1]} : vector<2x18x18x4xf32> to vector<2x16x16x4xf32>
    %12 = vector.extract_strided_slice %4 {offsets = [0, 2, 1, 0], sizes = [2, 16, 16, 4], strides = [1, 1, 1, 1]} : vector<2x18x18x4xf32> to vector<2x16x16x4xf32>
    %13 = vector.extract_strided_slice %4 {offsets = [0, 2, 2, 0], sizes = [2, 16, 16, 4], strides = [1, 1, 1, 1]} : vector<2x18x18x4xf32> to vector<2x16x16x4xf32>
    %14 = tpu.concatenate %5, %6, %7, %8, %9, %10, %11, %12, %13 in 3 : vector<2x16x16x4xf32>, vector<2x16x16x4xf32>, vector<2x16x16x4xf32>, vector<2x16x16x4xf32>, vector<2x16x16x4xf32>, vector<2x16x16x4xf32>, vector<2x16x16x4xf32>, vector<2x16x16x4xf32>, vector<2x16x16x4xf32> -> vector<2x16x16x36xf32>
    %15 = vector.shape_cast %14 : vector<2x16x16x36xf32> to vector<512x36xf32>
    %16 = arith.truncf %15 : vector<512x36xf32> to vector<512x36xbf16>
    %c0_4 = arith.constant 0 : index
    %c0_5 = arith.constant 0 : index
    %17 = vector.load %arg2[%c0_4, %c0_5] : memref<36x8xbf16, #tpu.memory_space<vmem>>, vector<36x8xbf16>
    %cst_6 = arith.constant dense<0.000000e+00> : vector<512x8xf32>
    %18 = tpu.matmul %16, %17, %cst_6 {dimension_numbers = #tpu.dot_dimension_numbers<[1], [0], [0], [1], [0, 0, 1, 1], [], []>} : vector<512x36xbf16>, vector<36x8xbf16>, vector<512x8xf32> -> vector<512x8xf32>
    %c0_7 = arith.constant 0 : index
    %c0_8 = arith.constant 0 : index
    %19 = vector.load %arg3[%c0_7, %c0_8] : memref<1x8xf32, #tpu.memory_space<vmem>>, vector<1x8xf32>
    %20 = vector.shape_cast %19 : vector<1x8xf32> to vector<8xf32>
    %21 = vector.shape_cast %20 : vector<8xf32> to vector<1x8xf32>
    %22 = vector.broadcast %21 : vector<1x8xf32> to vector<512x8xf32>
    %23 = arith.addf %18, %22 : vector<512x8xf32>
    %cst_9 = arith.constant 0.000000e+00 : f32
    %24 = vector.broadcast %cst_9 : f32 to vector<512x8xf32>
    %25 = arith.maximumf %23, %24 : vector<512x8xf32>
    %26 = vector.shape_cast %25 : vector<512x8xf32> to vector<16x2x16x8xf32>
    %27 = vector.extract_strided_slice %26 {offsets = [0, 0, 0, 0], sizes = [16, 1, 16, 8], strides = [1, 1, 1, 1]} : vector<16x2x16x8xf32> to vector<16x1x16x8xf32>
    %28 = vector.shape_cast %27 : vector<16x1x16x8xf32> to vector<16x16x8xf32>
    %29 = vector.extract_strided_slice %26 {offsets = [0, 1, 0, 0], sizes = [16, 1, 16, 8], strides = [1, 1, 1, 1]} : vector<16x2x16x8xf32> to vector<16x1x16x8xf32>
    %30 = vector.shape_cast %29 : vector<16x1x16x8xf32> to vector<16x16x8xf32>
    %31 = arith.maximumf %28, %30 : vector<16x16x8xf32>
    %32 = vector.shape_cast %31 : vector<16x16x8xf32> to vector<128x2x8xf32>
    %33 = vector.extract_strided_slice %32 {offsets = [0, 0, 0], sizes = [128, 1, 8], strides = [1, 1, 1]} : vector<128x2x8xf32> to vector<128x1x8xf32>
    %34 = vector.shape_cast %33 : vector<128x1x8xf32> to vector<128x8xf32>
    %35 = vector.extract_strided_slice %32 {offsets = [0, 1, 0], sizes = [128, 1, 8], strides = [1, 1, 1]} : vector<128x2x8xf32> to vector<128x1x8xf32>
    %36 = vector.shape_cast %35 : vector<128x1x8xf32> to vector<128x8xf32>
    %37 = arith.maximumf %34, %36 : vector<128x8xf32>
    %38 = vector.shape_cast %37 : vector<128x8xf32> to vector<2x8x8x8xf32>
    %cst_10 = arith.constant 0.000000e+00 : f32
    %39 = vector.broadcast %cst_10 : f32 to vector<2x1x8x8xf32>
    %40 = tpu.concatenate %39, %38, %39 in 1 : vector<2x1x8x8xf32>, vector<2x8x8x8xf32>, vector<2x1x8x8xf32> -> vector<2x10x8x8xf32>
    %cst_11 = arith.constant 0.000000e+00 : f32
    %41 = vector.broadcast %cst_11 : f32 to vector<2x10x1x8xf32>
    %42 = tpu.concatenate %41, %40, %41 in 2 : vector<2x10x1x8xf32>, vector<2x10x8x8xf32>, vector<2x10x1x8xf32> -> vector<2x10x10x8xf32>
    %43 = vector.extract_strided_slice %42 {offsets = [0, 0, 0, 0], sizes = [2, 8, 8, 8], strides = [1, 1, 1, 1]} : vector<2x10x10x8xf32> to vector<2x8x8x8xf32>
    %44 = vector.extract_strided_slice %42 {offsets = [0, 0, 1, 0], sizes = [2, 8, 8, 8], strides = [1, 1, 1, 1]} : vector<2x10x10x8xf32> to vector<2x8x8x8xf32>
    %45 = vector.extract_strided_slice %42 {offsets = [0, 0, 2, 0], sizes = [2, 8, 8, 8], strides = [1, 1, 1, 1]} : vector<2x10x10x8xf32> to vector<2x8x8x8xf32>
    %46 = vector.extract_strided_slice %42 {offsets = [0, 1, 0, 0], sizes = [2, 8, 8, 8], strides = [1, 1, 1, 1]} : vector<2x10x10x8xf32> to vector<2x8x8x8xf32>
    %47 = vector.extract_strided_slice %42 {offsets = [0, 1, 1, 0], sizes = [2, 8, 8, 8], strides = [1, 1, 1, 1]} : vector<2x10x10x8xf32> to vector<2x8x8x8xf32>
    %48 = vector.extract_strided_slice %42 {offsets = [0, 1, 2, 0], sizes = [2, 8, 8, 8], strides = [1, 1, 1, 1]} : vector<2x10x10x8xf32> to vector<2x8x8x8xf32>
    %49 = vector.extract_strided_slice %42 {offsets = [0, 2, 0, 0], sizes = [2, 8, 8, 8], strides = [1, 1, 1, 1]} : vector<2x10x10x8xf32> to vector<2x8x8x8xf32>
    %50 = vector.extract_strided_slice %42 {offsets = [0, 2, 1, 0], sizes = [2, 8, 8, 8], strides = [1, 1, 1, 1]} : vector<2x10x10x8xf32> to vector<2x8x8x8xf32>
    %51 = vector.extract_strided_slice %42 {offsets = [0, 2, 2, 0], sizes = [2, 8, 8, 8], strides = [1, 1, 1, 1]} : vector<2x10x10x8xf32> to vector<2x8x8x8xf32>
    %52 = tpu.concatenate %43, %44, %45, %46, %47, %48, %49, %50, %51 in 3 : vector<2x8x8x8xf32>, vector<2x8x8x8xf32>, vector<2x8x8x8xf32>, vector<2x8x8x8xf32>, vector<2x8x8x8xf32>, vector<2x8x8x8xf32>, vector<2x8x8x8xf32>, vector<2x8x8x8xf32>, vector<2x8x8x8xf32> -> vector<2x8x8x72xf32>
    %53 = vector.shape_cast %52 : vector<2x8x8x72xf32> to vector<128x72xf32>
    %54 = arith.truncf %53 : vector<128x72xf32> to vector<128x72xbf16>
    %c0_12 = arith.constant 0 : index
    %c0_13 = arith.constant 0 : index
    %55 = vector.load %arg4[%c0_12, %c0_13] : memref<72x32xbf16, #tpu.memory_space<vmem>>, vector<72x32xbf16>
    %cst_14 = arith.constant dense<0.000000e+00> : vector<128x32xf32>
    %56 = tpu.matmul %54, %55, %cst_14 {dimension_numbers = #tpu.dot_dimension_numbers<[1], [0], [0], [1], [0, 0, 1, 1], [], []>} : vector<128x72xbf16>, vector<72x32xbf16>, vector<128x32xf32> -> vector<128x32xf32>
    %c0_15 = arith.constant 0 : index
    %c0_16 = arith.constant 0 : index
    %57 = vector.load %arg5[%c0_15, %c0_16] : memref<1x32xf32, #tpu.memory_space<vmem>>, vector<1x32xf32>
    %58 = vector.shape_cast %57 : vector<1x32xf32> to vector<32xf32>
    %59 = vector.shape_cast %58 : vector<32xf32> to vector<1x32xf32>
    %60 = vector.broadcast %59 : vector<1x32xf32> to vector<128x32xf32>
    %61 = arith.addf %56, %60 : vector<128x32xf32>
    %cst_17 = arith.constant 0.000000e+00 : f32
    %62 = vector.broadcast %cst_17 : f32 to vector<128x32xf32>
    %63 = arith.maximumf %61, %62 : vector<128x32xf32>
    %64 = vector.shape_cast %63 : vector<128x32xf32> to vector<8x2x8x32xf32>
    %65 = vector.extract_strided_slice %64 {offsets = [0, 0, 0, 0], sizes = [8, 1, 8, 32], strides = [1, 1, 1, 1]} : vector<8x2x8x32xf32> to vector<8x1x8x32xf32>
    %66 = vector.shape_cast %65 : vector<8x1x8x32xf32> to vector<8x8x32xf32>
    %67 = vector.extract_strided_slice %64 {offsets = [0, 1, 0, 0], sizes = [8, 1, 8, 32], strides = [1, 1, 1, 1]} : vector<8x2x8x32xf32> to vector<8x1x8x32xf32>
    %68 = vector.shape_cast %67 : vector<8x1x8x32xf32> to vector<8x8x32xf32>
    %69 = arith.maximumf %66, %68 : vector<8x8x32xf32>
    %70 = vector.shape_cast %69 : vector<8x8x32xf32> to vector<32x2x32xf32>
    %71 = vector.extract_strided_slice %70 {offsets = [0, 0, 0], sizes = [32, 1, 32], strides = [1, 1, 1]} : vector<32x2x32xf32> to vector<32x1x32xf32>
    %72 = vector.shape_cast %71 : vector<32x1x32xf32> to vector<32x32xf32>
    %73 = vector.extract_strided_slice %70 {offsets = [0, 1, 0], sizes = [32, 1, 32], strides = [1, 1, 1]} : vector<32x2x32xf32> to vector<32x1x32xf32>
    %74 = vector.shape_cast %73 : vector<32x1x32xf32> to vector<32x32xf32>
    %75 = arith.maximumf %72, %74 : vector<32x32xf32>
    %c0_18 = arith.constant 0 : index
    %c0_19 = arith.constant 0 : index
    %76 = vector.load %arg6[%c0_18, %c0_19] : memref<32x32xf32, #tpu.memory_space<vmem>>, vector<32x32xf32>
    tpu.vector_store %arg6[%c0_18, %c0_19], %75 {strides = array<i32>} : memref<32x32xf32, #tpu.memory_space<vmem>>, vector<32x32xf32>,
    return
  }
  func.func @transform_0(%arg0: i32) -> (i32, i32, i32, i32) {
    %c0_i32 = arith.constant 0 : i32
    %c0_i32_0 = arith.constant 0 : i32
    %c0_i32_1 = arith.constant 0 : i32
    %c0_i32_2 = arith.constant 0 : i32
    %c0_i32_3 = arith.constant 0 : i32
    return %c0_i32, %c0_i32_0, %c0_i32_1, %c0_i32_2 : i32, i32, i32, i32
  }
  func.func @transform_1(%arg0: i32) -> (i32, i32) {
    %c0_i32 = arith.constant 0 : i32
    %c0_i32_0 = arith.constant 0 : i32
    %c0_i32_1 = arith.constant 0 : i32
    return %c0_i32, %c0_i32_0 : i32, i32
  }
  func.func @transform_2(%arg0: i32) -> (i32, i32) {
    %c0_i32 = arith.constant 0 : i32
    %c0_i32_0 = arith.constant 0 : i32
    %c0_i32_1 = arith.constant 0 : i32
    return %c0_i32, %c0_i32_0 : i32, i32
  }
  func.func @transform_3(%arg0: i32) -> (i32, i32) {
    %c0_i32 = arith.constant 0 : i32
    %c0_i32_0 = arith.constant 0 : i32
    %c0_i32_1 = arith.constant 0 : i32
    return %c0_i32, %c0_i32_0 : i32, i32
  }
  func.func @transform_4(%arg0: i32) -> (i32, i32) {
    %c0_i32 = arith.constant 0 : i32
    %c0_i32_0 = arith.constant 0 : i32
    %c0_i32_1 = arith.constant 0 : i32
    return %c0_i32, %c0_i32_0 : i32, i32
  }
  func.func @transform_5(%arg0: i32) -> (i32, i32) {
    %c0_i32 = arith.constant 0 : i32
    %c0_i32_0 = arith.constant 0 : i32
    %c0_i32_1 = arith.constant 0 : i32
    return %c0_i32, %c0_i32_0 : i32, i32
  }
}

</mosaic_0001>

<llo_original>
// kernel: conv_extractor_forward.1
$region0: #{conv_extractor_forward.1}
  #allocation0 [shape = 'u32[]', space=smem, size = 0x4, offset = 0x4, fixed_abs, tag = 'smem constant byte address 0x4 - core index']
  #allocation1 [shape = 'u32[144,128]{1,0:T(1,128)}', space=vmem, size = 0x12000, scoped, tag = 'internal scratch']
  %s0 = inlined_call_operand.vmem [shape: f32[2,16,16,4], index: 0, kind: input, shape index: {}]
  %s1 = inlined_call_operand.vmem [shape: bf16[36,8], index: 1, kind: input, shape index: {}]
  %s2 = inlined_call_operand.vmem [shape: f32[1,8], index: 2, kind: input, shape index: {}]
  %s3 = inlined_call_operand.vmem [shape: bf16[72,32], index: 3, kind: input, shape index: {}]
  %s4 = inlined_call_operand.vmem [shape: f32[1,32], index: 4, kind: input, shape index: {}]
  %s5 = inlined_call_operand.vmem [shape: f32[32,32], index: 5, kind: output, shape index: {}]
  %s6 = sld [smem:[#allocation0]]
  $region30: #{conv_extractor_forward.1} parent=0
    _
  %s8 = ssub.s32 1, %s6
  %s9 = scalar_select 0, %s8, %s6
  // Predicated region
  $region2: #{conv_extractor_forward.1} parent=0 // pred_check
    _
  $region3: #{conv_extractor_forward.1} parent=0 // pred_check_branch
    %11 = sbr.rel (0) target = $region5
  $region4: #{conv_extractor_forward.1} parent=0 // pred_region
    _
  $region5: #{conv_extractor_forward.1} parent=0 // pred_fallthru
    _
  // Predicated region
  $region6: #{conv_extractor_forward.1} parent=0 // pred_check
    _
  $region7: #{conv_extractor_forward.1} parent=0 // pred_check_branch
    %13 = sbr.rel (0) target = $region9
  $region8: #{conv_extractor_forward.1} parent=0 // pred_region
    _
  $region9: #{conv_extractor_forward.1} parent=0 // pred_fallthru
    _
  // Predicated region
  $region10: #{conv_extractor_forward.1} parent=0 // pred_check
    _
  $region11: #{conv_extractor_forward.1} parent=0 // pred_check_branch
    %15 = sbr.rel (0) target = $region13
  $region12: #{conv_extractor_forward.1} parent=0 // pred_region
    _
  $region13: #{conv_extractor_forward.1} parent=0 // pred_fallthru
    _
  // Predicated region
  $region14: #{conv_extractor_forward.1} parent=0 // pred_check
    _
  $region15: #{conv_extractor_forward.1} parent=0 // pred_check_branch
    %17 = sbr.rel (0) target = $region17
  $region16: #{conv_extractor_forward.1} parent=0 // pred_region
    _
  $region17: #{conv_extractor_forward.1} parent=0 // pred_fallthru
    _
  // Predicated region
  $region18: #{conv_extractor_forward.1} parent=0 // pred_check
    _
  $region19: #{conv_extractor_forward.1} parent=0 // pred_check_branch
    %19 = sbr.rel (0) target = $region21
  $region20: #{conv_extractor_forward.1} parent=0 // pred_region
    _
  $region21: #{conv_extractor_forward.1} parent=0 // pred_fallthru
    _
  %v21 = vld [vmem:[%s0] sm:$0xff]
  %v22 = vld [vmem:[%s0 + $0x8] sm:$0xff]
  %v23 = vld [vmem:[%s0 + $0x10] sm:$0xff]
  %v24 = vld [vmem:[%s0 + $0x18] sm:$0xff]
  %v25 = vld [vmem:[%s0 + $0x20] sm:$0xff]
  %v26 = vld [vmem:[%s0 + $0x28] sm:$0xff]
  %v27 = vld [vmem:[%s0 + $0x30] sm:$0xff]
  %v28 = vld [vmem:[%s0 + $0x38] sm:$0xff]
  %v29 = vld [vmem:[%s0 + $0x40] sm:$0xff]
  %v30 = vld [vmem:[%s0 + $0x48] sm:$0xff]
  %v31 = vld [vmem:[%s0 + $0x50] sm:$0xff]
  %v32 = vld [vmem:[%s0 + $0x58] sm:$0xff]
  %v33 = vld [vmem:[%s0 + $0x60] sm:$0xff]
  %v34 = vld [vmem:[%s0 + $0x68] sm:$0xff]
  %v35 = vld [vmem:[%s0 + $0x70] sm:$0xff]
  %v36 = vld [vmem:[%s0 + $0x78] sm:$0xff]
  %v37 = vld [vmem:[%s0 + $0x80] sm:$0xff]
  %v38 = vld [vmem:[%s0 + $0x88] sm:$0xff]
  %v39 = vld [vmem:[%s0 + $0x90] sm:$0xff]
  %v40 = vld [vmem:[%s0 + $0x98] sm:$0xff]
  %v41 = vld [vmem:[%s0 + $0xa0] sm:$0xff]
  %v42 = vld [vmem:[%s0 + $0xa8] sm:$0xff]
  %v43 = vld [vmem:[%s0 + $0xb0] sm:$0xff]
  %v44 = vld [vmem:[%s0 + $0xb8] sm:$0xff]
  %v45 = vld [vmem:[%s0 + $0xc0] sm:$0xff]
  %v46 = vld [vmem:[%s0 + $0xc8] sm:$0xff]
  %v47 = vld [vmem:[%s0 + $0xd0] sm:$0xff]
  %v48 = vld [vmem:[%s0 + $0xd8] sm:$0xff]
  %v49 = vld [vmem:[%s0 + $0xe0] sm:$0xff]
  %v50 = vld [vmem:[%s0 + $0xe8] sm:$0xff]
  %v51 = vld [vmem:[%s0 + $0xf0] sm:$0xff]
  %v52 = vld [vmem:[%s0 + $0xf8] sm:$0xff]
  %v53 = vld [vmem:[%s0 + $0x100] sm:$0xff]
  %v54 = vld [vmem:[%s0 + $0x108] sm:$0xff]
  %v55 = vld [vmem:[%s0 + $0x110] sm:$0xff]
  %v56 = vld [vmem:[%s0 + $0x118] sm:$0xff]
  %v57 = vld [vmem:[%s0 + $0x120] sm:$0xff]
  %v58 = vld [vmem:[%s0 + $0x128] sm:$0xff]
  %v59 = vld [vmem:[%s0 + $0x130] sm:$0xff]
  %v60 = vld [vmem:[%s0 + $0x138] sm:$0xff]
  %v61 = vld [vmem:[%s0 + $0x140] sm:$0xff]
  %v62 = vld [vmem:[%s0 + $0x148] sm:$0xff]
  %v63 = vld [vmem:[%s0 + $0x150] sm:$0xff]
  %v64 = vld [vmem:[%s0 + $0x158] sm:$0xff]
  %v65 = vld [vmem:[%s0 + $0x160] sm:$0xff]
  %v66 = vld [vmem:[%s0 + $0x168] sm:$0xff]
  %v67 = vld [vmem:[%s0 + $0x170] sm:$0xff]
  %v68 = vld [vmem:[%s0 + $0x178] sm:$0xff]
  %v69 = vld [vmem:[%s0 + $0x180] sm:$0xff]
  %v70 = vld [vmem:[%s0 + $0x188] sm:$0xff]
  %v71 = vld [vmem:[%s0 + $0x190] sm:$0xff]
  %v72 = vld [vmem:[%s0 + $0x198] sm:$0xff]
  %v73 = vld [vmem:[%s0 + $0x1a0] sm:$0xff]
  %v74 = vld [vmem:[%s0 + $0x1a8] sm:$0xff]
  %v75 = vld [vmem:[%s0 + $0x1b0] sm:$0xff]
  %v76 = vld [vmem:[%s0 + $0x1b8] sm:$0xff]
  %v77 = vld [vmem:[%s0 + $0x1c0] sm:$0xff]
  %v78 = vld [vmem:[%s0 + $0x1c8] sm:$0xff]
  %v79 = vld [vmem:[%s0 + $0x1d0] sm:$0xff]
  %v80 = vld [vmem:[%s0 + $0x1d8] sm:$0xff]
  %v81 = vld [vmem:[%s0 + $0x1e0] sm:$0xff]
  %v82 = vld [vmem:[%s0 + $0x1e8] sm:$0xff]
  %v83 = vld [vmem:[%s0 + $0x1f0] sm:$0xff]
  %v84 = vld [vmem:[%s0 + $0x1f8] sm:$0xff]
  %vm150 = vcmask 1040384
  %v151 = vrot.slane 0.0, 7
  %v152 = vsel %vm150, %v151, %v151
  %v153 = vrot.slane %v21, 7
  %v154 = vrot.slane %v22, 7
  %v155 = vsel %vm150, %v153, %v154
  %v156 = vrot.slane %v23, 7
  %v157 = vrot.slane %v24, 7
  %v158 = vsel %vm150, %v156, %v157
  %v159 = vrot.slane %v25, 7
  %v160 = vrot.slane %v26, 7
  %v161 = vsel %vm150, %v159, %v160
  %v162 = vrot.slane %v27, 7
  %v163 = vrot.slane %v28, 7
  %v164 = vsel %vm150, %v162, %v163
  %v165 = vrot.slane %v29, 7
  %v166 = vrot.slane %v30, 7
  %v167 = vsel %vm150, %v165, %v166
  %v168 = vrot.slane %v31, 7
  %v169 = vrot.slane %v32, 7
  %v170 = vsel %vm150, %v168, %v169
  %v171 = vrot.slane %v33, 7
  %v172 = vrot.slane %v34, 7
  %v173 = vsel %vm150, %v171, %v172
  %v174 = vrot.slane %v35, 7
  %v175 = vrot.slane %v36, 7
  %v176 = vsel %vm150, %v174, %v175
  %v177 = vrot.slane %v37, 7
  %v178 = vrot.slane %v38, 7
  %v179 = vsel %vm150, %v177, %v178
  %v180 = vrot.slane %v39, 7
  %v181 = vrot.slane %v40, 7
  %v182 = vsel %vm150, %v180, %v181
  %v183 = vrot.slane %v41, 7
  %v184 = vrot.slane %v42, 7
  %v185 = vsel %vm150, %v183, %v184
  %v186 = vrot.slane %v43, 7
  %v187 = vrot.slane %v44, 7
  %v188 = vsel %vm150, %v186, %v187
  %v189 = vrot.slane %v45, 7
  %v190 = vrot.slane %v46, 7
  %v191 = vsel %vm150, %v189, %v190
  %v192 = vrot.slane %v47, 7
  %v193 = vrot.slane %v48, 7
  %v194 = vsel %vm150, %v192, %v193
  %v195 = vrot.slane %v49, 7
  %v196 = vrot.slane %v50, 7
  %v197 = vsel %vm150, %v195, %v196
  %v198 = vrot.slane %v51, 7
  %v199 = vrot.slane %v52, 7
  %v200 = vsel %vm150, %v198, %v199
  %v201 = vrot.slane %v53, 7
  %v202 = vrot.slane %v54, 7
  %v203 = vsel %vm150, %v201, %v202
  %v204 = vrot.slane %v55, 7
  %v205 = vrot.slane %v56, 7
  %v206 = vsel %vm150, %v204, %v205
  %v207 = vrot.slane %v57, 7
  %v208 = vrot.slane %v58, 7
  %v209 = vsel %vm150, %v207, %v208
  %v210 = vrot.slane %v59, 7
  %v211 = vrot.slane %v60, 7
  %v212 = vsel %vm150, %v210, %v211
  %v213 = vrot.slane %v61, 7
  %v214 = vrot.slane %v62, 7
  %v215 = vsel %vm150, %v213, %v214
  %v216 = vrot.slane %v63, 7
  %v217 = vrot.slane %v64, 7
  %v218 = vsel %vm150, %v216, %v217
  %v219 = vrot.slane %v65, 7
  %v220 = vrot.slane %v66, 7
  %v221 = vsel %vm150, %v219, %v220
  %v222 = vrot.slane %v67, 7
  %v223 = vrot.slane %v68, 7
  %v224 = vsel %vm150, %v222, %v223
  %v225 = vrot.slane %v69, 7
  %v226 = vrot.slane %v70, 7
  %v227 = vsel %vm150, %v225, %v226
  %v228 = vrot.slane %v71, 7
  %v229 = vrot.slane %v72, 7
  %v230 = vsel %vm150, %v228, %v229
  %v231 = vrot.slane %v73, 7
  %v232 = vrot.slane %v74, 7
  %v233 = vsel %vm150, %v231, %v232
  %v234 = vrot.slane %v75, 7
  %v235 = vrot.slane %v76, 7
  %v236 = vsel %vm150, %v234, %v235
  %v237 = vrot.slane %v77, 7
  %v238 = vrot.slane %v78, 7
  %v239 = vsel %vm150, %v237, %v238
  %v240 = vrot.slane %v79, 7
  %v241 = vrot.slane %v80, 7
  %v242 = vsel %vm150, %v240, %v241
  %v243 = vrot.slane %v81, 7
  %v244 = vrot.slane %v82, 7
  %v245 = vsel %vm150, %v243, %v244
  %v246 = vrot.slane %v83, 7
  %v247 = vrot.slane %v84, 7
  %v248 = vsel %vm150, %v246, %v247
  %v345 = vsel %vm150, 0.0, %v151
  %v346 = vsel %vm150, 0.0, %v153
  %v347 = vsel %vm150, 0.0, %v156
  %v348 = vsel %vm150, 0.0, %v159
  %v349 = vsel %vm150, 0.0, %v162
  %v350 = vsel %vm150, 0.0, %v165
  %v351 = vsel %vm150, 0.0, %v168
  %v352 = vsel %vm150, 0.0, %v171
  %v353 = vsel %vm150, 0.0, %v174
  %v354 = vsel %vm150, 0.0, %v177
  %v355 = vsel %vm150, 0.0, %v180
  %v356 = vsel %vm150, 0.0, %v183
  %v357 = vsel %vm150, 0.0, %v186
  %v358 = vsel %vm150, 0.0, %v189
  %v359 = vsel %vm150, 0.0, %v192
  %v360 = vsel %vm150, 0.0, %v195
  %v361 = vsel %vm150, 0.0, %v198
  %v362 = vsel %vm150, 0.0, %v201
  %v363 = vsel %vm150, 0.0, %v204
  %v364 = vsel %vm150, 0.0, %v207
  %v365 = vsel %vm150, 0.0, %v210
  %v366 = vsel %vm150, 0.0, %v213
  %v367 = vsel %vm150, 0.0, %v216
  %v368 = vsel %vm150, 0.0, %v219
  %v369 = vsel %vm150, 0.0, %v222
  %v370 = vsel %vm150, 0.0, %v225
  %v371 = vsel %vm150, 0.0, %v228
  %v372 = vsel %vm150, 0.0, %v231
  %v373 = vsel %vm150, 0.0, %v234
  %v374 = vsel %vm150, 0.0, %v237
  %v375 = vsel %vm150, 0.0, %v240
  %v376 = vsel %vm150, 0.0, %v243
  %v377 = vsel %vm150, 0.0, %v246
  %v378 = vsel %vm150, %v151, 0.0
  %v379 = vsel %vm150, %v154, 0.0
  %v380 = vsel %vm150, %v157, 0.0
  %v381 = vsel %vm150, %v160, 0.0
  %v382 = vsel %vm150, %v163, 0.0
  %v383 = vsel %vm150, %v166, 0.0
  %v384 = vsel %vm150, %v169, 0.0
  %v385 = vsel %vm150, %v172, 0.0
  %v386 = vsel %vm150, %v175, 0.0
  %v387 = vsel %vm150, %v178, 0.0
  %v388 = vsel %vm150, %v181, 0.0
  %v389 = vsel %vm150, %v184, 0.0
  %v390 = vsel %vm150, %v187, 0.0
  %v391 = vsel %vm150, %v190, 0.0
  %v392 = vsel %vm150, %v193, 0.0
  %v393 = vsel %vm150, %v196, 0.0
  %v394 = vsel %vm150, %v199, 0.0
  %v395 = vsel %vm150, %v202, 0.0
  %v396 = vsel %vm150, %v205, 0.0
  %v397 = vsel %vm150, %v208, 0.0
  %v398 = vsel %vm150, %v211, 0.0
  %v399 = vsel %vm150, %v214, 0.0
  %v400 = vsel %vm150, %v217, 0.0
  %v401 = vsel %vm150, %v220, 0.0
  %v402 = vsel %vm150, %v223, 0.0
  %v403 = vsel %vm150, %v226, 0.0
  %v404 = vsel %vm150, %v229, 0.0
  %v405 = vsel %vm150, %v232, 0.0
  %v406 = vsel %vm150, %v235, 0.0
  %v407 = vsel %vm150, %v238, 0.0
  %v408 = vsel %vm150, %v241, 0.0
  %v409 = vsel %vm150, %v244, 0.0
  %v410 = vsel %vm150, %v247, 0.0
  %vm473 = vcmask 1046528
  %v474 = vrot.slane %v345, 1
  %v475 = vrot.slane %v152, 1
  %v476 = vsel %vm473, %v474, %v475
  %v477 = vrot.slane %v378, 1
  %v478 = vsel %vm473, %v475, %v477
  %v479 = vrot.slane %v346, 1
  %v480 = vrot.slane %v155, 1
  %v481 = vsel %vm473, %v479, %v480
  %v482 = vrot.slane %v379, 1
  %v483 = vsel %vm473, %v480, %v482
  %v484 = vrot.slane %v347, 1
  %v485 = vrot.slane %v158, 1
  %v486 = vsel %vm473, %v484, %v485
  %v487 = vrot.slane %v380, 1
  %v488 = vsel %vm473, %v485, %v487
  %v489 = vrot.slane %v348, 1
  %v490 = vrot.slane %v161, 1
  %v491 = vsel %vm473, %v489, %v490
  %v492 = vrot.slane %v381, 1
  %v493 = vsel %vm473, %v490, %v492
  %v494 = vrot.slane %v349, 1
  %v495 = vrot.slane %v164, 1
  %v496 = vsel %vm473, %v494, %v495
  %v497 = vrot.slane %v382, 1
  %v498 = vsel %vm473, %v495, %v497
  %v499 = vrot.slane %v350, 1
  %v500 = vrot.slane %v167, 1
  %v501 = vsel %vm473, %v499, %v500
  %v502 = vrot.slane %v383, 1
  %v503 = vsel %vm473, %v500, %v502
  %v504 = vrot.slane %v351, 1
  %v505 = vrot.slane %v170, 1
  %v506 = vsel %vm473, %v504, %v505
  %v507 = vrot.slane %v384, 1
  %v508 = vsel %vm473, %v505, %v507
  %v509 = vrot.slane %v352, 1
  %v510 = vrot.slane %v173, 1
  %v511 = vsel %vm473, %v509, %v510
  %v512 = vrot.slane %v385, 1
  %v513 = vsel %vm473, %v510, %v512
  %v514 = vrot.slane %v353, 1
  %v515 = vrot.slane %v176, 1
  %v516 = vsel %vm473, %v514, %v515
  %v517 = vrot.slane %v386, 1
  %v518 = vsel %vm473, %v515, %v517
  %v519 = vrot.slane %v354, 1
  %v520 = vrot.slane %v179, 1
  %v521 = vsel %vm473, %v519, %v520
  %v522 = vrot.slane %v387, 1
  %v523 = vsel %vm473, %v520, %v522
  %v524 = vrot.slane %v355, 1
  %v525 = vrot.slane %v182, 1
  %v526 = vsel %vm473, %v524, %v525
  %v527 = vrot.slane %v388, 1
  %v528 = vsel %vm473, %v525, %v527
  %v529 = vrot.slane %v356, 1
  %v530 = vrot.slane %v185, 1
  %v531 = vsel %vm473, %v529, %v530
  %v532 = vrot.slane %v389, 1
  %v533 = vsel %vm473, %v530, %v532
  %v534 = vrot.slane %v357, 1
  %v535 = vrot.slane %v188, 1
  %v536 = vsel %vm473, %v534, %v535
  %v537 = vrot.slane %v390, 1
  %v538 = vsel %vm473, %v535, %v537
  %v539 = vrot.slane %v358, 1
  %v540 = vrot.slane %v191, 1
  %v541 = vsel %vm473, %v539, %v540
  %v542 = vrot.slane %v391, 1
  %v543 = vsel %vm473, %v540, %v542
  %v544 = vrot.slane %v359, 1
  %v545 = vrot.slane %v194, 1
  %v546 = vsel %vm473, %v544, %v545
  %v547 = vrot.slane %v392, 1
  %v548 = vsel %vm473, %v545, %v547
  %v549 = vrot.slane %v360, 1
  %v550 = vrot.slane %v197, 1
  %v551 = vsel %vm473, %v549, %v550
  %v552 = vrot.slane %v393, 1
  %v553 = vsel %vm473, %v550, %v552
  %v554 = vrot.slane %v362, 1
  %v555 = vrot.slane %v203, 1
  %v556 = vsel %vm473, %v554, %v555
  %v557 = vrot.slane %v395, 1
  %v558 = vsel %vm473, %v555, %v557
  %v559 = vrot.slane %v363, 1
  %v560 = vrot.slane %v206, 1
  %v561 = vsel %vm473, %v559, %v560
  %v562 = vrot.slane %v396, 1
  %v563 = vsel %vm473, %v560, %v562
  %v564 = vrot.slane %v364, 1
  %v565 = vrot.slane %v209, 1
  %v566 = vsel %vm473, %v564, %v565
  %v567 = vrot.slane %v397, 1
  %v568 = vsel %vm473, %v565, %v567
  %v569 = vrot.slane %v365, 1
  %v570 = vrot.slane %v212, 1
  %v571 = vsel %vm473, %v569, %v570
  %v572 = vrot.slane %v398, 1
  %v573 = vsel %vm473, %v570, %v572
  %v574 = vrot.slane %v366, 1
  %v575 = vrot.slane %v215, 1
  %v576 = vsel %vm473, %v574, %v575
  %v577 = vrot.slane %v399, 1
  %v578 = vsel %vm473, %v575, %v577
  %v579 = vrot.slane %v367, 1
  %v580 = vrot.slane %v218, 1
  %v581 = vsel %vm473, %v579, %v580
  %v582 = vrot.slane %v400, 1
  %v583 = vsel %vm473, %v580, %v582
  %v584 = vrot.slane %v368, 1
  %v585 = vrot.slane %v221, 1
  %v586 = vsel %vm473, %v584, %v585
  %v587 = vrot.slane %v401, 1
  %v588 = vsel %vm473, %v585, %v587
  %v589 = vrot.slane %v369, 1
  %v590 = vrot.slane %v224, 1
  %v591 = vsel %vm473, %v589, %v590
  %v592 = vrot.slane %v402, 1
  %v593 = vsel %vm473, %v590, %v592
  %v594 = vrot.slane %v370, 1
  %v595 = vrot.slane %v227, 1
  %v596 = vsel %vm473, %v594, %v595
  %v597 = vrot.slane %v403, 1
  %v598 = vsel %vm473, %v595, %v597
  %v599 = vrot.slane %v371, 1
  %v600 = vrot.slane %v230, 1
  %v601 = vsel %vm473, %v599, %v600
  %v602 = vrot.slane %v404, 1
  %v603 = vsel %vm473, %v600, %v602
  %v604 = vrot.slane %v372, 1
  %v605 = vrot.slane %v233, 1
  %v606 = vsel %vm473, %v604, %v605
  %v607 = vrot.slane %v405, 1
  %v608 = vsel %vm473, %v605, %v607
  %v609 = vrot.slane %v373, 1
  %v610 = vrot.slane %v236, 1
  %v611 = vsel %vm473, %v609, %v610
  %v612 = vrot.slane %v406, 1
  %v613 = vsel %vm473, %v610, %v612
  %v614 = vrot.slane %v374, 1
  %v615 = vrot.slane %v239, 1
  %v616 = vsel %vm473, %v614, %v615
  %v617 = vrot.slane %v407, 1
  %v618 = vsel %vm473, %v615, %v617
  %v619 = vrot.slane %v375, 1
  %v620 = vrot.slane %v242, 1
  %v621 = vsel %vm473, %v619, %v620
  %v622 = vrot.slane %v408, 1
  %v623 = vsel %vm473, %v620, %v622
  %v624 = vrot.slane %v376, 1
  %v625 = vrot.slane %v245, 1
  %v626 = vsel %vm473, %v624, %v625
  %v627 = vrot.slane %v409, 1
  %v628 = vsel %vm473, %v625, %v627
  %629 = vrot.lane.b32.xlu0 %v476, 4
  %v630 = vpop.permute.xlu0 %629
  %631 = vrot.lane.b32.xlu0 %v478, 4
  %v632 = vpop.permute.xlu0 %631
  %633 = vrot.lane.b32.xlu0 %v481, 4
  %v634 = vpop.permute.xlu0 %633
  %635 = vrot.lane.b32.xlu0 %v483, 4
  %v636 = vpop.permute.xlu0 %635
  %637 = vrot.lane.b32.xlu0 %v486, 4
  %v638 = vpop.permute.xlu0 %637
  %639 = vrot.lane.b32.xlu0 %v488, 4
  %v640 = vpop.permute.xlu0 %639
  %641 = vrot.lane.b32.xlu0 %v491, 4
  %v642 = vpop.permute.xlu0 %641
  %643 = vrot.lane.b32.xlu0 %v493, 4
  %v644 = vpop.permute.xlu0 %643
  %645 = vrot.lane.b32.xlu0 %v496, 4
  %v646 = vpop.permute.xlu0 %645
  %647 = vrot.lane.b32.xlu0 %v498, 4
  %v648 = vpop.permute.xlu0 %647
  %649 = vrot.lane.b32.xlu0 %v501, 4
  %v650 = vpop.permute.xlu0 %649
  %651 = vrot.lane.b32.xlu0 %v503, 4
  %v652 = vpop.permute.xlu0 %651
  %653 = vrot.lane.b32.xlu0 %v506, 4
  %v654 = vpop.permute.xlu0 %653
  %655 = vrot.lane.b32.xlu0 %v508, 4
  %v656 = vpop.permute.xlu0 %655
  %657 = vrot.lane.b32.xlu0 %v511, 4
  %v658 = vpop.permute.xlu0 %657
  %659 = vrot.lane.b32.xlu0 %v513, 4
  %v660 = vpop.permute.xlu0 %659
  %661 = vrot.lane.b32.xlu0 %v516, 4
  %v662 = vpop.permute.xlu0 %661
  %663 = vrot.lane.b32.xlu0 %v518, 4
  %v664 = vpop.permute.xlu0 %663
  %665 = vrot.lane.b32.xlu0 %v521, 4
  %v666 = vpop.permute.xlu0 %665
  %667 = vrot.lane.b32.xlu0 %v523, 4
  %v668 = vpop.permute.xlu0 %667
  %669 = vrot.lane.b32.xlu0 %v526, 4
  %v670 = vpop.permute.xlu0 %669
  %671 = vrot.lane.b32.xlu0 %v528, 4
  %v672 = vpop.permute.xlu0 %671
  %673 = vrot.lane.b32.xlu0 %v531, 4
  %v674 = vpop.permute.xlu0 %673
  %675 = vrot.lane.b32.xlu0 %v533, 4
  %v676 = vpop.permute.xlu0 %675
  %677 = vrot.lane.b32.xlu0 %v536, 4
  %v678 = vpop.permute.xlu0 %677
  %679 = vrot.lane.b32.xlu0 %v538, 4
  %v680 = vpop.permute.xlu0 %679
  %681 = vrot.lane.b32.xlu0 %v541, 4
  %v682 = vpop.permute.xlu0 %681
  %683 = vrot.lane.b32.xlu0 %v543, 4
  %v684 = vpop.permute.xlu0 %683
  %685 = vrot.lane.b32.xlu0 %v546, 4
  %v686 = vpop.permute.xlu0 %685
  %687 = vrot.lane.b32.xlu0 %v548, 4
  %v688 = vpop.permute.xlu0 %687
  %689 = vrot.lane.b32.xlu0 %v551, 4
  %v690 = vpop.permute.xlu0 %689
  %691 = vrot.lane.b32.xlu0 %v553, 4
  %v692 = vpop.permute.xlu0 %691
  %693 = vrot.lane.b32.xlu0 %v556, 4
  %v694 = vpop.permute.xlu0 %693
  %695 = vrot.lane.b32.xlu0 %v558, 4
  %v696 = vpop.permute.xlu0 %695
  %697 = vrot.lane.b32.xlu0 %v561, 4
  %v698 = vpop.permute.xlu0 %697
  %699 = vrot.lane.b32.xlu0 %v563, 4
  %v700 = vpop.permute.xlu0 %699
  %701 = vrot.lane.b32.xlu0 %v566, 4
  %v702 = vpop.permute.xlu0 %701
  %703 = vrot.lane.b32.xlu0 %v568, 4
  %v704 = vpop.permute.xlu0 %703
  %705 = vrot.lane.b32.xlu0 %v571, 4
  %v706 = vpop.permute.xlu0 %705
  %707 = vrot.lane.b32.xlu0 %v573, 4
  %v708 = vpop.permute.xlu0 %707
  %709 = vrot.lane.b32.xlu0 %v576, 4
  %v710 = vpop.permute.xlu0 %709
  %711 = vrot.lane.b32.xlu0 %v578, 4
  %v712 = vpop.permute.xlu0 %711
  %713 = vrot.lane.b32.xlu0 %v581, 4
  %v714 = vpop.permute.xlu0 %713
  %715 = vrot.lane.b32.xlu0 %v583, 4
  %v716 = vpop.permute.xlu0 %715
  %717 = vrot.lane.b32.xlu0 %v586, 4
  %v718 = vpop.permute.xlu0 %717
  %719 = vrot.lane.b32.xlu0 %v588, 4
  %v720 = vpop.permute.xlu0 %719
  %721 = vrot.lane.b32.xlu0 %v591, 4
  %v722 = vpop.permute.xlu0 %721
  %723 = vrot.lane.b32.xlu0 %v593, 4
  %v724 = vpop.permute.xlu0 %723
  %725 = vrot.lane.b32.xlu0 %v596, 4
  %v726 = vpop.permute.xlu0 %725
  %727 = vrot.lane.b32.xlu0 %v598, 4
  %v728 = vpop.permute.xlu0 %727
  %729 = vrot.lane.b32.xlu0 %v601, 4
  %v730 = vpop.permute.xlu0 %729
  %731 = vrot.lane.b32.xlu0 %v603, 4
  %v732 = vpop.permute.xlu0 %731
  %733 = vrot.lane.b32.xlu0 %v606, 4
  %v734 = vpop.permute.xlu0 %733
  %735 = vrot.lane.b32.xlu0 %v608, 4
  %v736 = vpop.permute.xlu0 %735
  %737 = vrot.lane.b32.xlu0 %v611, 4
  %v738 = vpop.permute.xlu0 %737
  %739 = vrot.lane.b32.xlu0 %v613, 4
  %v740 = vpop.permute.xlu0 %739
  %741 = vrot.lane.b32.xlu0 %v616, 4
  %v742 = vpop.permute.xlu0 %741
  %743 = vrot.lane.b32.xlu0 %v618, 4
  %v744 = vpop.permute.xlu0 %743
  %745 = vrot.lane.b32.xlu0 %v621, 4
  %v746 = vpop.permute.xlu0 %745
  %747 = vrot.lane.b32.xlu0 %v623, 4
  %v748 = vpop.permute.xlu0 %747
  %749 = vrot.lane.b32.xlu0 %v626, 4
  %v750 = vpop.permute.xlu0 %749
  %751 = vrot.lane.b32.xlu0 %v628, 4
  %v752 = vpop.permute.xlu0 %751
  %vm815 = vcmask 1045504
  %v816 = vrot.slane %v345, 2
  %v817 = vrot.slane %v152, 2
  %v818 = vsel %vm815, %v816, %v817
  %v819 = vrot.slane %v378, 2
  %v820 = vsel %vm815, %v817, %v819
  %v821 = vrot.slane %v346, 2
  %v822 = vrot.slane %v155, 2
  %v823 = vsel %vm815, %v821, %v822
  %v824 = vrot.slane %v379, 2
  %v825 = vsel %vm815, %v822, %v824
  %v826 = vrot.slane %v347, 2
  %v827 = vrot.slane %v158, 2
  %v828 = vsel %vm815, %v826, %v827
  %v829 = vrot.slane %v380, 2
  %v830 = vsel %vm815, %v827, %v829
  %v831 = vrot.slane %v348, 2
  %v832 = vrot.slane %v161, 2
  %v833 = vsel %vm815, %v831, %v832
  %v834 = vrot.slane %v381, 2
  %v835 = vsel %vm815, %v832, %v834
  %v836 = vrot.slane %v349, 2
  %v837 = vrot.slane %v164, 2
  %v838 = vsel %vm815, %v836, %v837
  %v839 = vrot.slane %v382, 2
  %v840 = vsel %vm815, %v837, %v839
  %v841 = vrot.slane %v350, 2
  %v842 = vrot.slane %v167, 2
  %v843 = vsel %vm815, %v841, %v842
  %v844 = vrot.slane %v383, 2
  %v845 = vsel %vm815, %v842, %v844
  %v846 = vrot.slane %v351, 2
  %v847 = vrot.slane %v170, 2
  %v848 = vsel %vm815, %v846, %v847
  %v849 = vrot.slane %v384, 2
  %v850 = vsel %vm815, %v847, %v849
  %v851 = vrot.slane %v352, 2
  %v852 = vrot.slane %v173, 2
  %v853 = vsel %vm815, %v851, %v852
  %v854 = vrot.slane %v385, 2
  %v855 = vsel %vm815, %v852, %v854
  %v856 = vrot.slane %v353, 2
  %v857 = vrot.slane %v176, 2
  %v858 = vsel %vm815, %v856, %v857
  %v859 = vrot.slane %v386, 2
  %v860 = vsel %vm815, %v857, %v859
  %v861 = vrot.slane %v354, 2
  %v862 = vrot.slane %v179, 2
  %v863 = vsel %vm815, %v861, %v862
  %v864 = vrot.slane %v387, 2
  %v865 = vsel %vm815, %v862, %v864
  %v866 = vrot.slane %v355, 2
  %v867 = vrot.slane %v182, 2
  %v868 = vsel %vm815, %v866, %v867
  %v869 = vrot.slane %v388, 2
  %v870 = vsel %vm815, %v867, %v869
  %v871 = vrot.slane %v356, 2
  %v872 = vrot.slane %v185, 2
  %v873 = vsel %vm815, %v871, %v872
  %v874 = vrot.slane %v389, 2
  %v875 = vsel %vm815, %v872, %v874
  %v876 = vrot.slane %v357, 2
  %v877 = vrot.slane %v188, 2
  %v878 = vsel %vm815, %v876, %v877
  %v879 = vrot.slane %v390, 2
  %v880 = vsel %vm815, %v877, %v879
  %v881 = vrot.slane %v358, 2
  %v882 = vrot.slane %v191, 2
  %v883 = vsel %vm815, %v881, %v882
  %v884 = vrot.slane %v391, 2
  %v885 = vsel %vm815, %v882, %v884
  %v886 = vrot.slane %v359, 2
  %v887 = vrot.slane %v194, 2
  %v888 = vsel %vm815, %v886, %v887
  %v889 = vrot.slane %v392, 2
  %v890 = vsel %vm815, %v887, %v889
  %v891 = vrot.slane %v360, 2
  %v892 = vrot.slane %v197, 2
  %v893 = vsel %vm815, %v891, %v892
  %v894 = vrot.slane %v393, 2
  %v895 = vsel %vm815, %v892, %v894
  %v896 = vrot.slane %v362, 2
  %v897 = vrot.slane %v203, 2
  %v898 = vsel %vm815, %v896, %v897
  %v899 = vrot.slane %v395, 2
  %v900 = vsel %vm815, %v897, %v899
  %v901 = vrot.slane %v363, 2
  %v902 = vrot.slane %v206, 2
  %v903 = vsel %vm815, %v901, %v902
  %v904 = vrot.slane %v396, 2
  %v905 = vsel %vm815, %v902, %v904
  %v906 = vrot.slane %v364, 2
  %v907 = vrot.slane %v209, 2
  %v908 = vsel %vm815, %v906, %v907
  %v909 = vrot.slane %v397, 2
  %v910 = vsel %vm815, %v907, %v909
  %v911 = vrot.slane %v365, 2
  %v912 = vrot.slane %v212, 2
  %v913 = vsel %vm815, %v911, %v912
  %v914 = vrot.slane %v398, 2
  %v915 = vsel %vm815, %v912, %v914
  %v916 = vrot.slane %v366, 2
  %v917 = vrot.slane %v215, 2
  %v918 = vsel %vm815, %v916, %v917
  %v919 = vrot.slane %v399, 2
  %v920 = vsel %vm815, %v917, %v919
  %v921 = vrot.slane %v367, 2
  %v922 = vrot.slane %v218, 2
  %v923 = vsel %vm815, %v921, %v922
  %v924 = vrot.slane %v400, 2
  %v925 = vsel %vm815, %v922, %v924
  %v926 = vrot.slane %v368, 2
  %v927 = vrot.slane %v221, 2
  %v928 = vsel %vm815, %v926, %v927
  %v929 = vrot.slane %v401, 2
  %v930 = vsel %vm815, %v927, %v929
  %v931 = vrot.slane %v369, 2
  %v932 = vrot.slane %v224, 2
  %v933 = vsel %vm815, %v931, %v932
  %v934 = vrot.slane %v402, 2
  %v935 = vsel %vm815, %v932, %v934
  %v936 = vrot.slane %v370, 2
  %v937 = vrot.slane %v227, 2
  %v938 = vsel %vm815, %v936, %v937
  %v939 = vrot.slane %v403, 2
  %v940 = vsel %vm815, %v937, %v939
  %v941 = vrot.slane %v371, 2
  %v942 = vrot.slane %v230, 2
  %v943 = vsel %vm815, %v941, %v942
  %v944 = vrot.slane %v404, 2
  %v945 = vsel %vm815, %v942, %v944
  %v946 = vrot.slane %v372, 2
  %v947 = vrot.slane %v233, 2
  %v948 = vsel %vm815, %v946, %v947
  %v949 = vrot.slane %v405, 2
  %v950 = vsel %vm815, %v947, %v949
  %v951 = vrot.slane %v373, 2
  %v952 = vrot.slane %v236, 2
  %v953 = vsel %vm815, %v951, %v952
  %v954 = vrot.slane %v406, 2
  %v955 = vsel %vm815, %v952, %v954
  %v956 = vrot.slane %v374, 2
  %v957 = vrot.slane %v239, 2
  %v958 = vsel %vm815, %v956, %v957
  %v959 = vrot.slane %v407, 2
  %v960 = vsel %vm815, %v957, %v959
  %v961 = vrot.slane %v375, 2
  %v962 = vrot.slane %v242, 2
  %v963 = vsel %vm815, %v961, %v962
  %v964 = vrot.slane %v408, 2
  %v965 = vsel %vm815, %v962, %v964
  %v966 = vrot.slane %v376, 2
  %v967 = vrot.slane %v245, 2
  %v968 = vsel %vm815, %v966, %v967
  %v969 = vrot.slane %v409, 2
  %v970 = vsel %vm815, %v967, %v969
  %971 = vrot.lane.b32.xlu0 %v818, 8
  %v972 = vpop.permute.xlu0 %971
  %973 = vrot.lane.b32.xlu0 %v820, 8
  %v974 = vpop.permute.xlu0 %973
  %975 = vrot.lane.b32.xlu0 %v823, 8
  %v976 = vpop.permute.xlu0 %975
  %977 = vrot.lane.b32.xlu0 %v825, 8
  %v978 = vpop.permute.xlu0 %977
  %979 = vrot.lane.b32.xlu0 %v828, 8
  %v980 = vpop.permute.xlu0 %979
  %981 = vrot.lane.b32.xlu0 %v830, 8
  %v982 = vpop.permute.xlu0 %981
  %983 = vrot.lane.b32.xlu0 %v833, 8
  %v984 = vpop.permute.xlu0 %983
  %985 = vrot.lane.b32.xlu0 %v835, 8
  %v986 = vpop.permute.xlu0 %985
  %987 = vrot.lane.b32.xlu0 %v838, 8
  %v988 = vpop.permute.xlu0 %987
  %989 = vrot.lane.b32.xlu0 %v840, 8
  %v990 = vpop.permute.xlu0 %989
  %991 = vrot.lane.b32.xlu0 %v843, 8
  %v992 = vpop.permute.xlu0 %991
  %993 = vrot.lane.b32.xlu0 %v845, 8
  %v994 = vpop.permute.xlu0 %993
  %995 = vrot.lane.b32.xlu0 %v848, 8
  %v996 = vpop.permute.xlu0 %995
  %997 = vrot.lane.b32.xlu0 %v850, 8
  %v998 = vpop.permute.xlu0 %997
  %999 = vrot.lane.b32.xlu0 %v853, 8
  %v1000 = vpop.permute.xlu0 %999
  %1001 = vrot.lane.b32.xlu0 %v855, 8
  %v1002 = vpop.permute.xlu0 %1001
  %1003 = vrot.lane.b32.xlu0 %v858, 8
  %v1004 = vpop.permute.xlu0 %1003
  %1005 = vrot.lane.b32.xlu0 %v860, 8
  %v1006 = vpop.permute.xlu0 %1005
  %1007 = vrot.lane.b32.xlu0 %v863, 8
  %v1008 = vpop.permute.xlu0 %1007
  %1009 = vrot.lane.b32.xlu0 %v865, 8
  %v1010 = vpop.permute.xlu0 %1009
  %1011 = vrot.lane.b32.xlu0 %v868, 8
  %v1012 = vpop.permute.xlu0 %1011
  %1013 = vrot.lane.b32.xlu0 %v870, 8
  %v1014 = vpop.permute.xlu0 %1013
  %1015 = vrot.lane.b32.xlu0 %v873, 8
  %v1016 = vpop.permute.xlu0 %1015
  %1017 = vrot.lane.b32.xlu0 %v875, 8
  %v1018 = vpop.permute.xlu0 %1017
  %1019 = vrot.lane.b32.xlu0 %v878, 8
  %v1020 = vpop.permute.xlu0 %1019
  %1021 = vrot.lane.b32.xlu0 %v880, 8
  %v1022 = vpop.permute.xlu0 %1021
  %1023 = vrot.lane.b32.xlu0 %v883, 8
  %v1024 = vpop.permute.xlu0 %1023
  %1025 = vrot.lane.b32.xlu0 %v885, 8
  %v1026 = vpop.permute.xlu0 %1025
  %1027 = vrot.lane.b32.xlu0 %v888, 8
  %v1028 = vpop.permute.xlu0 %1027
  %1029 = vrot.lane.b32.xlu0 %v890, 8
  %v1030 = vpop.permute.xlu0 %1029
  %1031 = vrot.lane.b32.xlu0 %v893, 8
  %v1032 = vpop.permute.xlu0 %1031
  %1033 = vrot.lane.b32.xlu0 %v895, 8
  %v1034 = vpop.permute.xlu0 %1033
  %1035 = vrot.lane.b32.xlu0 %v898, 8
  %v1036 = vpop.permute.xlu0 %1035
  %1037 = vrot.lane.b32.xlu0 %v900, 8
  %v1038 = vpop.permute.xlu0 %1037
  %1039 = vrot.lane.b32.xlu0 %v903, 8
  %v1040 = vpop.permute.xlu0 %1039
  %1041 = vrot.lane.b32.xlu0 %v905, 8
  %v1042 = vpop.permute.xlu0 %1041
  %1043 = vrot.lane.b32.xlu0 %v908, 8
  %v1044 = vpop.permute.xlu0 %1043
  %1045 = vrot.lane.b32.xlu0 %v910, 8
  %v1046 = vpop.permute.xlu0 %1045
  %1047 = vrot.lane.b32.xlu0 %v913, 8
  %v1048 = vpop.permute.xlu0 %1047
  %1049 = vrot.lane.b32.xlu0 %v915, 8
  %v1050 = vpop.permute.xlu0 %1049
  %1051 = vrot.lane.b32.xlu0 %v918, 8
  %v1052 = vpop.permute.xlu0 %1051
  %1053 = vrot.lane.b32.xlu0 %v920, 8
  %v1054 = vpop.permute.xlu0 %1053
  %1055 = vrot.lane.b32.xlu0 %v923, 8
  %v1056 = vpop.permute.xlu0 %1055
  %1057 = vrot.lane.b32.xlu0 %v925, 8
  %v1058 = vpop.permute.xlu0 %1057
  %1059 = vrot.lane.b32.xlu0 %v928, 8
  %v1060 = vpop.permute.xlu0 %1059
  %1061 = vrot.lane.b32.xlu0 %v930, 8
  %v1062 = vpop.permute.xlu0 %1061
  %1063 = vrot.lane.b32.xlu0 %v933, 8
  %v1064 = vpop.permute.xlu0 %1063
  %1065 = vrot.lane.b32.xlu0 %v935, 8
  %v1066 = vpop.permute.xlu0 %1065
  %1067 = vrot.lane.b32.xlu0 %v938, 8
  %v1068 = vpop.permute.xlu0 %1067
  %1069 = vrot.lane.b32.xlu0 %v940, 8
  %v1070 = vpop.permute.xlu0 %1069
  %1071 = vrot.lane.b32.xlu0 %v943, 8
  %v1072 = vpop.permute.xlu0 %1071
  %1073 = vrot.lane.b32.xlu0 %v945, 8
  %v1074 = vpop.permute.xlu0 %1073
  %1075 = vrot.lane.b32.xlu0 %v948, 8
  %v1076 = vpop.permute.xlu0 %1075
  %1077 = vrot.lane.b32.xlu0 %v950, 8
  %v1078 = vpop.permute.xlu0 %1077
  %1079 = vrot.lane.b32.xlu0 %v953, 8
  %v1080 = vpop.permute.xlu0 %1079
  %1081 = vrot.lane.b32.xlu0 %v955, 8
  %v1082 = vpop.permute.xlu0 %1081
  %1083 = vrot.lane.b32.xlu0 %v958, 8
  %v1084 = vpop.permute.xlu0 %1083
  %1085 = vrot.lane.b32.xlu0 %v960, 8
  %v1086 = vpop.permute.xlu0 %1085
  %1087 = vrot.lane.b32.xlu0 %v963, 8
  %v1088 = vpop.permute.xlu0 %1087
  %1089 = vrot.lane.b32.xlu0 %v965, 8
  %v1090 = vpop.permute.xlu0 %1089
  %1091 = vrot.lane.b32.xlu0 %v968, 8
  %v1092 = vpop.permute.xlu0 %1091
  %1093 = vrot.lane.b32.xlu0 %v970, 8
  %v1094 = vpop.permute.xlu0 %1093
  %1159 = vrot.lane.b32.xlu0 %v346, 12
  %v1160 = vpop.permute.xlu0 %1159
  %1161 = vrot.lane.b32.xlu0 %v155, 12
  %v1162 = vpop.permute.xlu0 %1161
  %1163 = vrot.lane.b32.xlu0 %v347, 12
  %v1164 = vpop.permute.xlu0 %1163
  %1165 = vrot.lane.b32.xlu0 %v158, 12
  %v1166 = vpop.permute.xlu0 %1165
  %1167 = vrot.lane.b32.xlu0 %v348, 12
  %v1168 = vpop.permute.xlu0 %1167
  %1169 = vrot.lane.b32.xlu0 %v161, 12
  %v1170 = vpop.permute.xlu0 %1169
  %1171 = vrot.lane.b32.xlu0 %v349, 12
  %v1172 = vpop.permute.xlu0 %1171
  %1173 = vrot.lane.b32.xlu0 %v164, 12
  %v1174 = vpop.permute.xlu0 %1173
  %1175 = vrot.lane.b32.xlu0 %v350, 12
  %v1176 = vpop.permute.xlu0 %1175
  %1177 = vrot.lane.b32.xlu0 %v167, 12
  %v1178 = vpop.permute.xlu0 %1177
  %1179 = vrot.lane.b32.xlu0 %v351, 12
  %v1180 = vpop.permute.xlu0 %1179
  %1181 = vrot.lane.b32.xlu0 %v170, 12
  %v1182 = vpop.permute.xlu0 %1181
  %1183 = vrot.lane.b32.xlu0 %v352, 12
  %v1184 = vpop.permute.xlu0 %1183
  %1185 = vrot.lane.b32.xlu0 %v173, 12
  %v1186 = vpop.permute.xlu0 %1185
  %1187 = vrot.lane.b32.xlu0 %v353, 12
  %v1188 = vpop.permute.xlu0 %1187
  %1189 = vrot.lane.b32.xlu0 %v176, 12
  %v1190 = vpop.permute.xlu0 %1189
  %1191 = vrot.lane.b32.xlu0 %v354, 12
  %v1192 = vpop.permute.xlu0 %1191
  %1193 = vrot.lane.b32.xlu0 %v179, 12
  %v1194 = vpop.permute.xlu0 %1193
  %1195 = vrot.lane.b32.xlu0 %v355, 12
  %v1196 = vpop.permute.xlu0 %1195
  %1197 = vrot.lane.b32.xlu0 %v182, 12
  %v1198 = vpop.permute.xlu0 %1197
  %1199 = vrot.lane.b32.xlu0 %v356, 12
  %v1200 = vpop.permute.xlu0 %1199
  %1201 = vrot.lane.b32.xlu0 %v185, 12
  %v1202 = vpop.permute.xlu0 %1201
  %1203 = vrot.lane.b32.xlu0 %v357, 12
  %v1204 = vpop.permute.xlu0 %1203
  %1205 = vrot.lane.b32.xlu0 %v188, 12
  %v1206 = vpop.permute.xlu0 %1205
  %1207 = vrot.lane.b32.xlu0 %v358, 12
  %v1208 = vpop.permute.xlu0 %1207
  %1209 = vrot.lane.b32.xlu0 %v191, 12
  %v1210 = vpop.permute.xlu0 %1209
  %1211 = vrot.lane.b32.xlu0 %v359, 12
  %v1212 = vpop.permute.xlu0 %1211
  %1213 = vrot.lane.b32.xlu0 %v194, 12
  %v1214 = vpop.permute.xlu0 %1213
  %1215 = vrot.lane.b32.xlu0 %v360, 12
  %v1216 = vpop.permute.xlu0 %1215
  %1217 = vrot.lane.b32.xlu0 %v197, 12
  %v1218 = vpop.permute.xlu0 %1217
  %1219 = vrot.lane.b32.xlu0 %v361, 12
  %v1220 = vpop.permute.xlu0 %1219
  %1221 = vrot.lane.b32.xlu0 %v200, 12
  %v1222 = vpop.permute.xlu0 %1221
  %1223 = vrot.lane.b32.xlu0 %v362, 12
  %v1224 = vpop.permute.xlu0 %1223
  %1225 = vrot.lane.b32.xlu0 %v203, 12
  %v1226 = vpop.permute.xlu0 %1225
  %1227 = vrot.lane.b32.xlu0 %v363, 12
  %v1228 = vpop.permute.xlu0 %1227
  %1229 = vrot.lane.b32.xlu0 %v206, 12
  %v1230 = vpop.permute.xlu0 %1229
  %1231 = vrot.lane.b32.xlu0 %v364, 12
  %v1232 = vpop.permute.xlu0 %1231
  %1233 = vrot.lane.b32.xlu0 %v209, 12
  %v1234 = vpop.permute.xlu0 %1233
  %1235 = vrot.lane.b32.xlu0 %v365, 12
  %v1236 = vpop.permute.xlu0 %1235
  %1237 = vrot.lane.b32.xlu0 %v212, 12
  %v1238 = vpop.permute.xlu0 %1237
  %1239 = vrot.lane.b32.xlu0 %v366, 12
  %v1240 = vpop.permute.xlu0 %1239
  %1241 = vrot.lane.b32.xlu0 %v215, 12
  %v1242 = vpop.permute.xlu0 %1241
  %1243 = vrot.lane.b32.xlu0 %v367, 12
  %v1244 = vpop.permute.xlu0 %1243
  %1245 = vrot.lane.b32.xlu0 %v218, 12
  %v1246 = vpop.permute.xlu0 %1245
  %1247 = vrot.lane.b32.xlu0 %v368, 12
  %v1248 = vpop.permute.xlu0 %1247
  %1249 = vrot.lane.b32.xlu0 %v221, 12
  %v1250 = vpop.permute.xlu0 %1249
  %1251 = vrot.lane.b32.xlu0 %v369, 12
  %v1252 = vpop.permute.xlu0 %1251
  %1253 = vrot.lane.b32.xlu0 %v224, 12
  %v1254 = vpop.permute.xlu0 %1253
  %1255 = vrot.lane.b32.xlu0 %v370, 12
  %v1256 = vpop.permute.xlu0 %1255
  %1257 = vrot.lane.b32.xlu0 %v227, 12
  %v1258 = vpop.permute.xlu0 %1257
  %1259 = vrot.lane.b32.xlu0 %v371, 12
  %v1260 = vpop.permute.xlu0 %1259
  %1261 = vrot.lane.b32.xlu0 %v230, 12
  %v1262 = vpop.permute.xlu0 %1261
  %1263 = vrot.lane.b32.xlu0 %v372, 12
  %v1264 = vpop.permute.xlu0 %1263
  %1265 = vrot.lane.b32.xlu0 %v233, 12
  %v1266 = vpop.permute.xlu0 %1265
  %1267 = vrot.lane.b32.xlu0 %v373, 12
  %v1268 = vpop.permute.xlu0 %1267
  %1269 = vrot.lane.b32.xlu0 %v236, 12
  %v1270 = vpop.permute.xlu0 %1269
  %1271 = vrot.lane.b32.xlu0 %v374, 12
  %v1272 = vpop.permute.xlu0 %1271
  %1273 = vrot.lane.b32.xlu0 %v239, 12
  %v1274 = vpop.permute.xlu0 %1273
  %1275 = vrot.lane.b32.xlu0 %v375, 12
  %v1276 = vpop.permute.xlu0 %1275
  %1277 = vrot.lane.b32.xlu0 %v242, 12
  %v1278 = vpop.permute.xlu0 %1277
  %1279 = vrot.lane.b32.xlu0 %v376, 12
  %v1280 = vpop.permute.xlu0 %1279
  %1281 = vrot.lane.b32.xlu0 %v245, 12
  %v1282 = vpop.permute.xlu0 %1281
  %1283 = vrot.lane.b32.xlu0 %v377, 12
  %v1284 = vpop.permute.xlu0 %1283
  %1285 = vrot.lane.b32.xlu0 %v248, 12
  %v1286 = vpop.permute.xlu0 %1285
  %v1353 = vrot.slane %v361, 1
  %v1354 = vrot.slane %v200, 1
  %v1355 = vsel %vm473, %v1353, %v1354
  %v1356 = vrot.slane %v394, 1
  %v1357 = vsel %vm473, %v1354, %v1356
  %v1358 = vrot.slane %v377, 1
  %v1359 = vrot.slane %v248, 1
  %v1360 = vsel %vm473, %v1358, %v1359
  %v1361 = vrot.slane %v410, 1
  %v1362 = vsel %vm473, %v1359, %v1361
  %1363 = vrot.lane.b32.xlu0 %v481, 16
  %v1364 = vpop.permute.xlu0 %1363
  %1365 = vrot.lane.b32.xlu0 %v483, 16
  %v1366 = vpop.permute.xlu0 %1365
  %1367 = vrot.lane.b32.xlu0 %v486, 16
  %v1368 = vpop.permute.xlu0 %1367
  %1369 = vrot.lane.b32.xlu0 %v488, 16
  %v1370 = vpop.permute.xlu0 %1369
  %1371 = vrot.lane.b32.xlu0 %v491, 16
  %v1372 = vpop.permute.xlu0 %1371
  %1373 = vrot.lane.b32.xlu0 %v493, 16
  %v1374 = vpop.permute.xlu0 %1373
  %1375 = vrot.lane.b32.xlu0 %v496, 16
  %v1376 = vpop.permute.xlu0 %1375
  %1377 = vrot.lane.b32.xlu0 %v498, 16
  %v1378 = vpop.permute.xlu0 %1377
  %1379 = vrot.lane.b32.xlu0 %v501, 16
  %v1380 = vpop.permute.xlu0 %1379
  %1381 = vrot.lane.b32.xlu0 %v503, 16
  %v1382 = vpop.permute.xlu0 %1381
  %1383 = vrot.lane.b32.xlu0 %v506, 16
  %v1384 = vpop.permute.xlu0 %1383
  %1385 = vrot.lane.b32.xlu0 %v508, 16
  %v1386 = vpop.permute.xlu0 %1385
  %1387 = vrot.lane.b32.xlu0 %v511, 16
  %v1388 = vpop.permute.xlu0 %1387
  %1389 = vrot.lane.b32.xlu0 %v513, 16
  %v1390 = vpop.permute.xlu0 %1389
  %1391 = vrot.lane.b32.xlu0 %v516, 16
  %v1392 = vpop.permute.xlu0 %1391
  %1393 = vrot.lane.b32.xlu0 %v518, 16
  %v1394 = vpop.permute.xlu0 %1393
  %1395 = vrot.lane.b32.xlu0 %v521, 16
  %v1396 = vpop.permute.xlu0 %1395
  %1397 = vrot.lane.b32.xlu0 %v523, 16
  %v1398 = vpop.permute.xlu0 %1397
  %1399 = vrot.lane.b32.xlu0 %v526, 16
  %v1400 = vpop.permute.xlu0 %1399
  %1401 = vrot.lane.b32.xlu0 %v528, 16
  %v1402 = vpop.permute.xlu0 %1401
  %1403 = vrot.lane.b32.xlu0 %v531, 16
  %v1404 = vpop.permute.xlu0 %1403
  %1405 = vrot.lane.b32.xlu0 %v533, 16
  %v1406 = vpop.permute.xlu0 %1405
  %1407 = vrot.lane.b32.xlu0 %v536, 16
  %v1408 = vpop.permute.xlu0 %1407
  %1409 = vrot.lane.b32.xlu0 %v538, 16
  %v1410 = vpop.permute.xlu0 %1409
  %1411 = vrot.lane.b32.xlu0 %v541, 16
  %v1412 = vpop.permute.xlu0 %1411
  %1413 = vrot.lane.b32.xlu0 %v543, 16
  %v1414 = vpop.permute.xlu0 %1413
  %1415 = vrot.lane.b32.xlu0 %v546, 16
  %v1416 = vpop.permute.xlu0 %1415
  %1417 = vrot.lane.b32.xlu0 %v548, 16
  %v1418 = vpop.permute.xlu0 %1417
  %1419 = vrot.lane.b32.xlu0 %v551, 16
  %v1420 = vpop.permute.xlu0 %1419
  %1421 = vrot.lane.b32.xlu0 %v553, 16
  %v1422 = vpop.permute.xlu0 %1421
  %1423 = vrot.lane.b32.xlu0 %v1355, 16
  %v1424 = vpop.permute.xlu0 %1423
  %1425 = vrot.lane.b32.xlu0 %v1357, 16
  %v1426 = vpop.permute.xlu0 %1425
  %1427 = vrot.lane.b32.xlu0 %v556, 16
  %v1428 = vpop.permute.xlu0 %1427
  %1429 = vrot.lane.b32.xlu0 %v558, 16
  %v1430 = vpop.permute.xlu0 %1429
  %1431 = vrot.lane.b32.xlu0 %v561, 16
  %v1432 = vpop.permute.xlu0 %1431
  %1433 = vrot.lane.b32.xlu0 %v563, 16
  %v1434 = vpop.permute.xlu0 %1433
  %1435 = vrot.lane.b32.xlu0 %v566, 16
  %v1436 = vpop.permute.xlu0 %1435
  %1437 = vrot.lane.b32.xlu0 %v568, 16
  %v1438 = vpop.permute.xlu0 %1437
  %1439 = vrot.lane.b32.xlu0 %v571, 16
  %v1440 = vpop.permute.xlu0 %1439
  %1441 = vrot.lane.b32.xlu0 %v573, 16
  %v1442 = vpop.permute.xlu0 %1441
  %1443 = vrot.lane.b32.xlu0 %v576, 16
  %v1444 = vpop.permute.xlu0 %1443
  %1445 = vrot.lane.b32.xlu0 %v578, 16
  %v1446 = vpop.permute.xlu0 %1445
  %1447 = vrot.lane.b32.xlu0 %v581, 16
  %v1448 = vpop.permute.xlu0 %1447
  %1449 = vrot.lane.b32.xlu0 %v583, 16
  %v1450 = vpop.permute.xlu0 %1449
  %1451 = vrot.lane.b32.xlu0 %v586, 16
  %v1452 = vpop.permute.xlu0 %1451
  %1453 = vrot.lane.b32.xlu0 %v588, 16
  %v1454 = vpop.permute.xlu0 %1453
  %1455 = vrot.lane.b32.xlu0 %v591, 16
  %v1456 = vpop.permute.xlu0 %1455
  %1457 = vrot.lane.b32.xlu0 %v593, 16
  %v1458 = vpop.permute.xlu0 %1457
  %1459 = vrot.lane.b32.xlu0 %v596, 16
  %v1460 = vpop.permute.xlu0 %1459
  %1461 = vrot.lane.b32.xlu0 %v598, 16
  %v1462 = vpop.permute.xlu0 %1461
  %1463 = vrot.lane.b32.xlu0 %v601, 16
  %v1464 = vpop.permute.xlu0 %1463
  %1465 = vrot.lane.b32.xlu0 %v603, 16
  %v1466 = vpop.permute.xlu0 %1465
  %1467 = vrot.lane.b32.xlu0 %v606, 16
  %v1468 = vpop.permute.xlu0 %1467
  %1469 = vrot.lane.b32.xlu0 %v608, 16
  %v1470 = vpop.permute.xlu0 %1469
  %1471 = vrot.lane.b32.xlu0 %v611, 16
  %v1472 = vpop.permute.xlu0 %1471
  %1473 = vrot.lane.b32.xlu0 %v613, 16
  %v1474 = vpop.permute.xlu0 %1473
  %1475 = vrot.lane.b32.xlu0 %v616, 16
  %v1476 = vpop.permute.xlu0 %1475
  %1477 = vrot.lane.b32.xlu0 %v618, 16
  %v1478 = vpop.permute.xlu0 %1477
  %1479 = vrot.lane.b32.xlu0 %v621, 16
  %v1480 = vpop.permute.xlu0 %1479
  %1481 = vrot.lane.b32.xlu0 %v623, 16
  %v1482 = vpop.permute.xlu0 %1481
  %1483 = vrot.lane.b32.xlu0 %v626, 16
  %v1484 = vpop.permute.xlu0 %1483
  %1485 = vrot.lane.b32.xlu0 %v628, 16
  %v1486 = vpop.permute.xlu0 %1485
  %1487 = vrot.lane.b32.xlu0 %v1360, 16
  %v1488 = vpop.permute.xlu0 %1487
  %1489 = vrot.lane.b32.xlu0 %v1362, 16
  %v1490 = vpop.permute.xlu0 %1489
  %v1555 = vrot.slane %v361, 2
  %v1556 = vrot.slane %v200, 2
  %v1557 = vsel %vm815, %v1555, %v1556
  %v1558 = vrot.slane %v394, 2
  %v1559 = vsel %vm815, %v1556, %v1558
  %v1560 = vrot.slane %v377, 2
  %v1561 = vrot.slane %v248, 2
  %v1562 = vsel %vm815, %v1560, %v1561
  %v1563 = vrot.slane %v410, 2
  %v1564 = vsel %vm815, %v1561, %v1563
  %1565 = vrot.lane.b32.xlu0 %v823, 20
  %v1566 = vpop.permute.xlu0 %1565
  %1567 = vrot.lane.b32.xlu0 %v825, 20
  %v1568 = vpop.permute.xlu0 %1567
  %1569 = vrot.lane.b32.xlu0 %v828, 20
  %v1570 = vpop.permute.xlu0 %1569
  %1571 = vrot.lane.b32.xlu0 %v830, 20
  %v1572 = vpop.permute.xlu0 %1571
  %1573 = vrot.lane.b32.xlu0 %v833, 20
  %v1574 = vpop.permute.xlu0 %1573
  %1575 = vrot.lane.b32.xlu0 %v835, 20
  %v1576 = vpop.permute.xlu0 %1575
  %1577 = vrot.lane.b32.xlu0 %v838, 20
  %v1578 = vpop.permute.xlu0 %1577
  %1579 = vrot.lane.b32.xlu0 %v840, 20
  %v1580 = vpop.permute.xlu0 %1579
  %1581 = vrot.lane.b32.xlu0 %v843, 20
  %v1582 = vpop.permute.xlu0 %1581
  %1583 = vrot.lane.b32.xlu0 %v845, 20
  %v1584 = vpop.permute.xlu0 %1583
  %1585 = vrot.lane.b32.xlu0 %v848, 20
  %v1586 = vpop.permute.xlu0 %1585
  %1587 = vrot.lane.b32.xlu0 %v850, 20
  %v1588 = vpop.permute.xlu0 %1587
  %1589 = vrot.lane.b32.xlu0 %v853, 20
  %v1590 = vpop.permute.xlu0 %1589
  %1591 = vrot.lane.b32.xlu0 %v855, 20
  %v1592 = vpop.permute.xlu0 %1591
  %1593 = vrot.lane.b32.xlu0 %v858, 20
  %v1594 = vpop.permute.xlu0 %1593
  %1595 = vrot.lane.b32.xlu0 %v860, 20
  %v1596 = vpop.permute.xlu0 %1595
  %1597 = vrot.lane.b32.xlu0 %v863, 20
  %v1598 = vpop.permute.xlu0 %1597
  %1599 = vrot.lane.b32.xlu0 %v865, 20
  %v1600 = vpop.permute.xlu0 %1599
  %1601 = vrot.lane.b32.xlu0 %v868, 20
  %v1602 = vpop.permute.xlu0 %1601
  %1603 = vrot.lane.b32.xlu0 %v870, 20
  %v1604 = vpop.permute.xlu0 %1603
  %1605 = vrot.lane.b32.xlu0 %v873, 20
  %v1606 = vpop.permute.xlu0 %1605
  %1607 = vrot.lane.b32.xlu0 %v875, 20
  %v1608 = vpop.permute.xlu0 %1607
  %1609 = vrot.lane.b32.xlu0 %v878, 20
  %v1610 = vpop.permute.xlu0 %1609
  %1611 = vrot.lane.b32.xlu0 %v880, 20
  %v1612 = vpop.permute.xlu0 %1611
  %1613 = vrot.lane.b32.xlu0 %v883, 20
  %v1614 = vpop.permute.xlu0 %1613
  %1615 = vrot.lane.b32.xlu0 %v885, 20
  %v1616 = vpop.permute.xlu0 %1615
  %1617 = vrot.lane.b32.xlu0 %v888, 20
  %v1618 = vpop.permute.xlu0 %1617
  %1619 = vrot.lane.b32.xlu0 %v890, 20
  %v1620 = vpop.permute.xlu0 %1619
  %1621 = vrot.lane.b32.xlu0 %v893, 20
  %v1622 = vpop.permute.xlu0 %1621
  %1623 = vrot.lane.b32.xlu0 %v895, 20
  %v1624 = vpop.permute.xlu0 %1623
  %1625 = vrot.lane.b32.xlu0 %v1557, 20
  %v1626 = vpop.permute.xlu0 %1625
  %1627 = vrot.lane.b32.xlu0 %v1559, 20
  %v1628 = vpop.permute.xlu0 %1627
  %1629 = vrot.lane.b32.xlu0 %v898, 20
  %v1630 = vpop.permute.xlu0 %1629
  %1631 = vrot.lane.b32.xlu0 %v900, 20
  %v1632 = vpop.permute.xlu0 %1631
  %1633 = vrot.lane.b32.xlu0 %v903, 20
  %v1634 = vpop.permute.xlu0 %1633
  %1635 = vrot.lane.b32.xlu0 %v905, 20
  %v1636 = vpop.permute.xlu0 %1635
  %1637 = vrot.lane.b32.xlu0 %v908, 20
  %v1638 = vpop.permute.xlu0 %1637
  %1639 = vrot.lane.b32.xlu0 %v910, 20
  %v1640 = vpop.permute.xlu0 %1639
  %1641 = vrot.lane.b32.xlu0 %v913, 20
  %v1642 = vpop.permute.xlu0 %1641
  %1643 = vrot.lane.b32.xlu0 %v915, 20
  %v1644 = vpop.permute.xlu0 %1643
  %1645 = vrot.lane.b32.xlu0 %v918, 20
  %v1646 = vpop.permute.xlu0 %1645
  %1647 = vrot.lane.b32.xlu0 %v920, 20
  %v1648 = vpop.permute.xlu0 %1647
  %1649 = vrot.lane.b32.xlu0 %v923, 20
  %v1650 = vpop.permute.xlu0 %1649
  %1651 = vrot.lane.b32.xlu0 %v925, 20
  %v1652 = vpop.permute.xlu0 %1651
  %1653 = vrot.lane.b32.xlu0 %v928, 20
  %v1654 = vpop.permute.xlu0 %1653
  %1655 = vrot.lane.b32.xlu0 %v930, 20
  %v1656 = vpop.permute.xlu0 %1655
  %1657 = vrot.lane.b32.xlu0 %v933, 20
  %v1658 = vpop.permute.xlu0 %1657
  %1659 = vrot.lane.b32.xlu0 %v935, 20
  %v1660 = vpop.permute.xlu0 %1659
  %1661 = vrot.lane.b32.xlu0 %v938, 20
  %v1662 = vpop.permute.xlu0 %1661
  %1663 = vrot.lane.b32.xlu0 %v940, 20
  %v1664 = vpop.permute.xlu0 %1663
  %1665 = vrot.lane.b32.xlu0 %v943, 20
  %v1666 = vpop.permute.xlu0 %1665
  %1667 = vrot.lane.b32.xlu0 %v945, 20
  %v1668 = vpop.permute.xlu0 %1667
  %1669 = vrot.lane.b32.xlu0 %v948, 20
  %v1670 = vpop.permute.xlu0 %1669
  %1671 = vrot.lane.b32.xlu0 %v950, 20
  %v1672 = vpop.permute.xlu0 %1671
  %1673 = vrot.lane.b32.xlu0 %v953, 20
  %v1674 = vpop.permute.xlu0 %1673
  %1675 = vrot.lane.b32.xlu0 %v955, 20
  %v1676 = vpop.permute.xlu0 %1675
  %1677 = vrot.lane.b32.xlu0 %v958, 20
  %v1678 = vpop.permute.xlu0 %1677
  %1679 = vrot.lane.b32.xlu0 %v960, 20
  %v1680 = vpop.permute.xlu0 %1679
  %1681 = vrot.lane.b32.xlu0 %v963, 20
  %v1682 = vpop.permute.xlu0 %1681
  %1683 = vrot.lane.b32.xlu0 %v965, 20
  %v1684 = vpop.permute.xlu0 %1683
  %1685 = vrot.lane.b32.xlu0 %v968, 20
  %v1686 = vpop.permute.xlu0 %1685
  %1687 = vrot.lane.b32.xlu0 %v970, 20
  %v1688 = vpop.permute.xlu0 %1687
  %1689 = vrot.lane.b32.xlu0 %v1562, 20
  %v1690 = vpop.permute.xlu0 %1689
  %1691 = vrot.lane.b32.xlu0 %v1564, 20
  %v1692 = vpop.permute.xlu0 %1691
  %1757 = vrot.lane.b32.xlu0 %v347, 24
  %v1758 = vpop.permute.xlu0 %1757
  %1759 = vrot.lane.b32.xlu0 %v158, 24
  %v1760 = vpop.permute.xlu0 %1759
  %1761 = vrot.lane.b32.xlu0 %v348, 24
  %v1762 = vpop.permute.xlu0 %1761
  %1763 = vrot.lane.b32.xlu0 %v161, 24
  %v1764 = vpop.permute.xlu0 %1763
  %1765 = vrot.lane.b32.xlu0 %v349, 24
  %v1766 = vpop.permute.xlu0 %1765
  %1767 = vrot.lane.b32.xlu0 %v164, 24
  %v1768 = vpop.permute.xlu0 %1767
  %1769 = vrot.lane.b32.xlu0 %v350, 24
  %v1770 = vpop.permute.xlu0 %1769
  %1771 = vrot.lane.b32.xlu0 %v167, 24
  %v1772 = vpop.permute.xlu0 %1771
  %1773 = vrot.lane.b32.xlu0 %v351, 24
  %v1774 = vpop.permute.xlu0 %1773
  %1775 = vrot.lane.b32.xlu0 %v170, 24
  %v1776 = vpop.permute.xlu0 %1775
  %1777 = vrot.lane.b32.xlu0 %v352, 24
  %v1778 = vpop.permute.xlu0 %1777
  %1779 = vrot.lane.b32.xlu0 %v173, 24
  %v1780 = vpop.permute.xlu0 %1779
  %1781 = vrot.lane.b32.xlu0 %v353, 24
  %v1782 = vpop.permute.xlu0 %1781
  %1783 = vrot.lane.b32.xlu0 %v176, 24
  %v1784 = vpop.permute.xlu0 %1783
  %1785 = vrot.lane.b32.xlu0 %v354, 24
  %v1786 = vpop.permute.xlu0 %1785
  %1787 = vrot.lane.b32.xlu0 %v179, 24
  %v1788 = vpop.permute.xlu0 %1787
  %1789 = vrot.lane.b32.xlu0 %v355, 24
  %v1790 = vpop.permute.xlu0 %1789
  %1791 = vrot.lane.b32.xlu0 %v182, 24
  %v1792 = vpop.permute.xlu0 %1791
  %1793 = vrot.lane.b32.xlu0 %v356, 24
  %v1794 = vpop.permute.xlu0 %1793
  %1795 = vrot.lane.b32.xlu0 %v185, 24
  %v1796 = vpop.permute.xlu0 %1795
  %1797 = vrot.lane.b32.xlu0 %v357, 24
  %v1798 = vpop.permute.xlu0 %1797
  %1799 = vrot.lane.b32.xlu0 %v188, 24
  %v1800 = vpop.permute.xlu0 %1799
  %1801 = vrot.lane.b32.xlu0 %v358, 24
  %v1802 = vpop.permute.xlu0 %1801
  %1803 = vrot.lane.b32.xlu0 %v191, 24
  %v1804 = vpop.permute.xlu0 %1803
  %1805 = vrot.lane.b32.xlu0 %v359, 24
  %v1806 = vpop.permute.xlu0 %1805
  %1807 = vrot.lane.b32.xlu0 %v194, 24
  %v1808 = vpop.permute.xlu0 %1807
  %1809 = vrot.lane.b32.xlu0 %v360, 24
  %v1810 = vpop.permute.xlu0 %1809
  %1811 = vrot.lane.b32.xlu0 %v197, 24
  %v1812 = vpop.permute.xlu0 %1811
  %1813 = vrot.lane.b32.xlu0 %v361, 24
  %v1814 = vpop.permute.xlu0 %1813
  %1815 = vrot.lane.b32.xlu0 %v200, 24
  %v1816 = vpop.permute.xlu0 %1815
  %1817 = vrot.lane.b32.xlu0 %v345, 24
  %v1818 = vpop.permute.xlu0 %1817
  %1819 = vrot.lane.b32.xlu0 %v152, 24
  %v1820 = vpop.permute.xlu0 %1819
  %1821 = vrot.lane.b32.xlu0 %v363, 24
  %v1822 = vpop.permute.xlu0 %1821
  %1823 = vrot.lane.b32.xlu0 %v206, 24
  %v1824 = vpop.permute.xlu0 %1823
  %1825 = vrot.lane.b32.xlu0 %v364, 24
  %v1826 = vpop.permute.xlu0 %1825
  %1827 = vrot.lane.b32.xlu0 %v209, 24
  %v1828 = vpop.permute.xlu0 %1827
  %1829 = vrot.lane.b32.xlu0 %v365, 24
  %v1830 = vpop.permute.xlu0 %1829
  %1831 = vrot.lane.b32.xlu0 %v212, 24
  %v1832 = vpop.permute.xlu0 %1831
  %1833 = vrot.lane.b32.xlu0 %v366, 24
  %v1834 = vpop.permute.xlu0 %1833
  %1835 = vrot.lane.b32.xlu0 %v215, 24
  %v1836 = vpop.permute.xlu0 %1835
  %1837 = vrot.lane.b32.xlu0 %v367, 24
  %v1838 = vpop.permute.xlu0 %1837
  %1839 = vrot.lane.b32.xlu0 %v218, 24
  %v1840 = vpop.permute.xlu0 %1839
  %1841 = vrot.lane.b32.xlu0 %v368, 24
  %v1842 = vpop.permute.xlu0 %1841
  %1843 = vrot.lane.b32.xlu0 %v221, 24
  %v1844 = vpop.permute.xlu0 %1843
  %1845 = vrot.lane.b32.xlu0 %v369, 24
  %v1846 = vpop.permute.xlu0 %1845
  %1847 = vrot.lane.b32.xlu0 %v224, 24
  %v1848 = vpop.permute.xlu0 %1847
  %1849 = vrot.lane.b32.xlu0 %v370, 24
  %v1850 = vpop.permute.xlu0 %1849
  %1851 = vrot.lane.b32.xlu0 %v227, 24
  %v1852 = vpop.permute.xlu0 %1851
  %1853 = vrot.lane.b32.xlu0 %v371, 24
  %v1854 = vpop.permute.xlu0 %1853
  %1855 = vrot.lane.b32.xlu0 %v230, 24
  %v1856 = vpop.permute.xlu0 %1855
  %1857 = vrot.lane.b32.xlu0 %v372, 24
  %v1858 = vpop.permute.xlu0 %1857
  %1859 = vrot.lane.b32.xlu0 %v233, 24
  %v1860 = vpop.permute.xlu0 %1859
  %1861 = vrot.lane.b32.xlu0 %v373, 24
  %v1862 = vpop.permute.xlu0 %1861
  %1863 = vrot.lane.b32.xlu0 %v236, 24
  %v1864 = vpop.permute.xlu0 %1863
  %1865 = vrot.lane.b32.xlu0 %v374, 24
  %v1866 = vpop.permute.xlu0 %1865
  %1867 = vrot.lane.b32.xlu0 %v239, 24
  %v1868 = vpop.permute.xlu0 %1867
  %1869 = vrot.lane.b32.xlu0 %v375, 24
  %v1870 = vpop.permute.xlu0 %1869
  %1871 = vrot.lane.b32.xlu0 %v242, 24
  %v1872 = vpop.permute.xlu0 %1871
  %1873 = vrot.lane.b32.xlu0 %v376, 24
  %v1874 = vpop.permute.xlu0 %1873
  %1875 = vrot.lane.b32.xlu0 %v245, 24
  %v1876 = vpop.permute.xlu0 %1875
  %1877 = vrot.lane.b32.xlu0 %v377, 24
  %v1878 = vpop.permute.xlu0 %1877
  %1879 = vrot.lane.b32.xlu0 %v248, 24
  %v1880 = vpop.permute.xlu0 %1879
  %1943 = vrot.lane.b32.xlu0 %v486, 28
  %v1944 = vpop.permute.xlu0 %1943
  %1945 = vrot.lane.b32.xlu0 %v488, 28
  %v1946 = vpop.permute.xlu0 %1945
  %1947 = vrot.lane.b32.xlu0 %v491, 28
  %v1948 = vpop.permute.xlu0 %1947
  %1949 = vrot.lane.b32.xlu0 %v493, 28
  %v1950 = vpop.permute.xlu0 %1949
  %1951 = vrot.lane.b32.xlu0 %v496, 28
  %v1952 = vpop.permute.xlu0 %1951
  %1953 = vrot.lane.b32.xlu0 %v498, 28
  %v1954 = vpop.permute.xlu0 %1953
  %1955 = vrot.lane.b32.xlu0 %v501, 28
  %v1956 = vpop.permute.xlu0 %1955
  %1957 = vrot.lane.b32.xlu0 %v503, 28
  %v1958 = vpop.permute.xlu0 %1957
  %1959 = vrot.lane.b32.xlu0 %v506, 28
  %v1960 = vpop.permute.xlu0 %1959
  %1961 = vrot.lane.b32.xlu0 %v508, 28
  %v1962 = vpop.permute.xlu0 %1961
  %1963 = vrot.lane.b32.xlu0 %v511, 28
  %v1964 = vpop.permute.xlu0 %1963
  %1965 = vrot.lane.b32.xlu0 %v513, 28
  %v1966 = vpop.permute.xlu0 %1965
  %1967 = vrot.lane.b32.xlu0 %v516, 28
  %v1968 = vpop.permute.xlu0 %1967
  %1969 = vrot.lane.b32.xlu0 %v518, 28
  %v1970 = vpop.permute.xlu0 %1969
  %1971 = vrot.lane.b32.xlu0 %v521, 28
  %v1972 = vpop.permute.xlu0 %1971
  %1973 = vrot.lane.b32.xlu0 %v523, 28
  %v1974 = vpop.permute.xlu0 %1973
  %1975 = vrot.lane.b32.xlu0 %v526, 28
  %v1976 = vpop.permute.xlu0 %1975
  %1977 = vrot.lane.b32.xlu0 %v528, 28
  %v1978 = vpop.permute.xlu0 %1977
  %1979 = vrot.lane.b32.xlu0 %v531, 28
  %v1980 = vpop.permute.xlu0 %1979
  %1981 = vrot.lane.b32.xlu0 %v533, 28
  %v1982 = vpop.permute.xlu0 %1981
  %1983 = vrot.lane.b32.xlu0 %v536, 28
  %v1984 = vpop.permute.xlu0 %1983
  %1985 = vrot.lane.b32.xlu0 %v538, 28
  %v1986 = vpop.permute.xlu0 %1985
  %1987 = vrot.lane.b32.xlu0 %v541, 28
  %v1988 = vpop.permute.xlu0 %1987
  %1989 = vrot.lane.b32.xlu0 %v543, 28
  %v1990 = vpop.permute.xlu0 %1989
  %1991 = vrot.lane.b32.xlu0 %v546, 28
  %v1992 = vpop.permute.xlu0 %1991
  %1993 = vrot.lane.b32.xlu0 %v548, 28
  %v1994 = vpop.permute.xlu0 %1993
  %1995 = vrot.lane.b32.xlu0 %v551, 28
  %v1996 = vpop.permute.xlu0 %1995
  %1997 = vrot.lane.b32.xlu0 %v553, 28
  %v1998 = vpop.permute.xlu0 %1997
  %1999 = vrot.lane.b32.xlu0 %v1355, 28
  %v2000 = vpop.permute.xlu0 %1999
  %2001 = vrot.lane.b32.xlu0 %v1357, 28
  %v2002 = vpop.permute.xlu0 %2001
  %2003 = vrot.lane.b32.xlu0 %v476, 28
  %v2004 = vpop.permute.xlu0 %2003
  %2005 = vrot.lane.b32.xlu0 %v478, 28
  %v2006 = vpop.permute.xlu0 %2005
  %2007 = vrot.lane.b32.xlu0 %v561, 28
  %v2008 = vpop.permute.xlu0 %2007
  %2009 = vrot.lane.b32.xlu0 %v563, 28
  %v2010 = vpop.permute.xlu0 %2009
  %2011 = vrot.lane.b32.xlu0 %v566, 28
  %v2012 = vpop.permute.xlu0 %2011
  %2013 = vrot.lane.b32.xlu0 %v568, 28
  %v2014 = vpop.permute.xlu0 %2013
  %2015 = vrot.lane.b32.xlu0 %v571, 28
  %v2016 = vpop.permute.xlu0 %2015
  %2017 = vrot.lane.b32.xlu0 %v573, 28
  %v2018 = vpop.permute.xlu0 %2017
  %2019 = vrot.lane.b32.xlu0 %v576, 28
  %v2020 = vpop.permute.xlu0 %2019
  %2021 = vrot.lane.b32.xlu0 %v578, 28
  %v2022 = vpop.permute.xlu0 %2021
  %2023 = vrot.lane.b32.xlu0 %v581, 28
  %v2024 = vpop.permute.xlu0 %2023
  %2025 = vrot.lane.b32.xlu0 %v583, 28
  %v2026 = vpop.permute.xlu0 %2025
  %2027 = vrot.lane.b32.xlu0 %v586, 28
  %v2028 = vpop.permute.xlu0 %2027
  %2029 = vrot.lane.b32.xlu0 %v588, 28
  %v2030 = vpop.permute.xlu0 %2029
  %2031 = vrot.lane.b32.xlu0 %v591, 28
  %v2032 = vpop.permute.xlu0 %2031
  %2033 = vrot.lane.b32.xlu0 %v593, 28
  %v2034 = vpop.permute.xlu0 %2033
  %2035 = vrot.lane.b32.xlu0 %v596, 28
  %v2036 = vpop.permute.xlu0 %2035
  %2037 = vrot.lane.b32.xlu0 %v598, 28
  %v2038 = vpop.permute.xlu0 %2037
  %2039 = vrot.lane.b32.xlu0 %v601, 28
  %v2040 = vpop.permute.xlu0 %2039
  %2041 = vrot.lane.b32.xlu0 %v603, 28
  %v2042 = vpop.permute.xlu0 %2041
  %2043 = vrot.lane.b32.xlu0 %v606, 28
  %v2044 = vpop.permute.xlu0 %2043
  %2045 = vrot.lane.b32.xlu0 %v608, 28
  %v2046 = vpop.permute.xlu0 %2045
  %2047 = vrot.lane.b32.xlu0 %v611, 28
  %v2048 = vpop.permute.xlu0 %2047
  %2049 = vrot.lane.b32.xlu0 %v613, 28
  %v2050 = vpop.permute.xlu0 %2049
  %2051 = vrot.lane.b32.xlu0 %v616, 28
  %v2052 = vpop.permute.xlu0 %2051
  %2053 = vrot.lane.b32.xlu0 %v618, 28
  %v2054 = vpop.permute.xlu0 %2053
  %2055 = vrot.lane.b32.xlu0 %v621, 28
  %v2056 = vpop.permute.xlu0 %2055
  %2057 = vrot.lane.b32.xlu0 %v623, 28
  %v2058 = vpop.permute.xlu0 %2057
  %2059 = vrot.lane.b32.xlu0 %v626, 28
  %v2060 = vpop.permute.xlu0 %2059
  %2061 = vrot.lane.b32.xlu0 %v628, 28
  %v2062 = vpop.permute.xlu0 %2061
  %2063 = vrot.lane.b32.xlu0 %v1360, 28
  %v2064 = vpop.permute.xlu0 %2063
  %2065 = vrot.lane.b32.xlu0 %v1362, 28
  %v2066 = vpop.permute.xlu0 %2065
  %2129 = vrot.lane.b32.xlu0 %v828, 32
  %v2130 = vpop.permute.xlu0 %2129
  %2131 = vrot.lane.b32.xlu0 %v830, 32
  %v2132 = vpop.permute.xlu0 %2131
  %2133 = vrot.lane.b32.xlu0 %v833, 32
  %v2134 = vpop.permute.xlu0 %2133
  %2135 = vrot.lane.b32.xlu0 %v835, 32
  %v2136 = vpop.permute.xlu0 %2135
  %2137 = vrot.lane.b32.xlu0 %v838, 32
  %v2138 = vpop.permute.xlu0 %2137
  %2139 = vrot.lane.b32.xlu0 %v840, 32
  %v2140 = vpop.permute.xlu0 %2139
  %2141 = vrot.lane.b32.xlu0 %v843, 32
  %v2142 = vpop.permute.xlu0 %2141
  %2143 = vrot.lane.b32.xlu0 %v845, 32
  %v2144 = vpop.permute.xlu0 %2143
  %2145 = vrot.lane.b32.xlu0 %v848, 32
  %v2146 = vpop.permute.xlu0 %2145
  %2147 = vrot.lane.b32.xlu0 %v850, 32
  %v2148 = vpop.permute.xlu0 %2147
  %2149 = vrot.lane.b32.xlu0 %v853, 32
  %v2150 = vpop.permute.xlu0 %2149
  %2151 = vrot.lane.b32.xlu0 %v855, 32
  %v2152 = vpop.permute.xlu0 %2151
  %2153 = vrot.lane.b32.xlu0 %v858, 32
  %v2154 = vpop.permute.xlu0 %2153
  %2155 = vrot.lane.b32.xlu0 %v860, 32
  %v2156 = vpop.permute.xlu0 %2155
  %2157 = vrot.lane.b32.xlu0 %v863, 32
  %v2158 = vpop.permute.xlu0 %2157
  %2159 = vrot.lane.b32.xlu0 %v865, 32
  %v2160 = vpop.permute.xlu0 %2159
  %2161 = vrot.lane.b32.xlu0 %v868, 32
  %v2162 = vpop.permute.xlu0 %2161
  %2163 = vrot.lane.b32.xlu0 %v870, 32
  %v2164 = vpop.permute.xlu0 %2163
  %2165 = vrot.lane.b32.xlu0 %v873, 32
  %v2166 = vpop.permute.xlu0 %2165
  %2167 = vrot.lane.b32.xlu0 %v875, 32
  %v2168 = vpop.permute.xlu0 %2167
  %2169 = vrot.lane.b32.xlu0 %v878, 32
  %v2170 = vpop.permute.xlu0 %2169
  %2171 = vrot.lane.b32.xlu0 %v880, 32
  %v2172 = vpop.permute.xlu0 %2171
  %2173 = vrot.lane.b32.xlu0 %v883, 32
  %v2174 = vpop.permute.xlu0 %2173
  %2175 = vrot.lane.b32.xlu0 %v885, 32
  %v2176 = vpop.permute.xlu0 %2175
  %2177 = vrot.lane.b32.xlu0 %v888, 32
  %v2178 = vpop.permute.xlu0 %2177
  %2179 = vrot.lane.b32.xlu0 %v890, 32
  %v2180 = vpop.permute.xlu0 %2179
  %2181 = vrot.lane.b32.xlu0 %v893, 32
  %v2182 = vpop.permute.xlu0 %2181
  %2183 = vrot.lane.b32.xlu0 %v895, 32
  %v2184 = vpop.permute.xlu0 %2183
  %2185 = vrot.lane.b32.xlu0 %v1557, 32
  %v2186 = vpop.permute.xlu0 %2185
  %2187 = vrot.lane.b32.xlu0 %v1559, 32
  %v2188 = vpop.permute.xlu0 %2187
  %2189 = vrot.lane.b32.xlu0 %v818, 32
  %v2190 = vpop.permute.xlu0 %2189
  %2191 = vrot.lane.b32.xlu0 %v820, 32
  %v2192 = vpop.permute.xlu0 %2191
  %2193 = vrot.lane.b32.xlu0 %v903, 32
  %v2194 = vpop.permute.xlu0 %2193
  %2195 = vrot.lane.b32.xlu0 %v905, 32
  %v2196 = vpop.permute.xlu0 %2195
  %2197 = vrot.lane.b32.xlu0 %v908, 32
  %v2198 = vpop.permute.xlu0 %2197
  %2199 = vrot.lane.b32.xlu0 %v910, 32
  %v2200 = vpop.permute.xlu0 %2199
  %2201 = vrot.lane.b32.xlu0 %v913, 32
  %v2202 = vpop.permute.xlu0 %2201
  %2203 = vrot.lane.b32.xlu0 %v915, 32
  %v2204 = vpop.permute.xlu0 %2203
  %2205 = vrot.lane.b32.xlu0 %v918, 32
  %v2206 = vpop.permute.xlu0 %2205
  %2207 = vrot.lane.b32.xlu0 %v920, 32
  %v2208 = vpop.permute.xlu0 %2207
  %2209 = vrot.lane.b32.xlu0 %v923, 32
  %v2210 = vpop.permute.xlu0 %2209
  %2211 = vrot.lane.b32.xlu0 %v925, 32
  %v2212 = vpop.permute.xlu0 %2211
  %2213 = vrot.lane.b32.xlu0 %v928, 32
  %v2214 = vpop.permute.xlu0 %2213
  %2215 = vrot.lane.b32.xlu0 %v930, 32
  %v2216 = vpop.permute.xlu0 %2215
  %2217 = vrot.lane.b32.xlu0 %v933, 32
  %v2218 = vpop.permute.xlu0 %2217
  %2219 = vrot.lane.b32.xlu0 %v935, 32
  %v2220 = vpop.permute.xlu0 %2219
  %2221 = vrot.lane.b32.xlu0 %v938, 32
  %v2222 = vpop.permute.xlu0 %2221
  %2223 = vrot.lane.b32.xlu0 %v940, 32
  %v2224 = vpop.permute.xlu0 %2223
  %2225 = vrot.lane.b32.xlu0 %v943, 32
  %v2226 = vpop.permute.xlu0 %2225
  %2227 = vrot.lane.b32.xlu0 %v945, 32
  %v2228 = vpop.permute.xlu0 %2227
  %2229 = vrot.lane.b32.xlu0 %v948, 32
  %v2230 = vpop.permute.xlu0 %2229
  %2231 = vrot.lane.b32.xlu0 %v950, 32
  %v2232 = vpop.permute.xlu0 %2231
  %2233 = vrot.lane.b32.xlu0 %v953, 32
  %v2234 = vpop.permute.xlu0 %2233
  %2235 = vrot.lane.b32.xlu0 %v955, 32
  %v2236 = vpop.permute.xlu0 %2235
  %2237 = vrot.lane.b32.xlu0 %v958, 32
  %v2238 = vpop.permute.xlu0 %2237
  %2239 = vrot.lane.b32.xlu0 %v960, 32
  %v2240 = vpop.permute.xlu0 %2239
  %2241 = vrot.lane.b32.xlu0 %v963, 32
  %v2242 = vpop.permute.xlu0 %2241
  %2243 = vrot.lane.b32.xlu0 %v965, 32
  %v2244 = vpop.permute.xlu0 %2243
  %2245 = vrot.lane.b32.xlu0 %v968, 32
  %v2246 = vpop.permute.xlu0 %2245
  %2247 = vrot.lane.b32.xlu0 %v970, 32
  %v2248 = vpop.permute.xlu0 %2247
  %2249 = vrot.lane.b32.xlu0 %v1562, 32
  %v2250 = vpop.permute.xlu0 %2249
  %2251 = vrot.lane.b32.xlu0 %v1564, 32
  %v2252 = vpop.permute.xlu0 %2251
  %vm2315 = vcmask 31744
  %v2316 = vsel %vm2315, %v345, %v630
  %v2317 = vsel %vm2315, %v152, %v632
  %v2318 = vsel %vm2315, %v346, %v634
  %v2319 = vsel %vm2315, %v155, %v636
  %v2320 = vsel %vm2315, %v347, %v638
  %v2321 = vsel %vm2315, %v158, %v640
  %v2322 = vsel %vm2315, %v348, %v642
  %v2323 = vsel %vm2315, %v161, %v644
  %v2324 = vsel %vm2315, %v349, %v646
  %v2325 = vsel %vm2315, %v164, %v648
  %v2326 = vsel %vm2315, %v350, %v650
  %v2327 = vsel %vm2315, %v167, %v652
  %v2328 = vsel %vm2315, %v351, %v654
  %v2329 = vsel %vm2315, %v170, %v656
  %v2330 = vsel %vm2315, %v352, %v658
  %v2331 = vsel %vm2315, %v173, %v660
  %v2332 = vsel %vm2315, %v353, %v662
  %v2333 = vsel %vm2315, %v176, %v664
  %v2334 = vsel %vm2315, %v354, %v666
  %v2335 = vsel %vm2315, %v179, %v668
  %v2336 = vsel %vm2315, %v355, %v670
  %v2337 = vsel %vm2315, %v182, %v672
  %v2338 = vsel %vm2315, %v356, %v674
  %v2339 = vsel %vm2315, %v185, %v676
  %v2340 = vsel %vm2315, %v357, %v678
  %v2341 = vsel %vm2315, %v188, %v680
  %v2342 = vsel %vm2315, %v358, %v682
  %v2343 = vsel %vm2315, %v191, %v684
  %v2344 = vsel %vm2315, %v359, %v686
  %v2345 = vsel %vm2315, %v194, %v688
  %v2346 = vsel %vm2315, %v360, %v690
  %v2347 = vsel %vm2315, %v197, %v692
  %v2348 = vsel %vm2315, %v362, %v694
  %v2349 = vsel %vm2315, %v203, %v696
  %v2350 = vsel %vm2315, %v363, %v698
  %v2351 = vsel %vm2315, %v206, %v700
  %v2352 = vsel %vm2315, %v364, %v702
  %v2353 = vsel %vm2315, %v209, %v704
  %v2354 = vsel %vm2315, %v365, %v706
  %v2355 = vsel %vm2315, %v212, %v708
  %v2356 = vsel %vm2315, %v366, %v710
  %v2357 = vsel %vm2315, %v215, %v712
  %v2358 = vsel %vm2315, %v367, %v714
  %v2359 = vsel %vm2315, %v218, %v716
  %v2360 = vsel %vm2315, %v368, %v718
  %v2361 = vsel %vm2315, %v221, %v720
  %v2362 = vsel %vm2315, %v369, %v722
  %v2363 = vsel %vm2315, %v224, %v724
  %v2364 = vsel %vm2315, %v370, %v726
  %v2365 = vsel %vm2315, %v227, %v728
  %v2366 = vsel %vm2315, %v371, %v730
  %v2367 = vsel %vm2315, %v230, %v732
  %v2368 = vsel %vm2315, %v372, %v734
  %v2369 = vsel %vm2315, %v233, %v736
  %v2370 = vsel %vm2315, %v373, %v738
  %v2371 = vsel %vm2315, %v236, %v740
  %v2372 = vsel %vm2315, %v374, %v742
  %v2373 = vsel %vm2315, %v239, %v744
  %v2374 = vsel %vm2315, %v375, %v746
  %v2375 = vsel %vm2315, %v242, %v748
  %v2376 = vsel %vm2315, %v376, %v750
  %v2377 = vsel %vm2315, %v245, %v752
  %vm2378 = vcmask 64512
  %v2379 = vsel %vm2378, %v2316, %v972
  %v2380 = vsel %vm2378, %v2317, %v974
  %v2381 = vsel %vm2378, %v2318, %v976
  %v2382 = vsel %vm2378, %v2319, %v978
  %v2383 = vsel %vm2378, %v2320, %v980
  %v2384 = vsel %vm2378, %v2321, %v982
  %v2385 = vsel %vm2378, %v2322, %v984
  %v2386 = vsel %vm2378, %v2323, %v986
  %v2387 = vsel %vm2378, %v2324, %v988
  %v2388 = vsel %vm2378, %v2325, %v990
  %v2389 = vsel %vm2378, %v2326, %v992
  %v2390 = vsel %vm2378, %v2327, %v994
  %v2391 = vsel %vm2378, %v2328, %v996
  %v2392 = vsel %vm2378, %v2329, %v998
  %v2393 = vsel %vm2378, %v2330, %v1000
  %v2394 = vsel %vm2378, %v2331, %v1002
  %v2395 = vsel %vm2378, %v2332, %v1004
  %v2396 = vsel %vm2378, %v2333, %v1006
  %v2397 = vsel %vm2378, %v2334, %v1008
  %v2398 = vsel %vm2378, %v2335, %v1010
  %v2399 = vsel %vm2378, %v2336, %v1012
  %v2400 = vsel %vm2378, %v2337, %v1014
  %v2401 = vsel %vm2378, %v2338, %v1016
  %v2402 = vsel %vm2378, %v2339, %v1018
  %v2403 = vsel %vm2378, %v2340, %v1020
  %v2404 = vsel %vm2378, %v2341, %v1022
  %v2405 = vsel %vm2378, %v2342, %v1024
  %v2406 = vsel %vm2378, %v2343, %v1026
  %v2407 = vsel %vm2378, %v2344, %v1028
  %v2408 = vsel %vm2378, %v2345, %v1030
  %v2409 = vsel %vm2378, %v2346, %v1032
  %v2410 = vsel %vm2378, %v2347, %v1034
  %v2411 = vsel %vm2378, %v2348, %v1036
  %v2412 = vsel %vm2378, %v2349, %v1038
  %v2413 = vsel %vm2378, %v2350, %v1040
  %v2414 = vsel %vm2378, %v2351, %v1042
  %v2415 = vsel %vm2378, %v2352, %v1044
  %v2416 = vsel %vm2378, %v2353, %v1046
  %v2417 = vsel %vm2378, %v2354, %v1048
  %v2418 = vsel %vm2378, %v2355, %v1050
  %v2419 = vsel %vm2378, %v2356, %v1052
  %v2420 = vsel %vm2378, %v2357, %v1054
  %v2421 = vsel %vm2378, %v2358, %v1056
  %v2422 = vsel %vm2378, %v2359, %v1058
  %v2423 = vsel %vm2378, %v2360, %v1060
  %v2424 = vsel %vm2378, %v2361, %v1062
  %v2425 = vsel %vm2378, %v2362, %v1064
  %v2426 = vsel %vm2378, %v2363, %v1066
  %v2427 = vsel %vm2378, %v2364, %v1068
  %v2428 = vsel %vm2378, %v2365, %v1070
  %v2429 = vsel %vm2378, %v2366, %v1072
  %v2430 = vsel %vm2378, %v2367, %v1074
  %v2431 = vsel %vm2378, %v2368, %v1076
  %v2432 = vsel %vm2378, %v2369, %v1078
  %v2433 = vsel %vm2378, %v2370, %v1080
  %v2434 = vsel %vm2378, %v2371, %v1082
  %v2435 = vsel %vm2378, %v2372, %v1084
  %v2436 = vsel %vm2378, %v2373, %v1086
  %v2437 = vsel %vm2378, %v2374, %v1088
  %v2438 = vsel %vm2378, %v2375, %v1090
  %v2439 = vsel %vm2378, %v2376, %v1092
  %v2440 = vsel %vm2378, %v2377, %v1094
  %vm2441 = vcmask 97280
  %v2442 = vsel %vm2441, %v2379, %v1160
  %v2443 = vsel %vm2441, %v2380, %v1162
  %v2444 = vsel %vm2441, %v2381, %v1164
  %v2445 = vsel %vm2441, %v2382, %v1166
  %v2446 = vsel %vm2441, %v2383, %v1168
  %v2447 = vsel %vm2441, %v2384, %v1170
  %v2448 = vsel %vm2441, %v2385, %v1172
  %v2449 = vsel %vm2441, %v2386, %v1174
  %v2450 = vsel %vm2441, %v2387, %v1176
  %v2451 = vsel %vm2441, %v2388, %v1178
  %v2452 = vsel %vm2441, %v2389, %v1180
  %v2453 = vsel %vm2441, %v2390, %v1182
  %v2454 = vsel %vm2441, %v2391, %v1184
  %v2455 = vsel %vm2441, %v2392, %v1186
  %v2456 = vsel %vm2441, %v2393, %v1188
  %v2457 = vsel %vm2441, %v2394, %v1190
  %v2458 = vsel %vm2441, %v2395, %v1192
  %v2459 = vsel %vm2441, %v2396, %v1194
  %v2460 = vsel %vm2441, %v2397, %v1196
  %v2461 = vsel %vm2441, %v2398, %v1198
  %v2462 = vsel %vm2441, %v2399, %v1200
  %v2463 = vsel %vm2441, %v2400, %v1202
  %v2464 = vsel %vm2441, %v2401, %v1204
  %v2465 = vsel %vm2441, %v2402, %v1206
  %v2466 = vsel %vm2441, %v2403, %v1208
  %v2467 = vsel %vm2441, %v2404, %v1210
  %v2468 = vsel %vm2441, %v2405, %v1212
  %v2469 = vsel %vm2441, %v2406, %v1214
  %v2470 = vsel %vm2441, %v2407, %v1216
  %v2471 = vsel %vm2441, %v2408, %v1218
  %v2472 = vsel %vm2441, %v2409, %v1220
  %v2473 = vsel %vm2441, %v2410, %v1222
  %v2474 = vsel %vm2441, %v2379, %v1224
  %v2475 = vsel %vm2441, %v2380, %v1226
  %v2476 = vsel %vm2441, %v2411, %v1228
  %v2477 = vsel %vm2441, %v2412, %v1230
  %v2478 = vsel %vm2441, %v2413, %v1232
  %v2479 = vsel %vm2441, %v2414, %v1234
  %v2480 = vsel %vm2441, %v2415, %v1236
  %v2481 = vsel %vm2441, %v2416, %v1238
  %v2482 = vsel %vm2441, %v2417, %v1240
  %v2483 = vsel %vm2441, %v2418, %v1242
  %v2484 = vsel %vm2441, %v2419, %v1244
  %v2485 = vsel %vm2441, %v2420, %v1246
  %v2486 = vsel %vm2441, %v2421, %v1248
  %v2487 = vsel %vm2441, %v2422, %v1250
  %v2488 = vsel %vm2441, %v2423, %v1252
  %v2489 = vsel %vm2441, %v2424, %v1254
  %v2490 = vsel %vm2441, %v2425, %v1256
  %v2491 = vsel %vm2441, %v2426, %v1258
  %v2492 = vsel %vm2441, %v2427, %v1260
  %v2493 = vsel %vm2441, %v2428, %v1262
  %v2494 = vsel %vm2441, %v2429, %v1264
  %v2495 = vsel %vm2441, %v2430, %v1266
  %v2496 = vsel %vm2441, %v2431, %v1268
  %v2497 = vsel %vm2441, %v2432, %v1270
  %v2498 = vsel %vm2441, %v2433, %v1272
  %v2499 = vsel %vm2441, %v2434, %v1274
  %v2500 = vsel %vm2441, %v2435, %v1276
  %v2501 = vsel %vm2441, %v2436, %v1278
  %v2502 = vsel %vm2441, %v2437, %v1280
  %v2503 = vsel %vm2441, %v2438, %v1282
  %v2504 = vsel %vm2441, %v2439, %v1284
  %v2505 = vsel %vm2441, %v2440, %v1286
  %vm2506 = vcmask 130048
  %v2507 = vsel %vm2506, %v2442, %v1364
  %v2508 = vsel %vm2506, %v2443, %v1366
  %v2509 = vsel %vm2506, %v2444, %v1368
  %v2510 = vsel %vm2506, %v2445, %v1370
  %v2511 = vsel %vm2506, %v2446, %v1372
  %v2512 = vsel %vm2506, %v2447, %v1374
  %v2513 = vsel %vm2506, %v2448, %v1376
  %v2514 = vsel %vm2506, %v2449, %v1378
  %v2515 = vsel %vm2506, %v2450, %v1380
  %v2516 = vsel %vm2506, %v2451, %v1382
  %v2517 = vsel %vm2506, %v2452, %v1384
  %v2518 = vsel %vm2506, %v2453, %v1386
  %v2519 = vsel %vm2506, %v2454, %v1388
  %v2520 = vsel %vm2506, %v2455, %v1390
  %v2521 = vsel %vm2506, %v2456, %v1392
  %v2522 = vsel %vm2506, %v2457, %v1394
  %v2523 = vsel %vm2506, %v2458, %v1396
  %v2524 = vsel %vm2506, %v2459, %v1398
  %v2525 = vsel %vm2506, %v2460, %v1400
  %v2526 = vsel %vm2506, %v2461, %v1402
  %v2527 = vsel %vm2506, %v2462, %v1404
  %v2528 = vsel %vm2506, %v2463, %v1406
  %v2529 = vsel %vm2506, %v2464, %v1408
  %v2530 = vsel %vm2506, %v2465, %v1410
  %v2531 = vsel %vm2506, %v2466, %v1412
  %v2532 = vsel %vm2506, %v2467, %v1414
  %v2533 = vsel %vm2506, %v2468, %v1416
  %v2534 = vsel %vm2506, %v2469, %v1418
  %v2535 = vsel %vm2506, %v2470, %v1420
  %v2536 = vsel %vm2506, %v2471, %v1422
  %v2537 = vsel %vm2506, %v2472, %v1424
  %v2538 = vsel %vm2506, %v2473, %v1426
  %v2539 = vsel %vm2506, %v2474, %v1428
  %v2540 = vsel %vm2506, %v2475, %v1430
  %v2541 = vsel %vm2506, %v2476, %v1432
  %v2542 = vsel %vm2506, %v2477, %v1434
  %v2543 = vsel %vm2506, %v2478, %v1436
  %v2544 = vsel %vm2506, %v2479, %v1438
  %v2545 = vsel %vm2506, %v2480, %v1440
  %v2546 = vsel %vm2506, %v2481, %v1442
  %v2547 = vsel %vm2506, %v2482, %v1444
  %v2548 = vsel %vm2506, %v2483, %v1446
  %v2549 = vsel %vm2506, %v2484, %v1448
  %v2550 = vsel %vm2506, %v2485, %v1450
  %v2551 = vsel %vm2506, %v2486, %v1452
  %v2552 = vsel %vm2506, %v2487, %v1454
  %v2553 = vsel %vm2506, %v2488, %v1456
  %v2554 = vsel %vm2506, %v2489, %v1458
  %v2555 = vsel %vm2506, %v2490, %v1460
  %v2556 = vsel %vm2506, %v2491, %v1462
  %v2557 = vsel %vm2506, %v2492, %v1464
  %v2558 = vsel %vm2506, %v2493, %v1466
  %v2559 = vsel %vm2506, %v2494, %v1468
  %v2560 = vsel %vm2506, %v2495, %v1470
  %v2561 = vsel %vm2506, %v2496, %v1472
  %v2562 = vsel %vm2506, %v2497, %v1474
  %v2563 = vsel %vm2506, %v2498, %v1476
  %v2564 = vsel %vm2506, %v2499, %v1478
  %v2565 = vsel %vm2506, %v2500, %v1480
  %v2566 = vsel %vm2506, %v2501, %v1482
  %v2567 = vsel %vm2506, %v2502, %v1484
  %v2568 = vsel %vm2506, %v2503, %v1486
  %v2569 = vsel %vm2506, %v2504, %v1488
  %v2570 = vsel %vm2506, %v2505, %v1490
  %vm2571 = vcmask 162816
  %v2572 = vsel %vm2571, %v2507, %v1566
  %v2573 = vsel %vm2571, %v2508, %v1568
  %v2574 = vsel %vm2571, %v2509, %v1570
  %v2575 = vsel %vm2571, %v2510, %v1572
  %v2576 = vsel %vm2571, %v2511, %v1574
  %v2577 = vsel %vm2571, %v2512, %v1576
  %v2578 = vsel %vm2571, %v2513, %v1578
  %v2579 = vsel %vm2571, %v2514, %v1580
  %v2580 = vsel %vm2571, %v2515, %v1582
  %v2581 = vsel %vm2571, %v2516, %v1584
  %v2582 = vsel %vm2571, %v2517, %v1586
  %v2583 = vsel %vm2571, %v2518, %v1588
  %v2584 = vsel %vm2571, %v2519, %v1590
  %v2585 = vsel %vm2571, %v2520, %v1592
  %v2586 = vsel %vm2571, %v2521, %v1594
  %v2587 = vsel %vm2571, %v2522, %v1596
  %v2588 = vsel %vm2571, %v2523, %v1598
  %v2589 = vsel %vm2571, %v2524, %v1600
  %v2590 = vsel %vm2571, %v2525, %v1602
  %v2591 = vsel %vm2571, %v2526, %v1604
  %v2592 = vsel %vm2571, %v2527, %v1606
  %v2593 = vsel %vm2571, %v2528, %v1608
  %v2594 = vsel %vm2571, %v2529, %v1610
  %v2595 = vsel %vm2571, %v2530, %v1612
  %v2596 = vsel %vm2571, %v2531, %v1614
  %v2597 = vsel %vm2571, %v2532, %v1616
  %v2598 = vsel %vm2571, %v2533, %v1618
  %v2599 = vsel %vm2571, %v2534, %v1620
  %v2600 = vsel %vm2571, %v2535, %v1622
  %v2601 = vsel %vm2571, %v2536, %v1624
  %v2602 = vsel %vm2571, %v2537, %v1626
  %v2603 = vsel %vm2571, %v2538, %v1628
  %v2604 = vsel %vm2571, %v2539, %v1630
  %v2605 = vsel %vm2571, %v2540, %v1632
  %v2606 = vsel %vm2571, %v2541, %v1634
  %v2607 = vsel %vm2571, %v2542, %v1636
  %v2608 = vsel %vm2571, %v2543, %v1638
  %v2609 = vsel %vm2571, %v2544, %v1640
  %v2610 = vsel %vm2571, %v2545, %v1642
  %v2611 = vsel %vm2571, %v2546, %v1644
  %v2612 = vsel %vm2571, %v2547, %v1646
  %v2613 = vsel %vm2571, %v2548, %v1648
  %v2614 = vsel %vm2571, %v2549, %v1650
  %v2615 = vsel %vm2571, %v2550, %v1652
  %v2616 = vsel %vm2571, %v2551, %v1654
  %v2617 = vsel %vm2571, %v2552, %v1656
  %v2618 = vsel %vm2571, %v2553, %v1658
  %v2619 = vsel %vm2571, %v2554, %v1660
  %v2620 = vsel %vm2571, %v2555, %v1662
  %v2621 = vsel %vm2571, %v2556, %v1664
  %v2622 = vsel %vm2571, %v2557, %v1666
  %v2623 = vsel %vm2571, %v2558, %v1668
  %v2624 = vsel %vm2571, %v2559, %v1670
  %v2625 = vsel %vm2571, %v2560, %v1672
  %v2626 = vsel %vm2571, %v2561, %v1674
  %v2627 = vsel %vm2571, %v2562, %v1676
  %v2628 = vsel %vm2571, %v2563, %v1678
  %v2629 = vsel %vm2571, %v2564, %v1680
  %v2630 = vsel %vm2571, %v2565, %v1682
  %v2631 = vsel %vm2571, %v2566, %v1684
  %v2632 = vsel %vm2571, %v2567, %v1686
  %v2633 = vsel %vm2571, %v2568, %v1688
  %v2634 = vsel %vm2571, %v2569, %v1690
  %v2635 = vsel %vm2571, %v2570, %v1692
  %vm2636 = vcmask 195584
  %v2637 = vsel %vm2636, %v2572, %v1758
  %v2638 = vsel %vm2636, %v2573, %v1760
  %v2639 = vsel %vm2636, %v2574, %v1762
  %v2640 = vsel %vm2636, %v2575, %v1764
  %v2641 = vsel %vm2636, %v2576, %v1766
  %v2642 = vsel %vm2636, %v2577, %v1768
  %v2643 = vsel %vm2636, %v2578, %v1770
  %v2644 = vsel %vm2636, %v2579, %v1772
  %v2645 = vsel %vm2636, %v2580, %v1774
  %v2646 = vsel %vm2636, %v2581, %v1776
  %v2647 = vsel %vm2636, %v2582, %v1778
  %v2648 = vsel %vm2636, %v2583, %v1780
  %v2649 = vsel %vm2636, %v2584, %v1782
  %v2650 = vsel %vm2636, %v2585, %v1784
  %v2651 = vsel %vm2636, %v2586, %v1786
  %v2652 = vsel %vm2636, %v2587, %v1788
  %v2653 = vsel %vm2636, %v2588, %v1790
  %v2654 = vsel %vm2636, %v2589, %v1792
  %v2655 = vsel %vm2636, %v2590, %v1794
  %v2656 = vsel %vm2636, %v2591, %v1796
  %v2657 = vsel %vm2636, %v2592, %v1798
  %v2658 = vsel %vm2636, %v2593, %v1800
  %v2659 = vsel %vm2636, %v2594, %v1802
  %v2660 = vsel %vm2636, %v2595, %v1804
  %v2661 = vsel %vm2636, %v2596, %v1806
  %v2662 = vsel %vm2636, %v2597, %v1808
  %v2663 = vsel %vm2636, %v2598, %v1810
  %v2664 = vsel %vm2636, %v2599, %v1812
  %v2665 = vsel %vm2636, %v2600, %v1814
  %v2666 = vsel %vm2636, %v2601, %v1816
  %v2667 = vsel %vm2636, %v2602, %v1818
  %v2668 = vsel %vm2636, %v2603, %v1820
  %v2669 = vsel %vm2636, %v2604, %v1822
  %v2670 = vsel %vm2636, %v2605, %v1824
  %v2671 = vsel %vm2636, %v2606, %v1826
  %v2672 = vsel %vm2636, %v2607, %v1828
  %v2673 = vsel %vm2636, %v2608, %v1830
  %v2674 = vsel %vm2636, %v2609, %v1832
  %v2675 = vsel %vm2636, %v2610, %v1834
  %v2676 = vsel %vm2636, %v2611, %v1836
  %v2677 = vsel %vm2636, %v2612, %v1838
  %v2678 = vsel %vm2636, %v2613, %v1840
  %v2679 = vsel %vm2636, %v2614, %v1842
  %v2680 = vsel %vm2636, %v2615, %v1844
  %v2681 = vsel %vm2636, %v2616, %v1846
  %v2682 = vsel %vm2636, %v2617, %v1848
  %v2683 = vsel %vm2636, %v2618, %v1850
  %v2684 = vsel %vm2636, %v2619, %v1852
  %v2685 = vsel %vm2636, %v2620, %v1854
  %v2686 = vsel %vm2636, %v2621, %v1856
  %v2687 = vsel %vm2636, %v2622, %v1858
  %v2688 = vsel %vm2636, %v2623, %v1860
  %v2689 = vsel %vm2636, %v2624, %v1862
  %v2690 = vsel %vm2636, %v2625, %v1864
  %v2691 = vsel %vm2636, %v2626, %v1866
  %v2692 = vsel %vm2636, %v2627, %v1868
  %v2693 = vsel %vm2636, %v2628, %v1870
  %v2694 = vsel %vm2636, %v2629, %v1872
  %v2695 = vsel %vm2636, %v2630, %v1874
  %v2696 = vsel %vm2636, %v2631, %v1876
  %v2697 = vsel %vm2636, %v2632, %v1878
  %v2698 = vsel %vm2636, %v2633, %v1880
  %v2699 = vsel %vm2636, %v2634, %v1818
  %v2700 = vsel %vm2636, %v2635, %v1820
  %vm2701 = vcmask 228352
  %v2702 = vsel %vm2701, %v2637, %v1944
  %v2703 = vsel %vm2701, %v2638, %v1946
  %v2704 = vsel %vm2701, %v2639, %v1948
  %v2705 = vsel %vm2701, %v2640, %v1950
  %v2706 = vsel %vm2701, %v2641, %v1952
  %v2707 = vsel %vm2701, %v2642, %v1954
  %v2708 = vsel %vm2701, %v2643, %v1956
  %v2709 = vsel %vm2701, %v2644, %v1958
  %v2710 = vsel %vm2701, %v2645, %v1960
  %v2711 = vsel %vm2701, %v2646, %v1962
  %v2712 = vsel %vm2701, %v2647, %v1964
  %v2713 = vsel %vm2701, %v2648, %v1966
  %v2714 = vsel %vm2701, %v2649, %v1968
  %v2715 = vsel %vm2701, %v2650, %v1970
  %v2716 = vsel %vm2701, %v2651, %v1972
  %v2717 = vsel %vm2701, %v2652, %v1974
  %v2718 = vsel %vm2701, %v2653, %v1976
  %v2719 = vsel %vm2701, %v2654, %v1978
  %v2720 = vsel %vm2701, %v2655, %v1980
  %v2721 = vsel %vm2701, %v2656, %v1982
  %v2722 = vsel %vm2701, %v2657, %v1984
  %v2723 = vsel %vm2701, %v2658, %v1986
  %v2724 = vsel %vm2701, %v2659, %v1988
  %v2725 = vsel %vm2701, %v2660, %v1990
  %v2726 = vsel %vm2701, %v2661, %v1992
  %v2727 = vsel %vm2701, %v2662, %v1994
  %v2728 = vsel %vm2701, %v2663, %v1996
  %v2729 = vsel %vm2701, %v2664, %v1998
  %v2730 = vsel %vm2701, %v2665, %v2000
  %v2731 = vsel %vm2701, %v2666, %v2002
  %v2732 = vsel %vm2701, %v2667, %v2004
  %v2733 = vsel %vm2701, %v2668, %v2006
  %v2734 = vsel %vm2701, %v2669, %v2008
  %v2735 = vsel %vm2701, %v2670, %v2010
  %v2736 = vsel %vm2701, %v2671, %v2012
  %v2737 = vsel %vm2701, %v2672, %v2014
  %v2738 = vsel %vm2701, %v2673, %v2016
  %v2739 = vsel %vm2701, %v2674, %v2018
  %v2740 = vsel %vm2701, %v2675, %v2020
  %v2741 = vsel %vm2701, %v2676, %v2022
  %v2742 = vsel %vm2701, %v2677, %v2024
  %v2743 = vsel %vm2701, %v2678, %v2026
  %v2744 = vsel %vm2701, %v2679, %v2028
  %v2745 = vsel %vm2701, %v2680, %v2030
  %v2746 = vsel %vm2701, %v2681, %v2032
  %v2747 = vsel %vm2701, %v2682, %v2034
  %v2748 = vsel %vm2701, %v2683, %v2036
  %v2749 = vsel %vm2701, %v2684, %v2038
  %v2750 = vsel %vm2701, %v2685, %v2040
  %v2751 = vsel %vm2701, %v2686, %v2042
  %v2752 = vsel %vm2701, %v2687, %v2044
  %v2753 = vsel %vm2701, %v2688, %v2046
  %v2754 = vsel %vm2701, %v2689, %v2048
  %v2755 = vsel %vm2701, %v2690, %v2050
  %v2756 = vsel %vm2701, %v2691, %v2052
  %v2757 = vsel %vm2701, %v2692, %v2054
  %v2758 = vsel %vm2701, %v2693, %v2056
  %v2759 = vsel %vm2701, %v2694, %v2058
  %v2760 = vsel %vm2701, %v2695, %v2060
  %v2761 = vsel %vm2701, %v2696, %v2062
  %v2762 = vsel %vm2701, %v2697, %v2064
  %v2763 = vsel %vm2701, %v2698, %v2066
  %v2764 = vsel %vm2701, %v2699, %v2004
  %v2765 = vsel %vm2701, %v2700, %v2006
  %vm2766 = vcmask 261120
  %v2767 = vsel %vm2766, %v2702, %v2130
  %v2768 = vsel %vm2766, %v2703, %v2132
  %v2769 = vsel %vm2766, %v2704, %v2134
  %v2770 = vsel %vm2766, %v2705, %v2136
  %v2771 = vsel %vm2766, %v2706, %v2138
  %v2772 = vsel %vm2766, %v2707, %v2140
  %v2773 = vsel %vm2766, %v2708, %v2142
  %v2774 = vsel %vm2766, %v2709, %v2144
  %v2775 = vsel %vm2766, %v2710, %v2146
  %v2776 = vsel %vm2766, %v2711, %v2148
  %v2777 = vsel %vm2766, %v2712, %v2150
  %v2778 = vsel %vm2766, %v2713, %v2152
  %v2779 = vsel %vm2766, %v2714, %v2154
  %v2780 = vsel %vm2766, %v2715, %v2156
  %v2781 = vsel %vm2766, %v2716, %v2158
  %v2782 = vsel %vm2766, %v2717, %v2160
  %v2783 = vsel %vm2766, %v2718, %v2162
  %v2784 = vsel %vm2766, %v2719, %v2164
  %v2785 = vsel %vm2766, %v2720, %v2166
  %v2786 = vsel %vm2766, %v2721, %v2168
  %v2787 = vsel %vm2766, %v2722, %v2170
  %v2788 = vsel %vm2766, %v2723, %v2172
  %v2789 = vsel %vm2766, %v2724, %v2174
  %v2790 = vsel %vm2766, %v2725, %v2176
  %v2791 = vsel %vm2766, %v2726, %v2178
  %v2792 = vsel %vm2766, %v2727, %v2180
  %v2793 = vsel %vm2766, %v2728, %v2182
  %v2794 = vsel %vm2766, %v2729, %v2184
  %v2795 = vsel %vm2766, %v2730, %v2186
  %v2796 = vsel %vm2766, %v2731, %v2188
  %v2797 = vsel %vm2766, %v2732, %v2190
  %v2798 = vsel %vm2766, %v2733, %v2192
  %v2799 = vsel %vm2766, %v2734, %v2194
  %v2800 = vsel %vm2766, %v2735, %v2196
  %v2801 = vsel %vm2766, %v2736, %v2198
  %v2802 = vsel %vm2766, %v2737, %v2200
  %v2803 = vsel %vm2766, %v2738, %v2202
  %v2804 = vsel %vm2766, %v2739, %v2204
  %v2805 = vsel %vm2766, %v2740, %v2206
  %v2806 = vsel %vm2766, %v2741, %v2208
  %v2807 = vsel %vm2766, %v2742, %v2210
  %v2808 = vsel %vm2766, %v2743, %v2212
  %v2809 = vsel %vm2766, %v2744, %v2214
  %v2810 = vsel %vm2766, %v2745, %v2216
  %v2811 = vsel %vm2766, %v2746, %v2218
  %v2812 = vsel %vm2766, %v2747, %v2220
  %v2813 = vsel %vm2766, %v2748, %v2222
  %v2814 = vsel %vm2766, %v2749, %v2224
  %v2815 = vsel %vm2766, %v2750, %v2226
  %v2816 = vsel %vm2766, %v2751, %v2228
  %v2817 = vsel %vm2766, %v2752, %v2230
  %v2818 = vsel %vm2766, %v2753, %v2232
  %v2819 = vsel %vm2766, %v2754, %v2234
  %v2820 = vsel %vm2766, %v2755, %v2236
  %v2821 = vsel %vm2766, %v2756, %v2238
  %v2822 = vsel %vm2766, %v2757, %v2240
  %v2823 = vsel %vm2766, %v2758, %v2242
  %v2824 = vsel %vm2766, %v2759, %v2244
  %v2825 = vsel %vm2766, %v2760, %v2246
  %v2826 = vsel %vm2766, %v2761, %v2248
  %v2827 = vsel %vm2766, %v2762, %v2250
  %v2828 = vsel %vm2766, %v2763, %v2252
  %v2829 = vsel %vm2766, %v2764, %v2190
  %v2830 = vsel %vm2766, %v2765, %v2192
  %v2831 = vpack.c.bf16 %v2768, %v2767
  %v2832 = vpack.c.bf16 %v2770, %v2769
  %v2833 = vpack.c.bf16 %v2772, %v2771
  %v2834 = vpack.c.bf16 %v2774, %v2773
  %v2835 = vpack.c.bf16 %v2776, %v2775
  %v2836 = vpack.c.bf16 %v2778, %v2777
  %v2837 = vpack.c.bf16 %v2780, %v2779
  %v2838 = vpack.c.bf16 %v2782, %v2781
  %v2839 = vpack.c.bf16 %v2784, %v2783
  %v2840 = vpack.c.bf16 %v2786, %v2785
  %v2841 = vpack.c.bf16 %v2788, %v2787
  %v2842 = vpack.c.bf16 %v2790, %v2789
  %v2843 = vpack.c.bf16 %v2792, %v2791
  %v2844 = vpack.c.bf16 %v2794, %v2793
  %v2845 = vpack.c.bf16 %v2796, %v2795
  %v2846 = vpack.c.bf16 %v2798, %v2797
  %v2847 = vpack.c.bf16 %v2800, %v2799
  %v2848 = vpack.c.bf16 %v2802, %v2801
  %v2849 = vpack.c.bf16 %v2804, %v2803
  %v2850 = vpack.c.bf16 %v2806, %v2805
  %v2851 = vpack.c.bf16 %v2808, %v2807
  %v2852 = vpack.c.bf16 %v2810, %v2809
  %v2853 = vpack.c.bf16 %v2812, %v2811
  %v2854 = vpack.c.bf16 %v2814, %v2813
  %v2855 = vpack.c.bf16 %v2816, %v2815
  %v2856 = vpack.c.bf16 %v2818, %v2817
  %v2857 = vpack.c.bf16 %v2820, %v2819
  %v2858 = vpack.c.bf16 %v2822, %v2821
  %v2859 = vpack.c.bf16 %v2824, %v2823
  %v2860 = vpack.c.bf16 %v2826, %v2825
  %v2861 = vpack.c.bf16 %v2828, %v2827
  %v2862 = vpack.c.bf16 %v2830, %v2829
  %v2863 = vld [vmem:[%s1] sm:$0xf]
  %v2864 = vld [vmem:[%s1 + $0x4] sm:$0xf]
  %v2865 = vld [vmem:[%s1 + $0x8] sm:$0xf]
  %v2866 = vld [vmem:[%s1 + $0xc] sm:$0xf]
  %v2867 = vld [vmem:[%s1 + $0x10] sm:$0x3]
  %v2868 = vld [vmem:[%s2] sm:$0x1]
  %v2870 = vlaneseq
  %v2871 = vshrl.u32 %v2870, 7
  %v2872 = vsub.s32 0, %v2871
  %v2873 = vrot.slane %v2868, %v2872
  %v2880 = vunpack.c.l.b16 %v2863
  %v2881 = vunpack.c.l.b16 %v2864
  %v2882 = vunpack.c.l.b16 %v2865
  %v2883 = vunpack.c.l.b16 %v2866
  %v2884 = vunpack.c.l.b16 %v2867
  %v2885 = vpack.c.b16 %v2881, %v2880
  %v2886 = vpack.c.b16 %v2883, %v2882
  %v2887 = vpack.c.b16 %v2884, %v2884
  %vm2890 = vcmask 293888
  %v2892 = vsel %vm2890, %v2831, 0
  %v2895 = vsel %vm2890, %v2832, 0
  %v2898 = vsel %vm2890, %v2833, 0
  %v2901 = vsel %vm2890, %v2834, 0
  %v2904 = vsel %vm2890, %v2835, 0
  %v2907 = vsel %vm2890, %v2836, 0
  %v2910 = vsel %vm2890, %v2837, 0
  %v2913 = vsel %vm2890, %v2838, 0
  %v2916 = vsel %vm2890, %v2839, 0
  %v2919 = vsel %vm2890, %v2840, 0
  %v2922 = vsel %vm2890, %v2841, 0
  %v2925 = vsel %vm2890, %v2842, 0
  %v2928 = vsel %vm2890, %v2843, 0
  %v2931 = vsel %vm2890, %v2844, 0
  %v2934 = vsel %vm2890, %v2845, 0
  %v2937 = vsel %vm2890, %v2846, 0
  %v2940 = vsel %vm2890, %v2847, 0
  %v2943 = vsel %vm2890, %v2848, 0
  %v2946 = vsel %vm2890, %v2849, 0
  %v2949 = vsel %vm2890, %v2850, 0
  %v2952 = vsel %vm2890, %v2851, 0
  %v2955 = vsel %vm2890, %v2852, 0
  %v2958 = vsel %vm2890, %v2853, 0
  %v2961 = vsel %vm2890, %v2854, 0
  %v2964 = vsel %vm2890, %v2855, 0
  %v2967 = vsel %vm2890, %v2856, 0
  %v2970 = vsel %vm2890, %v2857, 0
  %v2973 = vsel %vm2890, %v2858, 0
  %v2976 = vsel %vm2890, %v2859, 0
  %v2979 = vsel %vm2890, %v2860, 0
  %v2982 = vsel %vm2890, %v2861, 0
  %v2985 = vsel %vm2890, %v2862, 0
  %vm2987 = vcmask 1041408
  %v2989 = vsel %vm2987, %v2887, 0
  %2991 = vmatprep.subr.bf16.mxu0 0
  %2992 = vmatpush1.bf16.msra.mxu0 0
  %2993 = vmatprep.subr.bf16.mxu0 0
  %2994 = vmatpush1.bf16.msra.mxu0 0
  %2995 = vmatprep.subr.bf16.mxu0 0
  %2996 = vmatpush1.bf16.msra.mxu0 0
  %2997 = vmatprep.subr.bf16.mxu0 0
  %2998 = vmatpush1.bf16.msra.mxu0 0
  %2999 = vmatprep.subr.bf16.mxu0 0
  %3000 = vmatpush1.bf16.msra.mxu0 0
  %3001 = vmatprep.subr.bf16.mxu0 0
  %3002 = vmatpush1.bf16.msra.mxu0 %v2989
  %3003 = vmatprep.subr.bf16.mxu0 0
  %3004 = vmatpush1.bf16.msra.mxu0 %v2886
  %3005 = vmatprep.subr.bf16.mxu0 0
  %3006 = vmatpush1.bf16.msra.mxu0 %v2885
  %3007 = vmatprep.subr.bf16.mxu0 0
  %3008 = vmatpush2.bf16.msra.mxu0 0
  %3009 = vmatprep.subr.bf16.mxu0 0
  %3010 = vmatpush2.bf16.msra.mxu0 0
  %3011 = vmatprep.subr.bf16.mxu0 0
  %3012 = vmatpush2.bf16.msra.mxu0 0
  %3013 = vmatprep.subr.bf16.mxu0 0
  %3014 = vmatpush2.bf16.msra.mxu0 0
  %3015 = vmatprep.subr.bf16.mxu0 0
  %3016 = vmatpush2.bf16.msra.mxu0 0
  %3017 = vmatprep.subr.bf16.mxu0 0
  %3018 = vmatpush2.bf16.msra.mxu0 0
  %3019 = vmatprep.subr.bf16.mxu0 0
  %3020 = vmatpush2.bf16.msra.mxu0 0
  %3021 = vmatprep.subr.bf16.mxu0 0
  %3022 = vmatpush2.bf16.msra.mxu0 0
  %3023 = vmatprep.mubr.bf16.mxu0 0
  %3024 = vmatmul.mubr.bf16.gmra.mxu0 %v2892
  %v3025 = vpop.f32.mrf.mxu0
  %v3026 = vadd.f32 %v2873, %v3025
  %v3027 = vpop.f32.mrf.mxu0
  %v3028 = vpop.f32.mrf.mxu0
  %v3029 = vadd.f32 %v2873, %v3028
  %v3030 = vpop.f32.mrf.mxu0
  %3031 = vmatprep.mubr.bf16.mxu0 0
  %3032 = vmatmul.mubr.bf16.gmra.mxu0 %v2895
  %v3033 = vpop.f32.mrf.mxu0
  %v3034 = vadd.f32 %v2873, %v3033
  %v3035 = vpop.f32.mrf.mxu0
  %v3036 = vpop.f32.mrf.mxu0
  %v3037 = vadd.f32 %v2873, %v3036
  %v3038 = vpop.f32.mrf.mxu0
  %3039 = vmatprep.mubr.bf16.mxu0 0
  %3040 = vmatmul.mubr.bf16.gmra.mxu0 %v2898
  %v3041 = vpop.f32.mrf.mxu0
  %v3042 = vadd.f32 %v2873, %v3041
  %v3043 = vpop.f32.mrf.mxu0
  %v3044 = vpop.f32.mrf.mxu0
  %v3045 = vadd.f32 %v2873, %v3044
  %v3046 = vpop.f32.mrf.mxu0
  %3047 = vmatprep.mubr.bf16.mxu0 0
  %3048 = vmatmul.mubr.bf16.gmra.mxu0 %v2901
  %v3049 = vpop.f32.mrf.mxu0
  %v3050 = vadd.f32 %v2873, %v3049
  %v3051 = vpop.f32.mrf.mxu0
  %v3052 = vpop.f32.mrf.mxu0
  %v3053 = vadd.f32 %v2873, %v3052
  %v3054 = vpop.f32.mrf.mxu0
  %3055 = vmatprep.mubr.bf16.mxu0 0
  %3056 = vmatmul.mubr.bf16.gmra.mxu0 %v2904
  %v3057 = vpop.f32.mrf.mxu0
  %v3058 = vadd.f32 %v2873, %v3057
  %v3059 = vpop.f32.mrf.mxu0
  %v3060 = vpop.f32.mrf.mxu0
  %v3061 = vadd.f32 %v2873, %v3060
  %v3062 = vpop.f32.mrf.mxu0
  %3063 = vmatprep.mubr.bf16.mxu0 0
  %3064 = vmatmul.mubr.bf16.gmra.mxu0 %v2907
  %v3065 = vpop.f32.mrf.mxu0
  %v3066 = vadd.f32 %v2873, %v3065
  %v3067 = vpop.f32.mrf.mxu0
  %v3068 = vpop.f32.mrf.mxu0
  %v3069 = vadd.f32 %v2873, %v3068
  %v3070 = vpop.f32.mrf.mxu0
  %3071 = vmatprep.mubr.bf16.mxu0 0
  %3072 = vmatmul.mubr.bf16.gmra.mxu0 %v2910
  %v3073 = vpop.f32.mrf.mxu0
  %v3074 = vadd.f32 %v2873, %v3073
  %v3075 = vpop.f32.mrf.mxu0
  %v3076 = vpop.f32.mrf.mxu0
  %v3077 = vadd.f32 %v2873, %v3076
  %v3078 = vpop.f32.mrf.mxu0
  %3079 = vmatprep.mubr.bf16.mxu0 0
  %3080 = vmatmul.mubr.bf16.gmra.mxu0 %v2913
  %v3081 = vpop.f32.mrf.mxu0
  %v3082 = vadd.f32 %v2873, %v3081
  %v3083 = vpop.f32.mrf.mxu0
  %v3084 = vpop.f32.mrf.mxu0
  %v3085 = vadd.f32 %v2873, %v3084
  %v3086 = vpop.f32.mrf.mxu0
  %3087 = vmatprep.mubr.bf16.mxu0 0
  %3088 = vmatmul.mubr.bf16.gmra.mxu0 %v2916
  %v3089 = vpop.f32.mrf.mxu0
  %v3090 = vadd.f32 %v2873, %v3089
  %v3091 = vpop.f32.mrf.mxu0
  %v3092 = vpop.f32.mrf.mxu0
  %v3093 = vadd.f32 %v2873, %v3092
  %v3094 = vpop.f32.mrf.mxu0
  %3095 = vmatprep.mubr.bf16.mxu0 0
  %3096 = vmatmul.mubr.bf16.gmra.mxu0 %v2919
  %v3097 = vpop.f32.mrf.mxu0
  %v3098 = vadd.f32 %v2873, %v3097
  %v3099 = vpop.f32.mrf.mxu0
  %v3100 = vpop.f32.mrf.mxu0
  %v3101 = vadd.f32 %v2873, %v3100
  %v3102 = vpop.f32.mrf.mxu0
  %3103 = vmatprep.mubr.bf16.mxu0 0
  %3104 = vmatmul.mubr.bf16.gmra.mxu0 %v2922
  %v3105 = vpop.f32.mrf.mxu0
  %v3106 = vadd.f32 %v2873, %v3105
  %v3107 = vpop.f32.mrf.mxu0
  %v3108 = vpop.f32.mrf.mxu0
  %v3109 = vadd.f32 %v2873, %v3108
  %v3110 = vpop.f32.mrf.mxu0
  %3111 = vmatprep.mubr.bf16.mxu0 0
  %3112 = vmatmul.mubr.bf16.gmra.mxu0 %v2925
  %v3113 = vpop.f32.mrf.mxu0
  %v3114 = vadd.f32 %v2873, %v3113
  %v3115 = vpop.f32.mrf.mxu0
  %v3116 = vpop.f32.mrf.mxu0
  %v3117 = vadd.f32 %v2873, %v3116
  %v3118 = vpop.f32.mrf.mxu0
  %3119 = vmatprep.mubr.bf16.mxu0 0
  %3120 = vmatmul.mubr.bf16.gmra.mxu0 %v2928
  %v3121 = vpop.f32.mrf.mxu0
  %v3122 = vadd.f32 %v2873, %v3121
  %v3123 = vpop.f32.mrf.mxu0
  %v3124 = vpop.f32.mrf.mxu0
  %v3125 = vadd.f32 %v2873, %v3124
  %v3126 = vpop.f32.mrf.mxu0
  %3127 = vmatprep.mubr.bf16.mxu0 0
  %3128 = vmatmul.mubr.bf16.gmra.mxu0 %v2931
  %v3129 = vpop.f32.mrf.mxu0
  %v3130 = vadd.f32 %v2873, %v3129
  %v3131 = vpop.f32.mrf.mxu0
  %v3132 = vpop.f32.mrf.mxu0
  %v3133 = vadd.f32 %v2873, %v3132
  %v3134 = vpop.f32.mrf.mxu0
  %3135 = vmatprep.mubr.bf16.mxu0 0
  %3136 = vmatmul.mubr.bf16.gmra.mxu0 %v2934
  %v3137 = vpop.f32.mrf.mxu0
  %v3138 = vadd.f32 %v2873, %v3137
  %v3139 = vpop.f32.mrf.mxu0
  %v3140 = vpop.f32.mrf.mxu0
  %v3141 = vadd.f32 %v2873, %v3140
  %v3142 = vpop.f32.mrf.mxu0
  %3143 = vmatprep.mubr.bf16.mxu0 0
  %3144 = vmatmul.mubr.bf16.gmra.mxu0 %v2937
  %v3145 = vpop.f32.mrf.mxu0
  %v3146 = vadd.f32 %v2873, %v3145
  %v3147 = vpop.f32.mrf.mxu0
  %v3148 = vpop.f32.mrf.mxu0
  %v3149 = vadd.f32 %v2873, %v3148
  %v3150 = vpop.f32.mrf.mxu0
  %3151 = vmatprep.mubr.bf16.mxu0 0
  %3152 = vmatmul.mubr.bf16.gmra.mxu0 %v2940
  %v3153 = vpop.f32.mrf.mxu0
  %v3154 = vadd.f32 %v2873, %v3153
  %v3155 = vpop.f32.mrf.mxu0
  %v3156 = vpop.f32.mrf.mxu0
  %v3157 = vadd.f32 %v2873, %v3156
  %v3158 = vpop.f32.mrf.mxu0
  %3159 = vmatprep.mubr.bf16.mxu0 0
  %3160 = vmatmul.mubr.bf16.gmra.mxu0 %v2943
  %v3161 = vpop.f32.mrf.mxu0
  %v3162 = vadd.f32 %v2873, %v3161
  %v3163 = vpop.f32.mrf.mxu0
  %v3164 = vpop.f32.mrf.mxu0
  %v3165 = vadd.f32 %v2873, %v3164
  %v3166 = vpop.f32.mrf.mxu0
  %3167 = vmatprep.mubr.bf16.mxu0 0
  %3168 = vmatmul.mubr.bf16.gmra.mxu0 %v2946
  %v3169 = vpop.f32.mrf.mxu0
  %v3170 = vadd.f32 %v2873, %v3169
  %v3171 = vpop.f32.mrf.mxu0
  %v3172 = vpop.f32.mrf.mxu0
  %v3173 = vadd.f32 %v2873, %v3172
  %v3174 = vpop.f32.mrf.mxu0
  %3175 = vmatprep.mubr.bf16.mxu0 0
  %3176 = vmatmul.mubr.bf16.gmra.mxu0 %v2949
  %v3177 = vpop.f32.mrf.mxu0
  %v3178 = vadd.f32 %v2873, %v3177
  %v3179 = vpop.f32.mrf.mxu0
  %v3180 = vpop.f32.mrf.mxu0
  %v3181 = vadd.f32 %v2873, %v3180
  %v3182 = vpop.f32.mrf.mxu0
  %3183 = vmatprep.mubr.bf16.mxu0 0
  %3184 = vmatmul.mubr.bf16.gmra.mxu0 %v2952
  %v3185 = vpop.f32.mrf.mxu0
  %v3186 = vadd.f32 %v2873, %v3185
  %v3187 = vpop.f32.mrf.mxu0
  %v3188 = vpop.f32.mrf.mxu0
  %v3189 = vadd.f32 %v2873, %v3188
  %v3190 = vpop.f32.mrf.mxu0
  %3191 = vmatprep.mubr.bf16.mxu0 0
  %3192 = vmatmul.mubr.bf16.gmra.mxu0 %v2955
  %v3193 = vpop.f32.mrf.mxu0
  %v3194 = vadd.f32 %v2873, %v3193
  %v3195 = vpop.f32.mrf.mxu0
  %v3196 = vpop.f32.mrf.mxu0
  %v3197 = vadd.f32 %v2873, %v3196
  %v3198 = vpop.f32.mrf.mxu0
  %3199 = vmatprep.mubr.bf16.mxu0 0
  %3200 = vmatmul.mubr.bf16.gmra.mxu0 %v2958
  %v3201 = vpop.f32.mrf.mxu0
  %v3202 = vadd.f32 %v2873, %v3201
  %v3203 = vpop.f32.mrf.mxu0
  %v3204 = vpop.f32.mrf.mxu0
  %v3205 = vadd.f32 %v2873, %v3204
  %v3206 = vpop.f32.mrf.mxu0
  %3207 = vmatprep.mubr.bf16.mxu0 0
  %3208 = vmatmul.mubr.bf16.gmra.mxu0 %v2961
  %v3209 = vpop.f32.mrf.mxu0
  %v3210 = vadd.f32 %v2873, %v3209
  %v3211 = vpop.f32.mrf.mxu0
  %v3212 = vpop.f32.mrf.mxu0
  %v3213 = vadd.f32 %v2873, %v3212
  %v3214 = vpop.f32.mrf.mxu0
  %3215 = vmatprep.mubr.bf16.mxu0 0
  %3216 = vmatmul.mubr.bf16.gmra.mxu0 %v2964
  %v3217 = vpop.f32.mrf.mxu0
  %v3218 = vadd.f32 %v2873, %v3217
  %v3219 = vpop.f32.mrf.mxu0
  %v3220 = vpop.f32.mrf.mxu0
  %v3221 = vadd.f32 %v2873, %v3220
  %v3222 = vpop.f32.mrf.mxu0
  %3223 = vmatprep.mubr.bf16.mxu0 0
  %3224 = vmatmul.mubr.bf16.gmra.mxu0 %v2967
  %v3225 = vpop.f32.mrf.mxu0
  %v3226 = vadd.f32 %v2873, %v3225
  %v3227 = vpop.f32.mrf.mxu0
  %v3228 = vpop.f32.mrf.mxu0
  %v3229 = vadd.f32 %v2873, %v3228
  %v3230 = vpop.f32.mrf.mxu0
  %3231 = vmatprep.mubr.bf16.mxu0 0
  %3232 = vmatmul.mubr.bf16.gmra.mxu0 %v2970
  %v3233 = vpop.f32.mrf.mxu0
  %v3234 = vadd.f32 %v2873, %v3233
  %v3235 = vpop.f32.mrf.mxu0
  %v3236 = vpop.f32.mrf.mxu0
  %v3237 = vadd.f32 %v2873, %v3236
  %v3238 = vpop.f32.mrf.mxu0
  %3239 = vmatprep.mubr.bf16.mxu0 0
  %3240 = vmatmul.mubr.bf16.gmra.mxu0 %v2973
  %v3241 = vpop.f32.mrf.mxu0
  %v3242 = vadd.f32 %v2873, %v3241
  %v3243 = vpop.f32.mrf.mxu0
  %v3244 = vpop.f32.mrf.mxu0
  %v3245 = vadd.f32 %v2873, %v3244
  %v3246 = vpop.f32.mrf.mxu0
  %3247 = vmatprep.mubr.bf16.mxu0 0
  %3248 = vmatmul.mubr.bf16.gmra.mxu0 %v2976
  %v3249 = vpop.f32.mrf.mxu0
  %v3250 = vadd.f32 %v2873, %v3249
  %v3251 = vpop.f32.mrf.mxu0
  %v3252 = vpop.f32.mrf.mxu0
  %v3253 = vadd.f32 %v2873, %v3252
  %v3254 = vpop.f32.mrf.mxu0
  %3255 = vmatprep.mubr.bf16.mxu0 0
  %3256 = vmatmul.mubr.bf16.gmra.mxu0 %v2979
  %v3257 = vpop.f32.mrf.mxu0
  %v3258 = vadd.f32 %v2873, %v3257
  %v3259 = vpop.f32.mrf.mxu0
  %v3260 = vpop.f32.mrf.mxu0
  %v3261 = vadd.f32 %v2873, %v3260
  %v3262 = vpop.f32.mrf.mxu0
  %3263 = vmatprep.mubr.bf16.mxu0 0
  %3264 = vmatmul.mubr.bf16.gmra.mxu0 %v2982
  %v3265 = vpop.f32.mrf.mxu0
  %v3266 = vadd.f32 %v2873, %v3265
  %v3267 = vpop.f32.mrf.mxu0
  %v3268 = vpop.f32.mrf.mxu0
  %v3269 = vadd.f32 %v2873, %v3268
  %v3270 = vpop.f32.mrf.mxu0
  %3271 = vmatprep.mubr.bf16.mxu0 0
  %3272 = vmatmul.mubr.bf16.gmra.mxu0 %v2985
  %v3273 = vpop.f32.mrf.mxu0
  %v3274 = vadd.f32 %v2873, %v3273
  %v3275 = vpop.f32.mrf.mxu0
  %v3276 = vpop.f32.mrf.mxu0
  %v3277 = vadd.f32 %v2873, %v3276
  %v3278 = vpop.f32.mrf.mxu0
  %3279 = vdwg.mxu0
  %v3280 = vmax.f32 %v3026, 0.0
  %v3281 = vmax.f32 %v3029, 0.0
  %v3282 = vmax.f32 %v3034, 0.0
  %v3283 = vmax.f32 %v3037, 0.0
  %v3284 = vmax.f32 %v3042, 0.0
  %v3285 = vmax.f32 %v3045, 0.0
  %v3286 = vmax.f32 %v3050, 0.0
  %v3287 = vmax.f32 %v3053, 0.0
  %v3288 = vmax.f32 %v3058, 0.0
  %v3289 = vmax.f32 %v3061, 0.0
  %v3290 = vmax.f32 %v3066, 0.0
  %v3291 = vmax.f32 %v3069, 0.0
  %v3292 = vmax.f32 %v3074, 0.0
  %v3293 = vmax.f32 %v3077, 0.0
  %v3294 = vmax.f32 %v3082, 0.0
  %v3295 = vmax.f32 %v3085, 0.0
  %v3296 = vmax.f32 %v3090, 0.0
  %v3297 = vmax.f32 %v3093, 0.0
  %v3298 = vmax.f32 %v3098, 0.0
  %v3299 = vmax.f32 %v3101, 0.0
  %v3300 = vmax.f32 %v3106, 0.0
  %v3301 = vmax.f32 %v3109, 0.0
  %v3302 = vmax.f32 %v3114, 0.0
  %v3303 = vmax.f32 %v3117, 0.0
  %v3304 = vmax.f32 %v3122, 0.0
  %v3305 = vmax.f32 %v3125, 0.0
  %v3306 = vmax.f32 %v3130, 0.0
  %v3307 = vmax.f32 %v3133, 0.0
  %v3308 = vmax.f32 %v3138, 0.0
  %v3309 = vmax.f32 %v3141, 0.0
  %v3310 = vmax.f32 %v3146, 0.0
  %v3311 = vmax.f32 %v3149, 0.0
  %v3312 = vmax.f32 %v3154, 0.0
  %v3313 = vmax.f32 %v3157, 0.0
  %v3314 = vmax.f32 %v3162, 0.0
  %v3315 = vmax.f32 %v3165, 0.0
  %v3316 = vmax.f32 %v3170, 0.0
  %v3317 = vmax.f32 %v3173, 0.0
  %v3318 = vmax.f32 %v3178, 0.0
  %v3319 = vmax.f32 %v3181, 0.0
  %v3320 = vmax.f32 %v3186, 0.0
  %v3321 = vmax.f32 %v3189, 0.0
  %v3322 = vmax.f32 %v3194, 0.0
  %v3323 = vmax.f32 %v3197, 0.0
  %v3324 = vmax.f32 %v3202, 0.0
  %v3325 = vmax.f32 %v3205, 0.0
  %v3326 = vmax.f32 %v3210, 0.0
  %v3327 = vmax.f32 %v3213, 0.0
  %v3328 = vmax.f32 %v3218, 0.0
  %v3329 = vmax.f32 %v3221, 0.0
  %v3330 = vmax.f32 %v3226, 0.0
  %v3331 = vmax.f32 %v3229, 0.0
  %v3332 = vmax.f32 %v3234, 0.0
  %v3333 = vmax.f32 %v3237, 0.0
  %v3334 = vmax.f32 %v3242, 0.0
  %v3335 = vmax.f32 %v3245, 0.0
  %v3336 = vmax.f32 %v3250, 0.0
  %v3337 = vmax.f32 %v3253, 0.0
  %v3338 = vmax.f32 %v3258, 0.0
  %v3339 = vmax.f32 %v3261, 0.0
  %v3340 = vmax.f32 %v3266, 0.0
  %v3341 = vmax.f32 %v3269, 0.0
  %v3342 = vmax.f32 %v3274, 0.0
  %v3343 = vmax.f32 %v3277, 0.0
  %v3344 = vmax.f32 %v3280, %v3282
  %v3345 = vmax.f32 %v3281, %v3283
  %v3346 = vmax.f32 %v3284, %v3286
  %v3347 = vmax.f32 %v3285, %v3287
  %v3348 = vmax.f32 %v3288, %v3290
  %v3349 = vmax.f32 %v3289, %v3291
  %v3350 = vmax.f32 %v3292, %v3294
  %v3351 = vmax.f32 %v3293, %v3295
  %v3352 = vmax.f32 %v3296, %v3298
  %v3353 = vmax.f32 %v3297, %v3299
  %v3354 = vmax.f32 %v3300, %v3302
  %v3355 = vmax.f32 %v3301, %v3303
  %v3356 = vmax.f32 %v3304, %v3306
  %v3357 = vmax.f32 %v3305, %v3307
  %v3358 = vmax.f32 %v3308, %v3310
  %v3359 = vmax.f32 %v3309, %v3311
  %v3360 = vmax.f32 %v3312, %v3314
  %v3361 = vmax.f32 %v3313, %v3315
  %v3362 = vmax.f32 %v3316, %v3318
  %v3363 = vmax.f32 %v3317, %v3319
  %v3364 = vmax.f32 %v3320, %v3322
  %v3365 = vmax.f32 %v3321, %v3323
  %v3366 = vmax.f32 %v3324, %v3326
  %v3367 = vmax.f32 %v3325, %v3327
  %v3368 = vmax.f32 %v3328, %v3330
  %v3369 = vmax.f32 %v3329, %v3331
  %v3370 = vmax.f32 %v3332, %v3334
  %v3371 = vmax.f32 %v3333, %v3335
  %v3372 = vmax.f32 %v3336, %v3338
  %v3373 = vmax.f32 %v3337, %v3339
  %v3374 = vmax.f32 %v3340, %v3342
  %v3375 = vmax.f32 %v3341, %v3343
  %v3408 = vcombine.high %v3344, %v3344
  %v3410 = vunpack.c.l.s4 1983009808
  %v3411 = vunpack.c.0.s8 %v3410
  %v3412 = vlaneseq
  %v3413 = vshrl.u32 %v3412, 7
  %v3414 = vsub.s32 %v3411, %v3413
  %v3415 = vrot.slane %v3344, %v3414
  %v3417 = vunpack.c.l.s4 1983009808
  %v3418 = vunpack.c.0.s8 %v3417
  %v3419 = vlaneseq
  %v3420 = vshrl.u32 %v3419, 7
  %v3421 = vsub.s32 %v3418, %v3420
  %v3422 = vrot.slane %v3408, %v3421
  %v3423 = vcombine.high %v3415, %v3415
  %v3424 = vcombine.high %v3422, %v3422
  %v3425 = vcombine.high %v3345, %v3345
  %v3427 = vunpack.c.l.s4 1983009808
  %v3428 = vunpack.c.0.s8 %v3427
  %v3429 = vlaneseq
  %v3430 = vshrl.u32 %v3429, 7
  %v3431 = vsub.s32 %v3428, %v3430
  %v3432 = vrot.slane %v3345, %v3431
  %v3434 = vunpack.c.l.s4 1983009808
  %v3435 = vunpack.c.0.s8 %v3434
  %v3436 = vlaneseq
  %v3437 = vshrl.u32 %v3436, 7
  %v3438 = vsub.s32 %v3435, %v3437
  %v3439 = vrot.slane %v3425, %v3438
  %v3440 = vcombine.high %v3432, %v3432
  %v3441 = vcombine.high %v3439, %v3439
  %v3442 = vcombine.high %v3346, %v3346
  %v3444 = vunpack.c.l.s4 1983009808
  %v3445 = vunpack.c.0.s8 %v3444
  %v3446 = vlaneseq
  %v3447 = vshrl.u32 %v3446, 7
  %v3448 = vsub.s32 %v3445, %v3447
  %v3449 = vrot.slane %v3346, %v3448
  %v3451 = vunpack.c.l.s4 1983009808
  %v3452 = vunpack.c.0.s8 %v3451
  %v3453 = vlaneseq
  %v3454 = vshrl.u32 %v3453, 7
  %v3455 = vsub.s32 %v3452, %v3454
  %v3456 = vrot.slane %v3442, %v3455
  %v3457 = vcombine.high %v3449, %v3449
  %v3458 = vcombine.high %v3456, %v3456
  %v3459 = vcombine.high %v3347, %v3347
  %v3461 = vunpack.c.l.s4 1983009808
  %v3462 = vunpack.c.0.s8 %v3461
  %v3463 = vlaneseq
  %v3464 = vshrl.u32 %v3463, 7
  %v3465 = vsub.s32 %v3462, %v3464
  %v3466 = vrot.slane %v3347, %v3465
  %v3468 = vunpack.c.l.s4 1983009808
  %v3469 = vunpack.c.0.s8 %v3468
  %v3470 = vlaneseq
  %v3471 = vshrl.u32 %v3470, 7
  %v3472 = vsub.s32 %v3469, %v3471
  %v3473 = vrot.slane %v3459, %v3472
  %v3474 = vcombine.high %v3466, %v3466
  %v3475 = vcombine.high %v3473, %v3473
  %v3476 = vcombine.high %v3348, %v3348
  %v3478 = vunpack.c.l.s4 1983009808
  %v3479 = vunpack.c.0.s8 %v3478
  %v3480 = vlaneseq
  %v3481 = vshrl.u32 %v3480, 7
  %v3482 = vsub.s32 %v3479, %v3481
  %v3483 = vrot.slane %v3348, %v3482
  %v3485 = vunpack.c.l.s4 1983009808
  %v3486 = vunpack.c.0.s8 %v3485
  %v3487 = vlaneseq
  %v3488 = vshrl.u32 %v3487, 7
  %v3489 = vsub.s32 %v3486, %v3488
  %v3490 = vrot.slane %v3476, %v3489
  %v3491 = vcombine.high %v3483, %v3483
  %v3492 = vcombine.high %v3490, %v3490
  %v3493 = vcombine.high %v3349, %v3349
  %v3495 = vunpack.c.l.s4 1983009808
  %v3496 = vunpack.c.0.s8 %v3495
  %v3497 = vlaneseq
  %v3498 = vshrl.u32 %v3497, 7
  %v3499 = vsub.s32 %v3496, %v3498
  %v3500 = vrot.slane %v3349, %v3499
  %v3502 = vunpack.c.l.s4 1983009808
  %v3503 = vunpack.c.0.s8 %v3502
  %v3504 = vlaneseq
  %v3505 = vshrl.u32 %v3504, 7
  %v3506 = vsub.s32 %v3503, %v3505
  %v3507 = vrot.slane %v3493, %v3506
  %v3508 = vcombine.high %v3500, %v3500
  %v3509 = vcombine.high %v3507, %v3507
  %v3510 = vcombine.high %v3350, %v3350
  %v3512 = vunpack.c.l.s4 1983009808
  %v3513 = vunpack.c.0.s8 %v3512
  %v3514 = vlaneseq
  %v3515 = vshrl.u32 %v3514, 7
  %v3516 = vsub.s32 %v3513, %v3515
  %v3517 = vrot.slane %v3350, %v3516
  %v3519 = vunpack.c.l.s4 1983009808
  %v3520 = vunpack.c.0.s8 %v3519
  %v3521 = vlaneseq
  %v3522 = vshrl.u32 %v3521, 7
  %v3523 = vsub.s32 %v3520, %v3522
  %v3524 = vrot.slane %v3510, %v3523
  %v3525 = vcombine.high %v3517, %v3517
  %v3526 = vcombine.high %v3524, %v3524
  %v3527 = vcombine.high %v3351, %v3351
  %v3529 = vunpack.c.l.s4 1983009808
  %v3530 = vunpack.c.0.s8 %v3529
  %v3531 = vlaneseq
  %v3532 = vshrl.u32 %v3531, 7
  %v3533 = vsub.s32 %v3530, %v3532
  %v3534 = vrot.slane %v3351, %v3533
  %v3536 = vunpack.c.l.s4 1983009808
  %v3537 = vunpack.c.0.s8 %v3536
  %v3538 = vlaneseq
  %v3539 = vshrl.u32 %v3538, 7
  %v3540 = vsub.s32 %v3537, %v3539
  %v3541 = vrot.slane %v3527, %v3540
  %v3542 = vcombine.high %v3534, %v3534
  %v3543 = vcombine.high %v3541, %v3541
  %v3544 = vcombine.high %v3352, %v3352
  %v3546 = vunpack.c.l.s4 1983009808
  %v3547 = vunpack.c.0.s8 %v3546
  %v3548 = vlaneseq
  %v3549 = vshrl.u32 %v3548, 7
  %v3550 = vsub.s32 %v3547, %v3549
  %v3551 = vrot.slane %v3352, %v3550
  %v3553 = vunpack.c.l.s4 1983009808
  %v3554 = vunpack.c.0.s8 %v3553
  %v3555 = vlaneseq
  %v3556 = vshrl.u32 %v3555, 7
  %v3557 = vsub.s32 %v3554, %v3556
  %v3558 = vrot.slane %v3544, %v3557
  %v3559 = vcombine.high %v3551, %v3551
  %v3560 = vcombine.high %v3558, %v3558
  %v3561 = vcombine.high %v3353, %v3353
  %v3563 = vunpack.c.l.s4 1983009808
  %v3564 = vunpack.c.0.s8 %v3563
  %v3565 = vlaneseq
  %v3566 = vshrl.u32 %v3565, 7
  %v3567 = vsub.s32 %v3564, %v3566
  %v3568 = vrot.slane %v3353, %v3567
  %v3570 = vunpack.c.l.s4 1983009808
  %v3571 = vunpack.c.0.s8 %v3570
  %v3572 = vlaneseq
  %v3573 = vshrl.u32 %v3572, 7
  %v3574 = vsub.s32 %v3571, %v3573
  %v3575 = vrot.slane %v3561, %v3574
  %v3576 = vcombine.high %v3568, %v3568
  %v3577 = vcombine.high %v3575, %v3575
  %v3578 = vcombine.high %v3354, %v3354
  %v3580 = vunpack.c.l.s4 1983009808
  %v3581 = vunpack.c.0.s8 %v3580
  %v3582 = vlaneseq
  %v3583 = vshrl.u32 %v3582, 7
  %v3584 = vsub.s32 %v3581, %v3583
  %v3585 = vrot.slane %v3354, %v3584
  %v3587 = vunpack.c.l.s4 1983009808
  %v3588 = vunpack.c.0.s8 %v3587
  %v3589 = vlaneseq
  %v3590 = vshrl.u32 %v3589, 7
  %v3591 = vsub.s32 %v3588, %v3590
  %v3592 = vrot.slane %v3578, %v3591
  %v3593 = vcombine.high %v3585, %v3585
  %v3594 = vcombine.high %v3592, %v3592
  %v3595 = vcombine.high %v3355, %v3355
  %v3597 = vunpack.c.l.s4 1983009808
  %v3598 = vunpack.c.0.s8 %v3597
  %v3599 = vlaneseq
  %v3600 = vshrl.u32 %v3599, 7
  %v3601 = vsub.s32 %v3598, %v3600
  %v3602 = vrot.slane %v3355, %v3601
  %v3604 = vunpack.c.l.s4 1983009808
  %v3605 = vunpack.c.0.s8 %v3604
  %v3606 = vlaneseq
  %v3607 = vshrl.u32 %v3606, 7
  %v3608 = vsub.s32 %v3605, %v3607
  %v3609 = vrot.slane %v3595, %v3608
  %v3610 = vcombine.high %v3602, %v3602
  %v3611 = vcombine.high %v3609, %v3609
  %v3612 = vcombine.high %v3356, %v3356
  %v3614 = vunpack.c.l.s4 1983009808
  %v3615 = vunpack.c.0.s8 %v3614
  %v3616 = vlaneseq
  %v3617 = vshrl.u32 %v3616, 7
  %v3618 = vsub.s32 %v3615, %v3617
  %v3619 = vrot.slane %v3356, %v3618
  %v3621 = vunpack.c.l.s4 1983009808
  %v3622 = vunpack.c.0.s8 %v3621
  %v3623 = vlaneseq
  %v3624 = vshrl.u32 %v3623, 7
  %v3625 = vsub.s32 %v3622, %v3624
  %v3626 = vrot.slane %v3612, %v3625
  %v3627 = vcombine.high %v3619, %v3619
  %v3628 = vcombine.high %v3626, %v3626
  %v3629 = vcombine.high %v3357, %v3357
  %v3631 = vunpack.c.l.s4 1983009808
  %v3632 = vunpack.c.0.s8 %v3631
  %v3633 = vlaneseq
  %v3634 = vshrl.u32 %v3633, 7
  %v3635 = vsub.s32 %v3632, %v3634
  %v3636 = vrot.slane %v3357, %v3635
  %v3638 = vunpack.c.l.s4 1983009808
  %v3639 = vunpack.c.0.s8 %v3638
  %v3640 = vlaneseq
  %v3641 = vshrl.u32 %v3640, 7
  %v3642 = vsub.s32 %v3639, %v3641
  %v3643 = vrot.slane %v3629, %v3642
  %v3644 = vcombine.high %v3636, %v3636
  %v3645 = vcombine.high %v3643, %v3643
  %v3646 = vcombine.high %v3358, %v3358
  %v3648 = vunpack.c.l.s4 1983009808
  %v3649 = vunpack.c.0.s8 %v3648
  %v3650 = vlaneseq
  %v3651 = vshrl.u32 %v3650, 7
  %v3652 = vsub.s32 %v3649, %v3651
  %v3653 = vrot.slane %v3358, %v3652
  %v3655 = vunpack.c.l.s4 1983009808
  %v3656 = vunpack.c.0.s8 %v3655
  %v3657 = vlaneseq
  %v3658 = vshrl.u32 %v3657, 7
  %v3659 = vsub.s32 %v3656, %v3658
  %v3660 = vrot.slane %v3646, %v3659
  %v3661 = vcombine.high %v3653, %v3653
  %v3662 = vcombine.high %v3660, %v3660
  %v3663 = vcombine.high %v3359, %v3359
  %v3665 = vunpack.c.l.s4 1983009808
  %v3666 = vunpack.c.0.s8 %v3665
  %v3667 = vlaneseq
  %v3668 = vshrl.u32 %v3667, 7
  %v3669 = vsub.s32 %v3666, %v3668
  %v3670 = vrot.slane %v3359, %v3669
  %v3672 = vunpack.c.l.s4 1983009808
  %v3673 = vunpack.c.0.s8 %v3672
  %v3674 = vlaneseq
  %v3675 = vshrl.u32 %v3674, 7
  %v3676 = vsub.s32 %v3673, %v3675
  %v3677 = vrot.slane %v3663, %v3676
  %v3678 = vcombine.high %v3670, %v3670
  %v3679 = vcombine.high %v3677, %v3677
  %v3680 = vcombine.high %v3360, %v3360
  %v3682 = vunpack.c.l.s4 1983009808
  %v3683 = vunpack.c.0.s8 %v3682
  %v3684 = vlaneseq
  %v3685 = vshrl.u32 %v3684, 7
  %v3686 = vsub.s32 %v3683, %v3685
  %v3687 = vrot.slane %v3360, %v3686
  %v3689 = vunpack.c.l.s4 1983009808
  %v3690 = vunpack.c.0.s8 %v3689
  %v3691 = vlaneseq
  %v3692 = vshrl.u32 %v3691, 7
  %v3693 = vsub.s32 %v3690, %v3692
  %v3694 = vrot.slane %v3680, %v3693
  %v3695 = vcombine.high %v3687, %v3687
  %v3696 = vcombine.high %v3694, %v3694
  %v3697 = vcombine.high %v3361, %v3361
  %v3699 = vunpack.c.l.s4 1983009808
  %v3700 = vunpack.c.0.s8 %v3699
  %v3701 = vlaneseq
  %v3702 = vshrl.u32 %v3701, 7
  %v3703 = vsub.s32 %v3700, %v3702
  %v3704 = vrot.slane %v3361, %v3703
  %v3706 = vunpack.c.l.s4 1983009808
  %v3707 = vunpack.c.0.s8 %v3706
  %v3708 = vlaneseq
  %v3709 = vshrl.u32 %v3708, 7
  %v3710 = vsub.s32 %v3707, %v3709
  %v3711 = vrot.slane %v3697, %v3710
  %v3712 = vcombine.high %v3704, %v3704
  %v3713 = vcombine.high %v3711, %v3711
  %v3714 = vcombine.high %v3362, %v3362
  %v3716 = vunpack.c.l.s4 1983009808
  %v3717 = vunpack.c.0.s8 %v3716
  %v3718 = vlaneseq
  %v3719 = vshrl.u32 %v3718, 7
  %v3720 = vsub.s32 %v3717, %v3719
  %v3721 = vrot.slane %v3362, %v3720
  %v3723 = vunpack.c.l.s4 1983009808
  %v3724 = vunpack.c.0.s8 %v3723
  %v3725 = vlaneseq
  %v3726 = vshrl.u32 %v3725, 7
  %v3727 = vsub.s32 %v3724, %v3726
  %v3728 = vrot.slane %v3714, %v3727
  %v3729 = vcombine.high %v3721, %v3721
  %v3730 = vcombine.high %v3728, %v3728
  %v3731 = vcombine.high %v3363, %v3363
  %v3733 = vunpack.c.l.s4 1983009808
  %v3734 = vunpack.c.0.s8 %v3733
  %v3735 = vlaneseq
  %v3736 = vshrl.u32 %v3735, 7
  %v3737 = vsub.s32 %v3734, %v3736
  %v3738 = vrot.slane %v3363, %v3737
  %v3740 = vunpack.c.l.s4 1983009808
  %v3741 = vunpack.c.0.s8 %v3740
  %v3742 = vlaneseq
  %v3743 = vshrl.u32 %v3742, 7
  %v3744 = vsub.s32 %v3741, %v3743
  %v3745 = vrot.slane %v3731, %v3744
  %v3746 = vcombine.high %v3738, %v3738
  %v3747 = vcombine.high %v3745, %v3745
  %v3748 = vcombine.high %v3364, %v3364
  %v3750 = vunpack.c.l.s4 1983009808
  %v3751 = vunpack.c.0.s8 %v3750
  %v3752 = vlaneseq
  %v3753 = vshrl.u32 %v3752, 7
  %v3754 = vsub.s32 %v3751, %v3753
  %v3755 = vrot.slane %v3364, %v3754
  %v3757 = vunpack.c.l.s4 1983009808
  %v3758 = vunpack.c.0.s8 %v3757
  %v3759 = vlaneseq
  %v3760 = vshrl.u32 %v3759, 7
  %v3761 = vsub.s32 %v3758, %v3760
  %v3762 = vrot.slane %v3748, %v3761
  %v3763 = vcombine.high %v3755, %v3755
  %v3764 = vcombine.high %v3762, %v3762
  %v3765 = vcombine.high %v3365, %v3365
  %v3767 = vunpack.c.l.s4 1983009808
  %v3768 = vunpack.c.0.s8 %v3767
  %v3769 = vlaneseq
  %v3770 = vshrl.u32 %v3769, 7
  %v3771 = vsub.s32 %v3768, %v3770
  %v3772 = vrot.slane %v3365, %v3771
  %v3774 = vunpack.c.l.s4 1983009808
  %v3775 = vunpack.c.0.s8 %v3774
  %v3776 = vlaneseq
  %v3777 = vshrl.u32 %v3776, 7
  %v3778 = vsub.s32 %v3775, %v3777
  %v3779 = vrot.slane %v3765, %v3778
  %v3780 = vcombine.high %v3772, %v3772
  %v3781 = vcombine.high %v3779, %v3779
  %v3782 = vcombine.high %v3366, %v3366
  %v3784 = vunpack.c.l.s4 1983009808
  %v3785 = vunpack.c.0.s8 %v3784
  %v3786 = vlaneseq
  %v3787 = vshrl.u32 %v3786, 7
  %v3788 = vsub.s32 %v3785, %v3787
  %v3789 = vrot.slane %v3366, %v3788
  %v3791 = vunpack.c.l.s4 1983009808
  %v3792 = vunpack.c.0.s8 %v3791
  %v3793 = vlaneseq
  %v3794 = vshrl.u32 %v3793, 7
  %v3795 = vsub.s32 %v3792, %v3794
  %v3796 = vrot.slane %v3782, %v3795
  %v3797 = vcombine.high %v3789, %v3789
  %v3798 = vcombine.high %v3796, %v3796
  %v3799 = vcombine.high %v3367, %v3367
  %v3801 = vunpack.c.l.s4 1983009808
  %v3802 = vunpack.c.0.s8 %v3801
  %v3803 = vlaneseq
  %v3804 = vshrl.u32 %v3803, 7
  %v3805 = vsub.s32 %v3802, %v3804
  %v3806 = vrot.slane %v3367, %v3805
  %v3808 = vunpack.c.l.s4 1983009808
  %v3809 = vunpack.c.0.s8 %v3808
  %v3810 = vlaneseq
  %v3811 = vshrl.u32 %v3810, 7
  %v3812 = vsub.s32 %v3809, %v3811
  %v3813 = vrot.slane %v3799, %v3812
  %v3814 = vcombine.high %v3806, %v3806
  %v3815 = vcombine.high %v3813, %v3813
  %v3816 = vcombine.high %v3368, %v3368
  %v3818 = vunpack.c.l.s4 1983009808
  %v3819 = vunpack.c.0.s8 %v3818
  %v3820 = vlaneseq
  %v3821 = vshrl.u32 %v3820, 7
  %v3822 = vsub.s32 %v3819, %v3821
  %v3823 = vrot.slane %v3368, %v3822
  %v3825 = vunpack.c.l.s4 1983009808
  %v3826 = vunpack.c.0.s8 %v3825
  %v3827 = vlaneseq
  %v3828 = vshrl.u32 %v3827, 7
  %v3829 = vsub.s32 %v3826, %v3828
  %v3830 = vrot.slane %v3816, %v3829
  %v3831 = vcombine.high %v3823, %v3823
  %v3832 = vcombine.high %v3830, %v3830
  %v3833 = vcombine.high %v3369, %v3369
  %v3835 = vunpack.c.l.s4 1983009808
  %v3836 = vunpack.c.0.s8 %v3835
  %v3837 = vlaneseq
  %v3838 = vshrl.u32 %v3837, 7
  %v3839 = vsub.s32 %v3836, %v3838
  %v3840 = vrot.slane %v3369, %v3839
  %v3842 = vunpack.c.l.s4 1983009808
  %v3843 = vunpack.c.0.s8 %v3842
  %v3844 = vlaneseq
  %v3845 = vshrl.u32 %v3844, 7
  %v3846 = vsub.s32 %v3843, %v3845
  %v3847 = vrot.slane %v3833, %v3846
  %v3848 = vcombine.high %v3840, %v3840
  %v3849 = vcombine.high %v3847, %v3847
  %v3850 = vcombine.high %v3370, %v3370
  %v3852 = vunpack.c.l.s4 1983009808
  %v3853 = vunpack.c.0.s8 %v3852
  %v3854 = vlaneseq
  %v3855 = vshrl.u32 %v3854, 7
  %v3856 = vsub.s32 %v3853, %v3855
  %v3857 = vrot.slane %v3370, %v3856
  %v3859 = vunpack.c.l.s4 1983009808
  %v3860 = vunpack.c.0.s8 %v3859
  %v3861 = vlaneseq
  %v3862 = vshrl.u32 %v3861, 7
  %v3863 = vsub.s32 %v3860, %v3862
  %v3864 = vrot.slane %v3850, %v3863
  %v3865 = vcombine.high %v3857, %v3857
  %v3866 = vcombine.high %v3864, %v3864
  %v3867 = vcombine.high %v3371, %v3371
  %v3869 = vunpack.c.l.s4 1983009808
  %v3870 = vunpack.c.0.s8 %v3869
  %v3871 = vlaneseq
  %v3872 = vshrl.u32 %v3871, 7
  %v3873 = vsub.s32 %v3870, %v3872
  %v3874 = vrot.slane %v3371, %v3873
  %v3876 = vunpack.c.l.s4 1983009808
  %v3877 = vunpack.c.0.s8 %v3876
  %v3878 = vlaneseq
  %v3879 = vshrl.u32 %v3878, 7
  %v3880 = vsub.s32 %v3877, %v3879
  %v3881 = vrot.slane %v3867, %v3880
  %v3882 = vcombine.high %v3874, %v3874
  %v3883 = vcombine.high %v3881, %v3881
  %v3884 = vcombine.high %v3372, %v3372
  %v3886 = vunpack.c.l.s4 1983009808
  %v3887 = vunpack.c.0.s8 %v3886
  %v3888 = vlaneseq
  %v3889 = vshrl.u32 %v3888, 7
  %v3890 = vsub.s32 %v3887, %v3889
  %v3891 = vrot.slane %v3372, %v3890
  %v3893 = vunpack.c.l.s4 1983009808
  %v3894 = vunpack.c.0.s8 %v3893
  %v3895 = vlaneseq
  %v3896 = vshrl.u32 %v3895, 7
  %v3897 = vsub.s32 %v3894, %v3896
  %v3898 = vrot.slane %v3884, %v3897
  %v3899 = vcombine.high %v3891, %v3891
  %v3900 = vcombine.high %v3898, %v3898
  %v3901 = vcombine.high %v3373, %v3373
  %v3903 = vunpack.c.l.s4 1983009808
  %v3904 = vunpack.c.0.s8 %v3903
  %v3905 = vlaneseq
  %v3906 = vshrl.u32 %v3905, 7
  %v3907 = vsub.s32 %v3904, %v3906
  %v3908 = vrot.slane %v3373, %v3907
  %v3910 = vunpack.c.l.s4 1983009808
  %v3911 = vunpack.c.0.s8 %v3910
  %v3912 = vlaneseq
  %v3913 = vshrl.u32 %v3912, 7
  %v3914 = vsub.s32 %v3911, %v3913
  %v3915 = vrot.slane %v3901, %v3914
  %v3916 = vcombine.high %v3908, %v3908
  %v3917 = vcombine.high %v3915, %v3915
  %v3918 = vcombine.high %v3374, %v3374
  %v3920 = vunpack.c.l.s4 1983009808
  %v3921 = vunpack.c.0.s8 %v3920
  %v3922 = vlaneseq
  %v3923 = vshrl.u32 %v3922, 7
  %v3924 = vsub.s32 %v3921, %v3923
  %v3925 = vrot.slane %v3374, %v3924
  %v3927 = vunpack.c.l.s4 1983009808
  %v3928 = vunpack.c.0.s8 %v3927
  %v3929 = vlaneseq
  %v3930 = vshrl.u32 %v3929, 7
  %v3931 = vsub.s32 %v3928, %v3930
  %v3932 = vrot.slane %v3918, %v3931
  %v3933 = vcombine.high %v3925, %v3925
  %v3934 = vcombine.high %v3932, %v3932
  %v3935 = vcombine.high %v3375, %v3375
  %v3937 = vunpack.c.l.s4 1983009808
  %v3938 = vunpack.c.0.s8 %v3937
  %v3939 = vlaneseq
  %v3940 = vshrl.u32 %v3939, 7
  %v3941 = vsub.s32 %v3938, %v3940
  %v3942 = vrot.slane %v3375, %v3941
  %v3944 = vunpack.c.l.s4 1983009808
  %v3945 = vunpack.c.0.s8 %v3944
  %v3946 = vlaneseq
  %v3947 = vshrl.u32 %v3946, 7
  %v3948 = vsub.s32 %v3945, %v3947
  %v3949 = vrot.slane %v3935, %v3948
  %v3950 = vcombine.high %v3942, %v3942
  %v3951 = vcombine.high %v3949, %v3949
  %v4080 = vrot.slane %v3415, 7
  %v4081 = vrot.slane %v4080, 2
  %v4082 = vrot.slane %v3423, 7
  %v4083 = vrot.slane %v4082, 2
  %v4084 = vrot.slane %v3422, 7
  %v4085 = vrot.slane %v4084, 2
  %v4086 = vrot.slane %v3424, 7
  %v4087 = vrot.slane %v4086, 2
  %v4088 = vrot.slane %v3432, 7
  %v4089 = vrot.slane %v4088, 2
  %v4090 = vrot.slane %v3440, 7
  %v4091 = vrot.slane %v4090, 2
  %v4092 = vrot.slane %v3439, 7
  %v4093 = vrot.slane %v4092, 2
  %v4094 = vrot.slane %v3441, 7
  %v4095 = vrot.slane %v4094, 2
  %v4096 = vrot.slane %v3449, 7
  %v4097 = vrot.slane %v4096, 2
  %v4098 = vrot.slane %v3457, 7
  %v4099 = vrot.slane %v4098, 2
  %v4100 = vrot.slane %v3456, 7
  %v4101 = vrot.slane %v4100, 2
  %v4102 = vrot.slane %v3458, 7
  %v4103 = vrot.slane %v4102, 2
  %v4104 = vrot.slane %v3466, 7
  %v4105 = vrot.slane %v4104, 2
  %v4106 = vrot.slane %v3474, 7
  %v4107 = vrot.slane %v4106, 2
  %v4108 = vrot.slane %v3473, 7
  %v4109 = vrot.slane %v4108, 2
  %v4110 = vrot.slane %v3475, 7
  %v4111 = vrot.slane %v4110, 2
  %v4112 = vrot.slane %v3483, 7
  %v4113 = vrot.slane %v4112, 2
  %v4114 = vrot.slane %v3491, 7
  %v4115 = vrot.slane %v4114, 2
  %v4116 = vrot.slane %v3490, 7
  %v4117 = vrot.slane %v4116, 2
  %v4118 = vrot.slane %v3492, 7
  %v4119 = vrot.slane %v4118, 2
  %v4120 = vrot.slane %v3500, 7
  %v4121 = vrot.slane %v4120, 2
  %v4122 = vrot.slane %v3508, 7
  %v4123 = vrot.slane %v4122, 2
  %v4124 = vrot.slane %v3507, 7
  %v4125 = vrot.slane %v4124, 2
  %v4126 = vrot.slane %v3509, 7
  %v4127 = vrot.slane %v4126, 2
  %v4128 = vrot.slane %v3517, 7
  %v4129 = vrot.slane %v4128, 2
  %v4130 = vrot.slane %v3525, 7
  %v4131 = vrot.slane %v4130, 2
  %v4132 = vrot.slane %v3524, 7
  %v4133 = vrot.slane %v4132, 2
  %v4134 = vrot.slane %v3526, 7
  %v4135 = vrot.slane %v4134, 2
  %v4136 = vrot.slane %v3534, 7
  %v4137 = vrot.slane %v4136, 2
  %v4138 = vrot.slane %v3542, 7
  %v4139 = vrot.slane %v4138, 2
  %v4140 = vrot.slane %v3541, 7
  %v4141 = vrot.slane %v4140, 2
  %v4142 = vrot.slane %v3543, 7
  %v4143 = vrot.slane %v4142, 2
  %v4144 = vrot.slane %v3551, 7
  %v4145 = vrot.slane %v4144, 2
  %v4146 = vrot.slane %v3559, 7
  %v4147 = vrot.slane %v4146, 2
  %v4148 = vrot.slane %v3558, 7
  %v4149 = vrot.slane %v4148, 2
  %v4150 = vrot.slane %v3560, 7
  %v4151 = vrot.slane %v4150, 2
  %v4152 = vrot.slane %v3568, 7
  %v4153 = vrot.slane %v4152, 2
  %v4154 = vrot.slane %v3576, 7
  %v4155 = vrot.slane %v4154, 2
  %v4156 = vrot.slane %v3575, 7
  %v4157 = vrot.slane %v4156, 2
  %v4158 = vrot.slane %v3577, 7
  %v4159 = vrot.slane %v4158, 2
  %v4160 = vrot.slane %v3585, 7
  %v4161 = vrot.slane %v4160, 2
  %v4162 = vrot.slane %v3593, 7
  %v4163 = vrot.slane %v4162, 2
  %v4164 = vrot.slane %v3592, 7
  %v4165 = vrot.slane %v4164, 2
  %v4166 = vrot.slane %v3594, 7
  %v4167 = vrot.slane %v4166, 2
  %v4168 = vrot.slane %v3602, 7
  %v4169 = vrot.slane %v4168, 2
  %v4170 = vrot.slane %v3610, 7
  %v4171 = vrot.slane %v4170, 2
  %v4172 = vrot.slane %v3609, 7
  %v4173 = vrot.slane %v4172, 2
  %v4174 = vrot.slane %v3611, 7
  %v4175 = vrot.slane %v4174, 2
  %v4176 = vrot.slane %v3619, 7
  %v4177 = vrot.slane %v4176, 2
  %v4178 = vrot.slane %v3627, 7
  %v4179 = vrot.slane %v4178, 2
  %v4180 = vrot.slane %v3626, 7
  %v4181 = vrot.slane %v4180, 2
  %v4182 = vrot.slane %v3628, 7
  %v4183 = vrot.slane %v4182, 2
  %v4184 = vrot.slane %v3636, 7
  %v4185 = vrot.slane %v4184, 2
  %v4186 = vrot.slane %v3644, 7
  %v4187 = vrot.slane %v4186, 2
  %v4188 = vrot.slane %v3643, 7
  %v4189 = vrot.slane %v4188, 2
  %v4190 = vrot.slane %v3645, 7
  %v4191 = vrot.slane %v4190, 2
  %v4192 = vrot.slane %v3653, 7
  %v4193 = vrot.slane %v4192, 2
  %v4194 = vrot.slane %v3661, 7
  %v4195 = vrot.slane %v4194, 2
  %v4196 = vrot.slane %v3660, 7
  %v4197 = vrot.slane %v4196, 2
  %v4198 = vrot.slane %v3662, 7
  %v4199 = vrot.slane %v4198, 2
  %v4200 = vrot.slane %v3670, 7
  %v4201 = vrot.slane %v4200, 2
  %v4202 = vrot.slane %v3678, 7
  %v4203 = vrot.slane %v4202, 2
  %v4204 = vrot.slane %v3677, 7
  %v4205 = vrot.slane %v4204, 2
  %v4206 = vrot.slane %v3679, 7
  %v4207 = vrot.slane %v4206, 2
  %v4208 = vrot.slane %v3687, 7
  %v4209 = vrot.slane %v4208, 2
  %v4210 = vrot.slane %v3695, 7
  %v4211 = vrot.slane %v4210, 2
  %v4212 = vrot.slane %v3694, 7
  %v4213 = vrot.slane %v4212, 2
  %v4214 = vrot.slane %v3696, 7
  %v4215 = vrot.slane %v4214, 2
  %v4216 = vrot.slane %v3704, 7
  %v4217 = vrot.slane %v4216, 2
  %v4218 = vrot.slane %v3712, 7
  %v4219 = vrot.slane %v4218, 2
  %v4220 = vrot.slane %v3711, 7
  %v4221 = vrot.slane %v4220, 2
  %v4222 = vrot.slane %v3713, 7
  %v4223 = vrot.slane %v4222, 2
  %v4224 = vrot.slane %v3721, 7
  %v4225 = vrot.slane %v4224, 2
  %v4226 = vrot.slane %v3729, 7
  %v4227 = vrot.slane %v4226, 2
  %v4228 = vrot.slane %v3728, 7
  %v4229 = vrot.slane %v4228, 2
  %v4230 = vrot.slane %v3730, 7
  %v4231 = vrot.slane %v4230, 2
  %v4232 = vrot.slane %v3738, 7
  %v4233 = vrot.slane %v4232, 2
  %v4234 = vrot.slane %v3746, 7
  %v4235 = vrot.slane %v4234, 2
  %v4236 = vrot.slane %v3745, 7
  %v4237 = vrot.slane %v4236, 2
  %v4238 = vrot.slane %v3747, 7
  %v4239 = vrot.slane %v4238, 2
  %v4240 = vrot.slane %v3755, 7
  %v4241 = vrot.slane %v4240, 2
  %v4242 = vrot.slane %v3763, 7
  %v4243 = vrot.slane %v4242, 2
  %v4244 = vrot.slane %v3762, 7
  %v4245 = vrot.slane %v4244, 2
  %v4246 = vrot.slane %v3764, 7
  %v4247 = vrot.slane %v4246, 2
  %v4248 = vrot.slane %v3772, 7
  %v4249 = vrot.slane %v4248, 2
  %v4250 = vrot.slane %v3780, 7
  %v4251 = vrot.slane %v4250, 2
  %v4252 = vrot.slane %v3779, 7
  %v4253 = vrot.slane %v4252, 2
  %v4254 = vrot.slane %v3781, 7
  %v4255 = vrot.slane %v4254, 2
  %v4256 = vrot.slane %v3789, 7
  %v4257 = vrot.slane %v4256, 2
  %v4258 = vrot.slane %v3797, 7
  %v4259 = vrot.slane %v4258, 2
  %v4260 = vrot.slane %v3796, 7
  %v4261 = vrot.slane %v4260, 2
  %v4262 = vrot.slane %v3798, 7
  %v4263 = vrot.slane %v4262, 2
  %v4264 = vrot.slane %v3806, 7
  %v4265 = vrot.slane %v4264, 2
  %v4266 = vrot.slane %v3814, 7
  %v4267 = vrot.slane %v4266, 2
  %v4268 = vrot.slane %v3813, 7
  %v4269 = vrot.slane %v4268, 2
  %v4270 = vrot.slane %v3815, 7
  %v4271 = vrot.slane %v4270, 2
  %v4272 = vrot.slane %v3823, 7
  %v4273 = vrot.slane %v4272, 2
  %v4274 = vrot.slane %v3831, 7
  %v4275 = vrot.slane %v4274, 2
  %v4276 = vrot.slane %v3830, 7
  %v4277 = vrot.slane %v4276, 2
  %v4278 = vrot.slane %v3832, 7
  %v4279 = vrot.slane %v4278, 2
  %v4280 = vrot.slane %v3840, 7
  %v4281 = vrot.slane %v4280, 2
  %v4282 = vrot.slane %v3848, 7
  %v4283 = vrot.slane %v4282, 2
  %v4284 = vrot.slane %v3847, 7
  %v4285 = vrot.slane %v4284, 2
  %v4286 = vrot.slane %v3849, 7
  %v4287 = vrot.slane %v4286, 2
  %v4288 = vrot.slane %v3857, 7
  %v4289 = vrot.slane %v4288, 2
  %v4290 = vrot.slane %v3865, 7
  %v4291 = vrot.slane %v4290, 2
  %v4292 = vrot.slane %v3864, 7
  %v4293 = vrot.slane %v4292, 2
  %v4294 = vrot.slane %v3866, 7
  %v4295 = vrot.slane %v4294, 2
  %v4296 = vrot.slane %v3874, 7
  %v4297 = vrot.slane %v4296, 2
  %v4298 = vrot.slane %v3882, 7
  %v4299 = vrot.slane %v4298, 2
  %v4300 = vrot.slane %v3881, 7
  %v4301 = vrot.slane %v4300, 2
  %v4302 = vrot.slane %v3883, 7
  %v4303 = vrot.slane %v4302, 2
  %v4304 = vrot.slane %v3891, 7
  %v4305 = vrot.slane %v4304, 2
  %v4306 = vrot.slane %v3899, 7
  %v4307 = vrot.slane %v4306, 2
  %v4308 = vrot.slane %v3898, 7
  %v4309 = vrot.slane %v4308, 2
  %v4310 = vrot.slane %v3900, 7
  %v4311 = vrot.slane %v4310, 2
  %v4312 = vrot.slane %v3908, 7
  %v4313 = vrot.slane %v4312, 2
  %v4314 = vrot.slane %v3916, 7
  %v4315 = vrot.slane %v4314, 2
  %v4316 = vrot.slane %v3915, 7
  %v4317 = vrot.slane %v4316, 2
  %v4318 = vrot.slane %v3917, 7
  %v4319 = vrot.slane %v4318, 2
  %v4320 = vrot.slane %v3925, 7
  %v4321 = vrot.slane %v4320, 2
  %v4322 = vrot.slane %v3933, 7
  %v4323 = vrot.slane %v4322, 2
  %v4324 = vrot.slane %v3932, 7
  %v4325 = vrot.slane %v4324, 2
  %v4326 = vrot.slane %v3934, 7
  %v4327 = vrot.slane %v4326, 2
  %v4328 = vrot.slane %v3942, 7
  %v4329 = vrot.slane %v4328, 2
  %v4330 = vrot.slane %v3950, 7
  %v4331 = vrot.slane %v4330, 2
  %v4332 = vrot.slane %v3949, 7
  %v4333 = vrot.slane %v4332, 2
  %v4334 = vrot.slane %v3951, 7
  %v4335 = vrot.slane %v4334, 2
  %v4464 = vmax.f32 %v3415, %v4081
  %v4465 = vmax.f32 %v3423, %v4083
  %v4466 = vmax.f32 %v3422, %v4085
  %v4467 = vmax.f32 %v3424, %v4087
  %v4468 = vmax.f32 %v3432, %v4089
  %v4469 = vmax.f32 %v3440, %v4091
  %v4470 = vmax.f32 %v3439, %v4093
  %v4471 = vmax.f32 %v3441, %v4095
  %v4472 = vmax.f32 %v3449, %v4097
  %v4473 = vmax.f32 %v3457, %v4099
  %v4474 = vmax.f32 %v3456, %v4101
  %v4475 = vmax.f32 %v3458, %v4103
  %v4476 = vmax.f32 %v3466, %v4105
  %v4477 = vmax.f32 %v3474, %v4107
  %v4478 = vmax.f32 %v3473, %v4109
  %v4479 = vmax.f32 %v3475, %v4111
  %v4480 = vmax.f32 %v3483, %v4113
  %v4481 = vmax.f32 %v3491, %v4115
  %v4482 = vmax.f32 %v3490, %v4117
  %v4483 = vmax.f32 %v3492, %v4119
  %v4484 = vmax.f32 %v3500, %v4121
  %v4485 = vmax.f32 %v3508, %v4123
  %v4486 = vmax.f32 %v3507, %v4125
  %v4487 = vmax.f32 %v3509, %v4127
  %v4488 = vmax.f32 %v3517, %v4129
  %v4489 = vmax.f32 %v3525, %v4131
  %v4490 = vmax.f32 %v3524, %v4133
  %v4491 = vmax.f32 %v3526, %v4135
  %v4492 = vmax.f32 %v3534, %v4137
  %v4493 = vmax.f32 %v3542, %v4139
  %v4494 = vmax.f32 %v3541, %v4141
  %v4495 = vmax.f32 %v3543, %v4143
  %v4496 = vmax.f32 %v3551, %v4145
  %v4497 = vmax.f32 %v3559, %v4147
  %v4498 = vmax.f32 %v3558, %v4149
  %v4499 = vmax.f32 %v3560, %v4151
  %v4500 = vmax.f32 %v3568, %v4153
  %v4501 = vmax.f32 %v3576, %v4155
  %v4502 = vmax.f32 %v3575, %v4157
  %v4503 = vmax.f32 %v3577, %v4159
  %v4504 = vmax.f32 %v3585, %v4161
  %v4505 = vmax.f32 %v3593, %v4163
  %v4506 = vmax.f32 %v3592, %v4165
  %v4507 = vmax.f32 %v3594, %v4167
  %v4508 = vmax.f32 %v3602, %v4169
  %v4509 = vmax.f32 %v3610, %v4171
  %v4510 = vmax.f32 %v3609, %v4173
  %v4511 = vmax.f32 %v3611, %v4175
  %v4512 = vmax.f32 %v3619, %v4177
  %v4513 = vmax.f32 %v3627, %v4179
  %v4514 = vmax.f32 %v3626, %v4181
  %v4515 = vmax.f32 %v3628, %v4183
  %v4516 = vmax.f32 %v3636, %v4185
  %v4517 = vmax.f32 %v3644, %v4187
  %v4518 = vmax.f32 %v3643, %v4189
  %v4519 = vmax.f32 %v3645, %v4191
  %v4520 = vmax.f32 %v3653, %v4193
  %v4521 = vmax.f32 %v3661, %v4195
  %v4522 = vmax.f32 %v3660, %v4197
  %v4523 = vmax.f32 %v3662, %v4199
  %v4524 = vmax.f32 %v3670, %v4201
  %v4525 = vmax.f32 %v3678, %v4203
  %v4526 = vmax.f32 %v3677, %v4205
  %v4527 = vmax.f32 %v3679, %v4207
  %v4528 = vmax.f32 %v3687, %v4209
  %v4529 = vmax.f32 %v3695, %v4211
  %v4530 = vmax.f32 %v3694, %v4213
  %v4531 = vmax.f32 %v3696, %v4215
  %v4532 = vmax.f32 %v3704, %v4217
  %v4533 = vmax.f32 %v3712, %v4219
  %v4534 = vmax.f32 %v3711, %v4221
  %v4535 = vmax.f32 %v3713, %v4223
  %v4536 = vmax.f32 %v3721, %v4225
  %v4537 = vmax.f32 %v3729, %v4227
  %v4538 = vmax.f32 %v3728, %v4229
  %v4539 = vmax.f32 %v3730, %v4231
  %v4540 = vmax.f32 %v3738, %v4233
  %v4541 = vmax.f32 %v3746, %v4235
  %v4542 = vmax.f32 %v3745, %v4237
  %v4543 = vmax.f32 %v3747, %v4239
  %v4544 = vmax.f32 %v3755, %v4241
  %v4545 = vmax.f32 %v3763, %v4243
  %v4546 = vmax.f32 %v3762, %v4245
  %v4547 = vmax.f32 %v3764, %v4247
  %v4548 = vmax.f32 %v3772, %v4249
  %v4549 = vmax.f32 %v3780, %v4251
  %v4550 = vmax.f32 %v3779, %v4253
  %v4551 = vmax.f32 %v3781, %v4255
  %v4552 = vmax.f32 %v3789, %v4257
  %v4553 = vmax.f32 %v3797, %v4259
  %v4554 = vmax.f32 %v3796, %v4261
  %v4555 = vmax.f32 %v3798, %v4263
  %v4556 = vmax.f32 %v3806, %v4265
  %v4557 = vmax.f32 %v3814, %v4267
  %v4558 = vmax.f32 %v3813, %v4269
  %v4559 = vmax.f32 %v3815, %v4271
  %v4560 = vmax.f32 %v3823, %v4273
  %v4561 = vmax.f32 %v3831, %v4275
  %v4562 = vmax.f32 %v3830, %v4277
  %v4563 = vmax.f32 %v3832, %v4279
  %v4564 = vmax.f32 %v3840, %v4281
  %v4565 = vmax.f32 %v3848, %v4283
  %v4566 = vmax.f32 %v3847, %v4285
  %v4567 = vmax.f32 %v3849, %v4287
  %v4568 = vmax.f32 %v3857, %v4289
  %v4569 = vmax.f32 %v3865, %v4291
  %v4570 = vmax.f32 %v3864, %v4293
  %v4571 = vmax.f32 %v3866, %v4295
  %v4572 = vmax.f32 %v3874, %v4297
  %v4573 = vmax.f32 %v3882, %v4299
  %v4574 = vmax.f32 %v3881, %v4301
  %v4575 = vmax.f32 %v3883, %v4303
  %v4576 = vmax.f32 %v3891, %v4305
  %v4577 = vmax.f32 %v3899, %v4307
  %v4578 = vmax.f32 %v3898, %v4309
  %v4579 = vmax.f32 %v3900, %v4311
  %v4580 = vmax.f32 %v3908, %v4313
  %v4581 = vmax.f32 %v3916, %v4315
  %v4582 = vmax.f32 %v3915, %v4317
  %v4583 = vmax.f32 %v3917, %v4319
  %v4584 = vmax.f32 %v3925, %v4321
  %v4585 = vmax.f32 %v3933, %v4323
  %v4586 = vmax.f32 %v3932, %v4325
  %v4587 = vmax.f32 %v3934, %v4327
  %v4588 = vmax.f32 %v3942, %v4329
  %v4589 = vmax.f32 %v3950, %v4331
  %v4590 = vmax.f32 %v3949, %v4333
  %v4591 = vmax.f32 %v3951, %v4335
  %v4720 = vlaneseq
  %v4721 = vshrl.u32 %v4720, 7
  %v4722 = vsub.s32 0, %v4721
  %v4723 = vrot.slane %v4464, %v4722
  %v4724 = vlaneseq
  %v4725 = vshrl.u32 %v4724, 7
  %v4726 = vsub.s32 0, %v4725
  %v4727 = vrot.slane %v4465, %v4726
  %v4728 = vlaneseq
  %v4729 = vshrl.u32 %v4728, 7
  %v4730 = vsub.s32 0, %v4729
  %v4731 = vrot.slane %v4466, %v4730
  %v4732 = vlaneseq
  %v4733 = vshrl.u32 %v4732, 7
  %v4734 = vsub.s32 0, %v4733
  %v4735 = vrot.slane %v4467, %v4734
  %v4736 = vlaneseq
  %v4737 = vshrl.u32 %v4736, 7
  %v4738 = vsub.s32 0, %v4737
  %v4739 = vrot.slane %v4468, %v4738
  %v4740 = vlaneseq
  %v4741 = vshrl.u32 %v4740, 7
  %v4742 = vsub.s32 0, %v4741
  %v4743 = vrot.slane %v4469, %v4742
  %v4744 = vlaneseq
  %v4745 = vshrl.u32 %v4744, 7
  %v4746 = vsub.s32 0, %v4745
  %v4747 = vrot.slane %v4470, %v4746
  %v4748 = vlaneseq
  %v4749 = vshrl.u32 %v4748, 7
  %v4750 = vsub.s32 0, %v4749
  %v4751 = vrot.slane %v4471, %v4750
  %v4752 = vlaneseq
  %v4753 = vshrl.u32 %v4752, 7
  %v4754 = vsub.s32 0, %v4753
  %v4755 = vrot.slane %v4472, %v4754
  %v4756 = vlaneseq
  %v4757 = vshrl.u32 %v4756, 7
  %v4758 = vsub.s32 0, %v4757
  %v4759 = vrot.slane %v4473, %v4758
  %v4760 = vlaneseq
  %v4761 = vshrl.u32 %v4760, 7
  %v4762 = vsub.s32 0, %v4761
  %v4763 = vrot.slane %v4474, %v4762
  %v4764 = vlaneseq
  %v4765 = vshrl.u32 %v4764, 7
  %v4766 = vsub.s32 0, %v4765
  %v4767 = vrot.slane %v4475, %v4766
  %v4768 = vlaneseq
  %v4769 = vshrl.u32 %v4768, 7
  %v4770 = vsub.s32 0, %v4769
  %v4771 = vrot.slane %v4476, %v4770
  %v4772 = vlaneseq
  %v4773 = vshrl.u32 %v4772, 7
  %v4774 = vsub.s32 0, %v4773
  %v4775 = vrot.slane %v4477, %v4774
  %v4776 = vlaneseq
  %v4777 = vshrl.u32 %v4776, 7
  %v4778 = vsub.s32 0, %v4777
  %v4779 = vrot.slane %v4478, %v4778
  %v4780 = vlaneseq
  %v4781 = vshrl.u32 %v4780, 7
  %v4782 = vsub.s32 0, %v4781
  %v4783 = vrot.slane %v4479, %v4782
  %v4784 = vlaneseq
  %v4785 = vshrl.u32 %v4784, 7
  %v4786 = vsub.s32 0, %v4785
  %v4787 = vrot.slane %v4480, %v4786
  %v4788 = vlaneseq
  %v4789 = vshrl.u32 %v4788, 7
  %v4790 = vsub.s32 0, %v4789
  %v4791 = vrot.slane %v4481, %v4790
  %v4792 = vlaneseq
  %v4793 = vshrl.u32 %v4792, 7
  %v4794 = vsub.s32 0, %v4793
  %v4795 = vrot.slane %v4482, %v4794
  %v4796 = vlaneseq
  %v4797 = vshrl.u32 %v4796, 7
  %v4798 = vsub.s32 0, %v4797
  %v4799 = vrot.slane %v4483, %v4798
  %v4800 = vlaneseq
  %v4801 = vshrl.u32 %v4800, 7
  %v4802 = vsub.s32 0, %v4801
  %v4803 = vrot.slane %v4484, %v4802
  %v4804 = vlaneseq
  %v4805 = vshrl.u32 %v4804, 7
  %v4806 = vsub.s32 0, %v4805
  %v4807 = vrot.slane %v4485, %v4806
  %v4808 = vlaneseq
  %v4809 = vshrl.u32 %v4808, 7
  %v4810 = vsub.s32 0, %v4809
  %v4811 = vrot.slane %v4486, %v4810
  %v4812 = vlaneseq
  %v4813 = vshrl.u32 %v4812, 7
  %v4814 = vsub.s32 0, %v4813
  %v4815 = vrot.slane %v4487, %v4814
  %v4816 = vlaneseq
  %v4817 = vshrl.u32 %v4816, 7
  %v4818 = vsub.s32 0, %v4817
  %v4819 = vrot.slane %v4488, %v4818
  %v4820 = vlaneseq
  %v4821 = vshrl.u32 %v4820, 7
  %v4822 = vsub.s32 0, %v4821
  %v4823 = vrot.slane %v4489, %v4822
  %v4824 = vlaneseq
  %v4825 = vshrl.u32 %v4824, 7
  %v4826 = vsub.s32 0, %v4825
  %v4827 = vrot.slane %v4490, %v4826
  %v4828 = vlaneseq
  %v4829 = vshrl.u32 %v4828, 7
  %v4830 = vsub.s32 0, %v4829
  %v4831 = vrot.slane %v4491, %v4830
  %v4832 = vlaneseq
  %v4833 = vshrl.u32 %v4832, 7
  %v4834 = vsub.s32 0, %v4833
  %v4835 = vrot.slane %v4492, %v4834
  %v4836 = vlaneseq
  %v4837 = vshrl.u32 %v4836, 7
  %v4838 = vsub.s32 0, %v4837
  %v4839 = vrot.slane %v4493, %v4838
  %v4840 = vlaneseq
  %v4841 = vshrl.u32 %v4840, 7
  %v4842 = vsub.s32 0, %v4841
  %v4843 = vrot.slane %v4494, %v4842
  %v4844 = vlaneseq
  %v4845 = vshrl.u32 %v4844, 7
  %v4846 = vsub.s32 0, %v4845
  %v4847 = vrot.slane %v4495, %v4846
  %v4848 = vlaneseq
  %v4849 = vshrl.u32 %v4848, 7
  %v4850 = vsub.s32 0, %v4849
  %v4851 = vrot.slane %v4496, %v4850
  %v4852 = vlaneseq
  %v4853 = vshrl.u32 %v4852, 7
  %v4854 = vsub.s32 0, %v4853
  %v4855 = vrot.slane %v4497, %v4854
  %v4856 = vlaneseq
  %v4857 = vshrl.u32 %v4856, 7
  %v4858 = vsub.s32 0, %v4857
  %v4859 = vrot.slane %v4498, %v4858
  %v4860 = vlaneseq
  %v4861 = vshrl.u32 %v4860, 7
  %v4862 = vsub.s32 0, %v4861
  %v4863 = vrot.slane %v4499, %v4862
  %v4864 = vlaneseq
  %v4865 = vshrl.u32 %v4864, 7
  %v4866 = vsub.s32 0, %v4865
  %v4867 = vrot.slane %v4500, %v4866
  %v4868 = vlaneseq
  %v4869 = vshrl.u32 %v4868, 7
  %v4870 = vsub.s32 0, %v4869
  %v4871 = vrot.slane %v4501, %v4870
  %v4872 = vlaneseq
  %v4873 = vshrl.u32 %v4872, 7
  %v4874 = vsub.s32 0, %v4873
  %v4875 = vrot.slane %v4502, %v4874
  %v4876 = vlaneseq
  %v4877 = vshrl.u32 %v4876, 7
  %v4878 = vsub.s32 0, %v4877
  %v4879 = vrot.slane %v4503, %v4878
  %v4880 = vlaneseq
  %v4881 = vshrl.u32 %v4880, 7
  %v4882 = vsub.s32 0, %v4881
  %v4883 = vrot.slane %v4504, %v4882
  %v4884 = vlaneseq
  %v4885 = vshrl.u32 %v4884, 7
  %v4886 = vsub.s32 0, %v4885
  %v4887 = vrot.slane %v4505, %v4886
  %v4888 = vlaneseq
  %v4889 = vshrl.u32 %v4888, 7
  %v4890 = vsub.s32 0, %v4889
  %v4891 = vrot.slane %v4506, %v4890
  %v4892 = vlaneseq
  %v4893 = vshrl.u32 %v4892, 7
  %v4894 = vsub.s32 0, %v4893
  %v4895 = vrot.slane %v4507, %v4894
  %v4896 = vlaneseq
  %v4897 = vshrl.u32 %v4896, 7
  %v4898 = vsub.s32 0, %v4897
  %v4899 = vrot.slane %v4508, %v4898
  %v4900 = vlaneseq
  %v4901 = vshrl.u32 %v4900, 7
  %v4902 = vsub.s32 0, %v4901
  %v4903 = vrot.slane %v4509, %v4902
  %v4904 = vlaneseq
  %v4905 = vshrl.u32 %v4904, 7
  %v4906 = vsub.s32 0, %v4905
  %v4907 = vrot.slane %v4510, %v4906
  %v4908 = vlaneseq
  %v4909 = vshrl.u32 %v4908, 7
  %v4910 = vsub.s32 0, %v4909
  %v4911 = vrot.slane %v4511, %v4910
  %v4912 = vlaneseq
  %v4913 = vshrl.u32 %v4912, 7
  %v4914 = vsub.s32 0, %v4913
  %v4915 = vrot.slane %v4512, %v4914
  %v4916 = vlaneseq
  %v4917 = vshrl.u32 %v4916, 7
  %v4918 = vsub.s32 0, %v4917
  %v4919 = vrot.slane %v4513, %v4918
  %v4920 = vlaneseq
  %v4921 = vshrl.u32 %v4920, 7
  %v4922 = vsub.s32 0, %v4921
  %v4923 = vrot.slane %v4514, %v4922
  %v4924 = vlaneseq
  %v4925 = vshrl.u32 %v4924, 7
  %v4926 = vsub.s32 0, %v4925
  %v4927 = vrot.slane %v4515, %v4926
  %v4928 = vlaneseq
  %v4929 = vshrl.u32 %v4928, 7
  %v4930 = vsub.s32 0, %v4929
  %v4931 = vrot.slane %v4516, %v4930
  %v4932 = vlaneseq
  %v4933 = vshrl.u32 %v4932, 7
  %v4934 = vsub.s32 0, %v4933
  %v4935 = vrot.slane %v4517, %v4934
  %v4936 = vlaneseq
  %v4937 = vshrl.u32 %v4936, 7
  %v4938 = vsub.s32 0, %v4937
  %v4939 = vrot.slane %v4518, %v4938
  %v4940 = vlaneseq
  %v4941 = vshrl.u32 %v4940, 7
  %v4942 = vsub.s32 0, %v4941
  %v4943 = vrot.slane %v4519, %v4942
  %v4944 = vlaneseq
  %v4945 = vshrl.u32 %v4944, 7
  %v4946 = vsub.s32 0, %v4945
  %v4947 = vrot.slane %v4520, %v4946
  %v4948 = vlaneseq
  %v4949 = vshrl.u32 %v4948, 7
  %v4950 = vsub.s32 0, %v4949
  %v4951 = vrot.slane %v4521, %v4950
  %v4952 = vlaneseq
  %v4953 = vshrl.u32 %v4952, 7
  %v4954 = vsub.s32 0, %v4953
  %v4955 = vrot.slane %v4522, %v4954
  %v4956 = vlaneseq
  %v4957 = vshrl.u32 %v4956, 7
  %v4958 = vsub.s32 0, %v4957
  %v4959 = vrot.slane %v4523, %v4958
  %v4960 = vlaneseq
  %v4961 = vshrl.u32 %v4960, 7
  %v4962 = vsub.s32 0, %v4961
  %v4963 = vrot.slane %v4524, %v4962
  %v4964 = vlaneseq
  %v4965 = vshrl.u32 %v4964, 7
  %v4966 = vsub.s32 0, %v4965
  %v4967 = vrot.slane %v4525, %v4966
  %v4968 = vlaneseq
  %v4969 = vshrl.u32 %v4968, 7
  %v4970 = vsub.s32 0, %v4969
  %v4971 = vrot.slane %v4526, %v4970
  %v4972 = vlaneseq
  %v4973 = vshrl.u32 %v4972, 7
  %v4974 = vsub.s32 0, %v4973
  %v4975 = vrot.slane %v4527, %v4974
  %v4976 = vlaneseq
  %v4977 = vshrl.u32 %v4976, 7
  %v4978 = vsub.s32 0, %v4977
  %v4979 = vrot.slane %v4528, %v4978
  %v4980 = vlaneseq
  %v4981 = vshrl.u32 %v4980, 7
  %v4982 = vsub.s32 0, %v4981
  %v4983 = vrot.slane %v4529, %v4982
  %v4984 = vlaneseq
  %v4985 = vshrl.u32 %v4984, 7
  %v4986 = vsub.s32 0, %v4985
  %v4987 = vrot.slane %v4530, %v4986
  %v4988 = vlaneseq
  %v4989 = vshrl.u32 %v4988, 7
  %v4990 = vsub.s32 0, %v4989
  %v4991 = vrot.slane %v4531, %v4990
  %v4992 = vlaneseq
  %v4993 = vshrl.u32 %v4992, 7
  %v4994 = vsub.s32 0, %v4993
  %v4995 = vrot.slane %v4532, %v4994
  %v4996 = vlaneseq
  %v4997 = vshrl.u32 %v4996, 7
  %v4998 = vsub.s32 0, %v4997
  %v4999 = vrot.slane %v4533, %v4998
  %v5000 = vlaneseq
  %v5001 = vshrl.u32 %v5000, 7
  %v5002 = vsub.s32 0, %v5001
  %v5003 = vrot.slane %v4534, %v5002
  %v5004 = vlaneseq
  %v5005 = vshrl.u32 %v5004, 7
  %v5006 = vsub.s32 0, %v5005
  %v5007 = vrot.slane %v4535, %v5006
  %v5008 = vlaneseq
  %v5009 = vshrl.u32 %v5008, 7
  %v5010 = vsub.s32 0, %v5009
  %v5011 = vrot.slane %v4536, %v5010
  %v5012 = vlaneseq
  %v5013 = vshrl.u32 %v5012, 7
  %v5014 = vsub.s32 0, %v5013
  %v5015 = vrot.slane %v4537, %v5014
  %v5016 = vlaneseq
  %v5017 = vshrl.u32 %v5016, 7
  %v5018 = vsub.s32 0, %v5017
  %v5019 = vrot.slane %v4538, %v5018
  %v5020 = vlaneseq
  %v5021 = vshrl.u32 %v5020, 7
  %v5022 = vsub.s32 0, %v5021
  %v5023 = vrot.slane %v4539, %v5022
  %v5024 = vlaneseq
  %v5025 = vshrl.u32 %v5024, 7
  %v5026 = vsub.s32 0, %v5025
  %v5027 = vrot.slane %v4540, %v5026
  %v5028 = vlaneseq
  %v5029 = vshrl.u32 %v5028, 7
  %v5030 = vsub.s32 0, %v5029
  %v5031 = vrot.slane %v4541, %v5030
  %v5032 = vlaneseq
  %v5033 = vshrl.u32 %v5032, 7
  %v5034 = vsub.s32 0, %v5033
  %v5035 = vrot.slane %v4542, %v5034
  %v5036 = vlaneseq
  %v5037 = vshrl.u32 %v5036, 7
  %v5038 = vsub.s32 0, %v5037
  %v5039 = vrot.slane %v4543, %v5038
  %v5040 = vlaneseq
  %v5041 = vshrl.u32 %v5040, 7
  %v5042 = vsub.s32 0, %v5041
  %v5043 = vrot.slane %v4544, %v5042
  %v5044 = vlaneseq
  %v5045 = vshrl.u32 %v5044, 7
  %v5046 = vsub.s32 0, %v5045
  %v5047 = vrot.slane %v4545, %v5046
  %v5048 = vlaneseq
  %v5049 = vshrl.u32 %v5048, 7
  %v5050 = vsub.s32 0, %v5049
  %v5051 = vrot.slane %v4546, %v5050
  %v5052 = vlaneseq
  %v5053 = vshrl.u32 %v5052, 7
  %v5054 = vsub.s32 0, %v5053
  %v5055 = vrot.slane %v4547, %v5054
  %v5056 = vlaneseq
  %v5057 = vshrl.u32 %v5056, 7
  %v5058 = vsub.s32 0, %v5057
  %v5059 = vrot.slane %v4548, %v5058
  %v5060 = vlaneseq
  %v5061 = vshrl.u32 %v5060, 7
  %v5062 = vsub.s32 0, %v5061
  %v5063 = vrot.slane %v4549, %v5062
  %v5064 = vlaneseq
  %v5065 = vshrl.u32 %v5064, 7
  %v5066 = vsub.s32 0, %v5065
  %v5067 = vrot.slane %v4550, %v5066
  %v5068 = vlaneseq
  %v5069 = vshrl.u32 %v5068, 7
  %v5070 = vsub.s32 0, %v5069
  %v5071 = vrot.slane %v4551, %v5070
  %v5072 = vlaneseq
  %v5073 = vshrl.u32 %v5072, 7
  %v5074 = vsub.s32 0, %v5073
  %v5075 = vrot.slane %v4552, %v5074
  %v5076 = vlaneseq
  %v5077 = vshrl.u32 %v5076, 7
  %v5078 = vsub.s32 0, %v5077
  %v5079 = vrot.slane %v4553, %v5078
  %v5080 = vlaneseq
  %v5081 = vshrl.u32 %v5080, 7
  %v5082 = vsub.s32 0, %v5081
  %v5083 = vrot.slane %v4554, %v5082
  %v5084 = vlaneseq
  %v5085 = vshrl.u32 %v5084, 7
  %v5086 = vsub.s32 0, %v5085
  %v5087 = vrot.slane %v4555, %v5086
  %v5088 = vlaneseq
  %v5089 = vshrl.u32 %v5088, 7
  %v5090 = vsub.s32 0, %v5089
  %v5091 = vrot.slane %v4556, %v5090
  %v5092 = vlaneseq
  %v5093 = vshrl.u32 %v5092, 7
  %v5094 = vsub.s32 0, %v5093
  %v5095 = vrot.slane %v4557, %v5094
  %v5096 = vlaneseq
  %v5097 = vshrl.u32 %v5096, 7
  %v5098 = vsub.s32 0, %v5097
  %v5099 = vrot.slane %v4558, %v5098
  %v5100 = vlaneseq
  %v5101 = vshrl.u32 %v5100, 7
  %v5102 = vsub.s32 0, %v5101
  %v5103 = vrot.slane %v4559, %v5102
  %v5104 = vlaneseq
  %v5105 = vshrl.u32 %v5104, 7
  %v5106 = vsub.s32 0, %v5105
  %v5107 = vrot.slane %v4560, %v5106
  %v5108 = vlaneseq
  %v5109 = vshrl.u32 %v5108, 7
  %v5110 = vsub.s32 0, %v5109
  %v5111 = vrot.slane %v4561, %v5110
  %v5112 = vlaneseq
  %v5113 = vshrl.u32 %v5112, 7
  %v5114 = vsub.s32 0, %v5113
  %v5115 = vrot.slane %v4562, %v5114
  %v5116 = vlaneseq
  %v5117 = vshrl.u32 %v5116, 7
  %v5118 = vsub.s32 0, %v5117
  %v5119 = vrot.slane %v4563, %v5118
  %v5120 = vlaneseq
  %v5121 = vshrl.u32 %v5120, 7
  %v5122 = vsub.s32 0, %v5121
  %v5123 = vrot.slane %v4564, %v5122
  %v5124 = vlaneseq
  %v5125 = vshrl.u32 %v5124, 7
  %v5126 = vsub.s32 0, %v5125
  %v5127 = vrot.slane %v4565, %v5126
  %v5128 = vlaneseq
  %v5129 = vshrl.u32 %v5128, 7
  %v5130 = vsub.s32 0, %v5129
  %v5131 = vrot.slane %v4566, %v5130
  %v5132 = vlaneseq
  %v5133 = vshrl.u32 %v5132, 7
  %v5134 = vsub.s32 0, %v5133
  %v5135 = vrot.slane %v4567, %v5134
  %v5136 = vlaneseq
  %v5137 = vshrl.u32 %v5136, 7
  %v5138 = vsub.s32 0, %v5137
  %v5139 = vrot.slane %v4568, %v5138
  %v5140 = vlaneseq
  %v5141 = vshrl.u32 %v5140, 7
  %v5142 = vsub.s32 0, %v5141
  %v5143 = vrot.slane %v4569, %v5142
  %v5144 = vlaneseq
  %v5145 = vshrl.u32 %v5144, 7
  %v5146 = vsub.s32 0, %v5145
  %v5147 = vrot.slane %v4570, %v5146
  %v5148 = vlaneseq
  %v5149 = vshrl.u32 %v5148, 7
  %v5150 = vsub.s32 0, %v5149
  %v5151 = vrot.slane %v4571, %v5150
  %v5152 = vlaneseq
  %v5153 = vshrl.u32 %v5152, 7
  %v5154 = vsub.s32 0, %v5153
  %v5155 = vrot.slane %v4572, %v5154
  %v5156 = vlaneseq
  %v5157 = vshrl.u32 %v5156, 7
  %v5158 = vsub.s32 0, %v5157
  %v5159 = vrot.slane %v4573, %v5158
  %v5160 = vlaneseq
  %v5161 = vshrl.u32 %v5160, 7
  %v5162 = vsub.s32 0, %v5161
  %v5163 = vrot.slane %v4574, %v5162
  %v5164 = vlaneseq
  %v5165 = vshrl.u32 %v5164, 7
  %v5166 = vsub.s32 0, %v5165
  %v5167 = vrot.slane %v4575, %v5166
  %v5168 = vlaneseq
  %v5169 = vshrl.u32 %v5168, 7
  %v5170 = vsub.s32 0, %v5169
  %v5171 = vrot.slane %v4576, %v5170
  %v5172 = vlaneseq
  %v5173 = vshrl.u32 %v5172, 7
  %v5174 = vsub.s32 0, %v5173
  %v5175 = vrot.slane %v4577, %v5174
  %v5176 = vlaneseq
  %v5177 = vshrl.u32 %v5176, 7
  %v5178 = vsub.s32 0, %v5177
  %v5179 = vrot.slane %v4578, %v5178
  %v5180 = vlaneseq
  %v5181 = vshrl.u32 %v5180, 7
  %v5182 = vsub.s32 0, %v5181
  %v5183 = vrot.slane %v4579, %v5182
  %v5184 = vlaneseq
  %v5185 = vshrl.u32 %v5184, 7
  %v5186 = vsub.s32 0, %v5185
  %v5187 = vrot.slane %v4580, %v5186
  %v5188 = vlaneseq
  %v5189 = vshrl.u32 %v5188, 7
  %v5190 = vsub.s32 0, %v5189
  %v5191 = vrot.slane %v4581, %v5190
  %v5192 = vlaneseq
  %v5193 = vshrl.u32 %v5192, 7
  %v5194 = vsub.s32 0, %v5193
  %v5195 = vrot.slane %v4582, %v5194
  %v5196 = vlaneseq
  %v5197 = vshrl.u32 %v5196, 7
  %v5198 = vsub.s32 0, %v5197
  %v5199 = vrot.slane %v4583, %v5198
  %v5200 = vlaneseq
  %v5201 = vshrl.u32 %v5200, 7
  %v5202 = vsub.s32 0, %v5201
  %v5203 = vrot.slane %v4584, %v5202
  %v5204 = vlaneseq
  %v5205 = vshrl.u32 %v5204, 7
  %v5206 = vsub.s32 0, %v5205
  %v5207 = vrot.slane %v4585, %v5206
  %v5208 = vlaneseq
  %v5209 = vshrl.u32 %v5208, 7
  %v5210 = vsub.s32 0, %v5209
  %v5211 = vrot.slane %v4586, %v5210
  %v5212 = vlaneseq
  %v5213 = vshrl.u32 %v5212, 7
  %v5214 = vsub.s32 0, %v5213
  %v5215 = vrot.slane %v4587, %v5214
  %v5216 = vlaneseq
  %v5217 = vshrl.u32 %v5216, 7
  %v5218 = vsub.s32 0, %v5217
  %v5219 = vrot.slane %v4588, %v5218
  %v5220 = vlaneseq
  %v5221 = vshrl.u32 %v5220, 7
  %v5222 = vsub.s32 0, %v5221
  %v5223 = vrot.slane %v4589, %v5222
  %v5224 = vlaneseq
  %v5225 = vshrl.u32 %v5224, 7
  %v5226 = vsub.s32 0, %v5225
  %v5227 = vrot.slane %v4590, %v5226
  %v5228 = vlaneseq
  %v5229 = vshrl.u32 %v5228, 7
  %v5230 = vsub.s32 0, %v5229
  %v5231 = vrot.slane %v4591, %v5230
  %vm5232 = vcmask 1041409
  %v5233 = vsel %vm5232, %v4727, %v4723
  %vm5234 = vcmask 1042434
  %v5235 = vsel %vm5234, %v4731, %v5233
  %vm5236 = vcmask 1043459
  %v5237 = vsel %vm5236, %v4735, %v5235
  %vm5238 = vcmask 1044484
  %v5239 = vsel %vm5238, %v4739, %v5237
  %vm5240 = vcmask 1045509
  %v5241 = vsel %vm5240, %v4743, %v5239
  %vm5242 = vcmask 1046534
  %v5243 = vsel %vm5242, %v4747, %v5241
  %vm5244 = vcmask 1047559
  %v5245 = vsel %vm5244, %v4751, %v5243
  %v5246 = vsel %vm5232, %v4759, %v4755
  %v5247 = vsel %vm5234, %v4763, %v5246
  %v5248 = vsel %vm5236, %v4767, %v5247
  %v5249 = vsel %vm5238, %v4771, %v5248
  %v5250 = vsel %vm5240, %v4775, %v5249
  %v5251 = vsel %vm5242, %v4779, %v5250
  %v5252 = vsel %vm5244, %v4783, %v5251
  %v5253 = vsel %vm5232, %v4791, %v4787
  %v5254 = vsel %vm5234, %v4795, %v5253
  %v5255 = vsel %vm5236, %v4799, %v5254
  %v5256 = vsel %vm5238, %v4803, %v5255
  %v5257 = vsel %vm5240, %v4807, %v5256
  %v5258 = vsel %vm5242, %v4811, %v5257
  %v5259 = vsel %vm5244, %v4815, %v5258
  %v5260 = vsel %vm5232, %v4823, %v4819
  %v5261 = vsel %vm5234, %v4827, %v5260
  %v5262 = vsel %vm5236, %v4831, %v5261
  %v5263 = vsel %vm5238, %v4835, %v5262
  %v5264 = vsel %vm5240, %v4839, %v5263
  %v5265 = vsel %vm5242, %v4843, %v5264
  %v5266 = vsel %vm5244, %v4847, %v5265
  %v5267 = vsel %vm5232, %v4855, %v4851
  %v5268 = vsel %vm5234, %v4859, %v5267
  %v5269 = vsel %vm5236, %v4863, %v5268
  %v5270 = vsel %vm5238, %v4867, %v5269
  %v5271 = vsel %vm5240, %v4871, %v5270
  %v5272 = vsel %vm5242, %v4875, %v5271
  %v5273 = vsel %vm5244, %v4879, %v5272
  %v5274 = vsel %vm5232, %v4887, %v4883
  %v5275 = vsel %vm5234, %v4891, %v5274
  %v5276 = vsel %vm5236, %v4895, %v5275
  %v5277 = vsel %vm5238, %v4899, %v5276
  %v5278 = vsel %vm5240, %v4903, %v5277
  %v5279 = vsel %vm5242, %v4907, %v5278
  %v5280 = vsel %vm5244, %v4911, %v5279
  %v5281 = vsel %vm5232, %v4919, %v4915
  %v5282 = vsel %vm5234, %v4923, %v5281
  %v5283 = vsel %vm5236, %v4927, %v5282
  %v5284 = vsel %vm5238, %v4931, %v5283
  %v5285 = vsel %vm5240, %v4935, %v5284
  %v5286 = vsel %vm5242, %v4939, %v5285
  %v5287 = vsel %vm5244, %v4943, %v5286
  %v5288 = vsel %vm5232, %v4951, %v4947
  %v5289 = vsel %vm5234, %v4955, %v5288
  %v5290 = vsel %vm5236, %v4959, %v5289
  %v5291 = vsel %vm5238, %v4963, %v5290
  %v5292 = vsel %vm5240, %v4967, %v5291
  %v5293 = vsel %vm5242, %v4971, %v5292
  %v5294 = vsel %vm5244, %v4975, %v5293
  %v5295 = vsel %vm5232, %v4983, %v4979
  %v5296 = vsel %vm5234, %v4987, %v5295
  %v5297 = vsel %vm5236, %v4991, %v5296
  %v5298 = vsel %vm5238, %v4995, %v5297
  %v5299 = vsel %vm5240, %v4999, %v5298
  %v5300 = vsel %vm5242, %v5003, %v5299
  %v5301 = vsel %vm5244, %v5007, %v5300
  %v5302 = vsel %vm5232, %v5015, %v5011
  %v5303 = vsel %vm5234, %v5019, %v5302
  %v5304 = vsel %vm5236, %v5023, %v5303
  %v5305 = vsel %vm5238, %v5027, %v5304
  %v5306 = vsel %vm5240, %v5031, %v5305
  %v5307 = vsel %vm5242, %v5035, %v5306
  %v5308 = vsel %vm5244, %v5039, %v5307
  %v5309 = vsel %vm5232, %v5047, %v5043
  %v5310 = vsel %vm5234, %v5051, %v5309
  %v5311 = vsel %vm5236, %v5055, %v5310
  %v5312 = vsel %vm5238, %v5059, %v5311
  %v5313 = vsel %vm5240, %v5063, %v5312
  %v5314 = vsel %vm5242, %v5067, %v5313
  %v5315 = vsel %vm5244, %v5071, %v5314
  %v5316 = vsel %vm5232, %v5079, %v5075
  %v5317 = vsel %vm5234, %v5083, %v5316
  %v5318 = vsel %vm5236, %v5087, %v5317
  %v5319 = vsel %vm5238, %v5091, %v5318
  %v5320 = vsel %vm5240, %v5095, %v5319
  %v5321 = vsel %vm5242, %v5099, %v5320
  %v5322 = vsel %vm5244, %v5103, %v5321
  %v5323 = vsel %vm5232, %v5111, %v5107
  %v5324 = vsel %vm5234, %v5115, %v5323
  %v5325 = vsel %vm5236, %v5119, %v5324
  %v5326 = vsel %vm5238, %v5123, %v5325
  %v5327 = vsel %vm5240, %v5127, %v5326
  %v5328 = vsel %vm5242, %v5131, %v5327
  %v5329 = vsel %vm5244, %v5135, %v5328
  %v5330 = vsel %vm5232, %v5143, %v5139
  %v5331 = vsel %vm5234, %v5147, %v5330
  %v5332 = vsel %vm5236, %v5151, %v5331
  %v5333 = vsel %vm5238, %v5155, %v5332
  %v5334 = vsel %vm5240, %v5159, %v5333
  %v5335 = vsel %vm5242, %v5163, %v5334
  %v5336 = vsel %vm5244, %v5167, %v5335
  %v5337 = vsel %vm5232, %v5175, %v5171
  %v5338 = vsel %vm5234, %v5179, %v5337
  %v5339 = vsel %vm5236, %v5183, %v5338
  %v5340 = vsel %vm5238, %v5187, %v5339
  %v5341 = vsel %vm5240, %v5191, %v5340
  %v5342 = vsel %vm5242, %v5195, %v5341
  %v5343 = vsel %vm5244, %v5199, %v5342
  %v5344 = vsel %vm5232, %v5207, %v5203
  %v5345 = vsel %vm5234, %v5211, %v5344
  %v5346 = vsel %vm5236, %v5215, %v5345
  %v5347 = vsel %vm5238, %v5219, %v5346
  %v5348 = vsel %vm5240, %v5223, %v5347
  %v5349 = vsel %vm5242, %v5227, %v5348
  %v5350 = vsel %vm5244, %v5231, %v5349
  %v5351 = vrot.slane %v5245, 7
  %v5352 = vrot.slane %v5252, 7
  %v5353 = vrot.slane %v5259, 7
  %v5354 = vrot.slane %v5266, 7
  %v5355 = vrot.slane %v5273, 7
  %v5356 = vrot.slane %v5280, 7
  %v5357 = vrot.slane %v5287, 7
  %v5358 = vrot.slane %v5294, 7
  %v5359 = vrot.slane %v5301, 7
  %v5360 = vrot.slane %v5308, 7
  %v5361 = vrot.slane %v5315, 7
  %v5362 = vrot.slane %v5322, 7
  %v5363 = vrot.slane %v5329, 7
  %v5364 = vrot.slane %v5336, 7
  %v5365 = vrot.slane %v5343, 7
  %v5366 = vrot.slane %v5350, 7
  %v5383 = vsel %vm150, 0.0, %v5351
  %v5384 = vsel %vm150, 0.0, %v5352
  %v5385 = vsel %vm150, 0.0, %v5353
  %v5386 = vsel %vm150, 0.0, %v5354
  %v5387 = vsel %vm150, 0.0, %v5355
  %v5388 = vsel %vm150, 0.0, %v5356
  %v5389 = vsel %vm150, 0.0, %v5357
  %v5390 = vsel %vm150, 0.0, %v5358
  %v5391 = vsel %vm150, 0.0, %v5359
  %v5392 = vsel %vm150, 0.0, %v5360
  %v5393 = vsel %vm150, 0.0, %v5361
  %v5394 = vsel %vm150, 0.0, %v5362
  %v5395 = vsel %vm150, 0.0, %v5363
  %v5396 = vsel %vm150, 0.0, %v5364
  %v5397 = vsel %vm150, 0.0, %v5365
  %v5398 = vsel %vm150, 0.0, %v5366
  %v5399 = vsel %vm150, %v5351, 0.0
  %v5400 = vsel %vm150, %v5352, 0.0
  %v5401 = vsel %vm150, %v5353, 0.0
  %v5402 = vsel %vm150, %v5354, 0.0
  %v5403 = vsel %vm150, %v5355, 0.0
  %v5404 = vsel %vm150, %v5356, 0.0
  %v5405 = vsel %vm150, %v5357, 0.0
  %v5406 = vsel %vm150, %v5358, 0.0
  %v5407 = vsel %vm150, %v5359, 0.0
  %v5408 = vsel %vm150, %v5360, 0.0
  %v5409 = vsel %vm150, %v5361, 0.0
  %v5410 = vsel %vm150, %v5362, 0.0
  %v5411 = vsel %vm150, %v5363, 0.0
  %v5412 = vsel %vm150, %v5364, 0.0
  %v5413 = vsel %vm150, %v5365, 0.0
  %v5414 = vsel %vm150, %v5366, 0.0
  %v5443 = vsel %vm473, %v474, %v477
  %v5444 = vrot.slane %v5383, 1
  %v5445 = vrot.slane %v5399, 1
  %v5446 = vsel %vm473, %v5444, %v5445
  %v5447 = vrot.slane %v5384, 1
  %v5448 = vrot.slane %v5400, 1
  %v5449 = vsel %vm473, %v5447, %v5448
  %v5450 = vrot.slane %v5385, 1
  %v5451 = vrot.slane %v5401, 1
  %v5452 = vsel %vm473, %v5450, %v5451
  %v5453 = vrot.slane %v5386, 1
  %v5454 = vrot.slane %v5402, 1
  %v5455 = vsel %vm473, %v5453, %v5454
  %v5456 = vrot.slane %v5387, 1
  %v5457 = vrot.slane %v5403, 1
  %v5458 = vsel %vm473, %v5456, %v5457
  %v5459 = vrot.slane %v5388, 1
  %v5460 = vrot.slane %v5404, 1
  %v5461 = vsel %vm473, %v5459, %v5460
  %v5462 = vrot.slane %v5389, 1
  %v5463 = vrot.slane %v5405, 1
  %v5464 = vsel %vm473, %v5462, %v5463
  %v5465 = vrot.slane %v5391, 1
  %v5466 = vrot.slane %v5407, 1
  %v5467 = vsel %vm473, %v5465, %v5466
  %v5468 = vrot.slane %v5392, 1
  %v5469 = vrot.slane %v5408, 1
  %v5470 = vsel %vm473, %v5468, %v5469
  %v5471 = vrot.slane %v5393, 1
  %v5472 = vrot.slane %v5409, 1
  %v5473 = vsel %vm473, %v5471, %v5472
  %v5474 = vrot.slane %v5394, 1
  %v5475 = vrot.slane %v5410, 1
  %v5476 = vsel %vm473, %v5474, %v5475
  %v5477 = vrot.slane %v5395, 1
  %v5478 = vrot.slane %v5411, 1
  %v5479 = vsel %vm473, %v5477, %v5478
  %v5480 = vrot.slane %v5396, 1
  %v5481 = vrot.slane %v5412, 1
  %v5482 = vsel %vm473, %v5480, %v5481
  %v5483 = vrot.slane %v5397, 1
  %v5484 = vrot.slane %v5413, 1
  %v5485 = vsel %vm473, %v5483, %v5484
  %5486 = vrot.lane.b32.xlu0 %v5443, 8
  %v5487 = vpop.permute.xlu0 %5486
  %5488 = vrot.lane.b32.xlu0 %v5446, 8
  %v5489 = vpop.permute.xlu0 %5488
  %5490 = vrot.lane.b32.xlu0 %v5449, 8
  %v5491 = vpop.permute.xlu0 %5490
  %5492 = vrot.lane.b32.xlu0 %v5452, 8
  %v5493 = vpop.permute.xlu0 %5492
  %5494 = vrot.lane.b32.xlu0 %v5455, 8
  %v5495 = vpop.permute.xlu0 %5494
  %5496 = vrot.lane.b32.xlu0 %v5458, 8
  %v5497 = vpop.permute.xlu0 %5496
  %5498 = vrot.lane.b32.xlu0 %v5461, 8
  %v5499 = vpop.permute.xlu0 %5498
  %5500 = vrot.lane.b32.xlu0 %v5464, 8
  %v5501 = vpop.permute.xlu0 %5500
  %5502 = vrot.lane.b32.xlu0 %v5467, 8
  %v5503 = vpop.permute.xlu0 %5502
  %5504 = vrot.lane.b32.xlu0 %v5470, 8
  %v5505 = vpop.permute.xlu0 %5504
  %5506 = vrot.lane.b32.xlu0 %v5473, 8
  %v5507 = vpop.permute.xlu0 %5506
  %5508 = vrot.lane.b32.xlu0 %v5476, 8
  %v5509 = vpop.permute.xlu0 %5508
  %5510 = vrot.lane.b32.xlu0 %v5479, 8
  %v5511 = vpop.permute.xlu0 %5510
  %5512 = vrot.lane.b32.xlu0 %v5482, 8
  %v5513 = vpop.permute.xlu0 %5512
  %5514 = vrot.lane.b32.xlu0 %v5485, 8
  %v5515 = vpop.permute.xlu0 %5514
  %v5531 = vsel %vm815, %v816, %v819
  %v5532 = vrot.slane %v5383, 2
  %v5533 = vrot.slane %v5399, 2
  %v5534 = vsel %vm815, %v5532, %v5533
  %v5535 = vrot.slane %v5384, 2
  %v5536 = vrot.slane %v5400, 2
  %v5537 = vsel %vm815, %v5535, %v5536
  %v5538 = vrot.slane %v5385, 2
  %v5539 = vrot.slane %v5401, 2
  %v5540 = vsel %vm815, %v5538, %v5539
  %v5541 = vrot.slane %v5386, 2
  %v5542 = vrot.slane %v5402, 2
  %v5543 = vsel %vm815, %v5541, %v5542
  %v5544 = vrot.slane %v5387, 2
  %v5545 = vrot.slane %v5403, 2
  %v5546 = vsel %vm815, %v5544, %v5545
  %v5547 = vrot.slane %v5388, 2
  %v5548 = vrot.slane %v5404, 2
  %v5549 = vsel %vm815, %v5547, %v5548
  %v5550 = vrot.slane %v5389, 2
  %v5551 = vrot.slane %v5405, 2
  %v5552 = vsel %vm815, %v5550, %v5551
  %v5553 = vrot.slane %v5391, 2
  %v5554 = vrot.slane %v5407, 2
  %v5555 = vsel %vm815, %v5553, %v5554
  %v5556 = vrot.slane %v5392, 2
  %v5557 = vrot.slane %v5408, 2
  %v5558 = vsel %vm815, %v5556, %v5557
  %v5559 = vrot.slane %v5393, 2
  %v5560 = vrot.slane %v5409, 2
  %v5561 = vsel %vm815, %v5559, %v5560
  %v5562 = vrot.slane %v5394, 2
  %v5563 = vrot.slane %v5410, 2
  %v5564 = vsel %vm815, %v5562, %v5563
  %v5565 = vrot.slane %v5395, 2
  %v5566 = vrot.slane %v5411, 2
  %v5567 = vsel %vm815, %v5565, %v5566
  %v5568 = vrot.slane %v5396, 2
  %v5569 = vrot.slane %v5412, 2
  %v5570 = vsel %vm815, %v5568, %v5569
  %v5571 = vrot.slane %v5397, 2
  %v5572 = vrot.slane %v5413, 2
  %v5573 = vsel %vm815, %v5571, %v5572
  %5574 = vrot.lane.b32.xlu0 %v5531, 16
  %v5575 = vpop.permute.xlu0 %5574
  %5576 = vrot.lane.b32.xlu0 %v5534, 16
  %v5577 = vpop.permute.xlu0 %5576
  %5578 = vrot.lane.b32.xlu0 %v5537, 16
  %v5579 = vpop.permute.xlu0 %5578
  %5580 = vrot.lane.b32.xlu0 %v5540, 16
  %v5581 = vpop.permute.xlu0 %5580
  %5582 = vrot.lane.b32.xlu0 %v5543, 16
  %v5583 = vpop.permute.xlu0 %5582
  %5584 = vrot.lane.b32.xlu0 %v5546, 16
  %v5585 = vpop.permute.xlu0 %5584
  %5586 = vrot.lane.b32.xlu0 %v5549, 16
  %v5587 = vpop.permute.xlu0 %5586
  %5588 = vrot.lane.b32.xlu0 %v5552, 16
  %v5589 = vpop.permute.xlu0 %5588
  %5590 = vrot.lane.b32.xlu0 %v5555, 16
  %v5591 = vpop.permute.xlu0 %5590
  %5592 = vrot.lane.b32.xlu0 %v5558, 16
  %v5593 = vpop.permute.xlu0 %5592
  %5594 = vrot.lane.b32.xlu0 %v5561, 16
  %v5595 = vpop.permute.xlu0 %5594
  %5596 = vrot.lane.b32.xlu0 %v5564, 16
  %v5597 = vpop.permute.xlu0 %5596
  %5598 = vrot.lane.b32.xlu0 %v5567, 16
  %v5599 = vpop.permute.xlu0 %5598
  %5600 = vrot.lane.b32.xlu0 %v5570, 16
  %v5601 = vpop.permute.xlu0 %5600
  %5602 = vrot.lane.b32.xlu0 %v5573, 16
  %v5603 = vpop.permute.xlu0 %5602
  %5621 = vrot.lane.b32.xlu0 %v5383, 24
  %v5622 = vpop.permute.xlu0 %5621
  %5623 = vrot.lane.b32.xlu0 %v5384, 24
  %v5624 = vpop.permute.xlu0 %5623
  %5625 = vrot.lane.b32.xlu0 %v5385, 24
  %v5626 = vpop.permute.xlu0 %5625
  %5627 = vrot.lane.b32.xlu0 %v5386, 24
  %v5628 = vpop.permute.xlu0 %5627
  %5629 = vrot.lane.b32.xlu0 %v5387, 24
  %v5630 = vpop.permute.xlu0 %5629
  %5631 = vrot.lane.b32.xlu0 %v5388, 24
  %v5632 = vpop.permute.xlu0 %5631
  %5633 = vrot.lane.b32.xlu0 %v5389, 24
  %v5634 = vpop.permute.xlu0 %5633
  %5635 = vrot.lane.b32.xlu0 %v5390, 24
  %v5636 = vpop.permute.xlu0 %5635
  %5637 = vrot.lane.b32.xlu0 %v5391, 24
  %v5638 = vpop.permute.xlu0 %5637
  %5639 = vrot.lane.b32.xlu0 %v5392, 24
  %v5640 = vpop.permute.xlu0 %5639
  %5641 = vrot.lane.b32.xlu0 %v5393, 24
  %v5642 = vpop.permute.xlu0 %5641
  %5643 = vrot.lane.b32.xlu0 %v5394, 24
  %v5644 = vpop.permute.xlu0 %5643
  %5645 = vrot.lane.b32.xlu0 %v5395, 24
  %v5646 = vpop.permute.xlu0 %5645
  %5647 = vrot.lane.b32.xlu0 %v5396, 24
  %v5648 = vpop.permute.xlu0 %5647
  %5649 = vrot.lane.b32.xlu0 %v5397, 24
  %v5650 = vpop.permute.xlu0 %5649
  %5651 = vrot.lane.b32.xlu0 %v5398, 24
  %v5652 = vpop.permute.xlu0 %5651
  %v5671 = vrot.slane %v5390, 1
  %v5672 = vrot.slane %v5406, 1
  %v5673 = vsel %vm473, %v5671, %v5672
  %v5674 = vrot.slane %v5398, 1
  %v5675 = vrot.slane %v5414, 1
  %v5676 = vsel %vm473, %v5674, %v5675
  %5677 = vrot.lane.b32.xlu0 %v5446, 32
  %v5678 = vpop.permute.xlu0 %5677
  %5679 = vrot.lane.b32.xlu0 %v5449, 32
  %v5680 = vpop.permute.xlu0 %5679
  %5681 = vrot.lane.b32.xlu0 %v5452, 32
  %v5682 = vpop.permute.xlu0 %5681
  %5683 = vrot.lane.b32.xlu0 %v5455, 32
  %v5684 = vpop.permute.xlu0 %5683
  %5685 = vrot.lane.b32.xlu0 %v5458, 32
  %v5686 = vpop.permute.xlu0 %5685
  %5687 = vrot.lane.b32.xlu0 %v5461, 32
  %v5688 = vpop.permute.xlu0 %5687
  %5689 = vrot.lane.b32.xlu0 %v5464, 32
  %v5690 = vpop.permute.xlu0 %5689
  %5691 = vrot.lane.b32.xlu0 %v5673, 32
  %v5692 = vpop.permute.xlu0 %5691
  %5693 = vrot.lane.b32.xlu0 %v5467, 32
  %v5694 = vpop.permute.xlu0 %5693
  %5695 = vrot.lane.b32.xlu0 %v5470, 32
  %v5696 = vpop.permute.xlu0 %5695
  %5697 = vrot.lane.b32.xlu0 %v5473, 32
  %v5698 = vpop.permute.xlu0 %5697
  %5699 = vrot.lane.b32.xlu0 %v5476, 32
  %v5700 = vpop.permute.xlu0 %5699
  %5701 = vrot.lane.b32.xlu0 %v5479, 32
  %v5702 = vpop.permute.xlu0 %5701
  %5703 = vrot.lane.b32.xlu0 %v5482, 32
  %v5704 = vpop.permute.xlu0 %5703
  %5705 = vrot.lane.b32.xlu0 %v5485, 32
  %v5706 = vpop.permute.xlu0 %5705
  %5707 = vrot.lane.b32.xlu0 %v5676, 32
  %v5708 = vpop.permute.xlu0 %5707
  %v5725 = vrot.slane %v5390, 2
  %v5726 = vrot.slane %v5406, 2
  %v5727 = vsel %vm815, %v5725, %v5726
  %v5728 = vrot.slane %v5398, 2
  %v5729 = vrot.slane %v5414, 2
  %v5730 = vsel %vm815, %v5728, %v5729
  %5731 = vrot.lane.b32.xlu0 %v5534, 40
  %v5732 = vpop.permute.xlu0 %5731
  %5733 = vrot.lane.b32.xlu0 %v5537, 40
  %v5734 = vpop.permute.xlu0 %5733
  %5735 = vrot.lane.b32.xlu0 %v5540, 40
  %v5736 = vpop.permute.xlu0 %5735
  %5737 = vrot.lane.b32.xlu0 %v5543, 40
  %v5738 = vpop.permute.xlu0 %5737
  %5739 = vrot.lane.b32.xlu0 %v5546, 40
  %v5740 = vpop.permute.xlu0 %5739
  %5741 = vrot.lane.b32.xlu0 %v5549, 40
  %v5742 = vpop.permute.xlu0 %5741
  %5743 = vrot.lane.b32.xlu0 %v5552, 40
  %v5744 = vpop.permute.xlu0 %5743
  %5745 = vrot.lane.b32.xlu0 %v5727, 40
  %v5746 = vpop.permute.xlu0 %5745
  %5747 = vrot.lane.b32.xlu0 %v5555, 40
  %v5748 = vpop.permute.xlu0 %5747
  %5749 = vrot.lane.b32.xlu0 %v5558, 40
  %v5750 = vpop.permute.xlu0 %5749
  %5751 = vrot.lane.b32.xlu0 %v5561, 40
  %v5752 = vpop.permute.xlu0 %5751
  %5753 = vrot.lane.b32.xlu0 %v5564, 40
  %v5754 = vpop.permute.xlu0 %5753
  %5755 = vrot.lane.b32.xlu0 %v5567, 40
  %v5756 = vpop.permute.xlu0 %5755
  %5757 = vrot.lane.b32.xlu0 %v5570, 40
  %v5758 = vpop.permute.xlu0 %5757
  %5759 = vrot.lane.b32.xlu0 %v5573, 40
  %v5760 = vpop.permute.xlu0 %5759
  %5761 = vrot.lane.b32.xlu0 %v5730, 40
  %v5762 = vpop.permute.xlu0 %5761
  %5779 = vrot.lane.b32.xlu0 %v5384, 48
  %v5780 = vpop.permute.xlu0 %5779
  %5781 = vrot.lane.b32.xlu0 %v5385, 48
  %v5782 = vpop.permute.xlu0 %5781
  %5783 = vrot.lane.b32.xlu0 %v5386, 48
  %v5784 = vpop.permute.xlu0 %5783
  %5785 = vrot.lane.b32.xlu0 %v5387, 48
  %v5786 = vpop.permute.xlu0 %5785
  %5787 = vrot.lane.b32.xlu0 %v5388, 48
  %v5788 = vpop.permute.xlu0 %5787
  %5789 = vrot.lane.b32.xlu0 %v5389, 48
  %v5790 = vpop.permute.xlu0 %5789
  %5791 = vrot.lane.b32.xlu0 %v5390, 48
  %v5792 = vpop.permute.xlu0 %5791
  %5793 = vrot.lane.b32.xlu0 %v345, 48
  %v5794 = vpop.permute.xlu0 %5793
  %5795 = vrot.lane.b32.xlu0 %v5392, 48
  %v5796 = vpop.permute.xlu0 %5795
  %5797 = vrot.lane.b32.xlu0 %v5393, 48
  %v5798 = vpop.permute.xlu0 %5797
  %5799 = vrot.lane.b32.xlu0 %v5394, 48
  %v5800 = vpop.permute.xlu0 %5799
  %5801 = vrot.lane.b32.xlu0 %v5395, 48
  %v5802 = vpop.permute.xlu0 %5801
  %5803 = vrot.lane.b32.xlu0 %v5396, 48
  %v5804 = vpop.permute.xlu0 %5803
  %5805 = vrot.lane.b32.xlu0 %v5397, 48
  %v5806 = vpop.permute.xlu0 %5805
  %5807 = vrot.lane.b32.xlu0 %v5398, 48
  %v5808 = vpop.permute.xlu0 %5807
  %5824 = vrot.lane.b32.xlu0 %v5449, 56
  %v5825 = vpop.permute.xlu0 %5824
  %5826 = vrot.lane.b32.xlu0 %v5452, 56
  %v5827 = vpop.permute.xlu0 %5826
  %5828 = vrot.lane.b32.xlu0 %v5455, 56
  %v5829 = vpop.permute.xlu0 %5828
  %5830 = vrot.lane.b32.xlu0 %v5458, 56
  %v5831 = vpop.permute.xlu0 %5830
  %5832 = vrot.lane.b32.xlu0 %v5461, 56
  %v5833 = vpop.permute.xlu0 %5832
  %5834 = vrot.lane.b32.xlu0 %v5464, 56
  %v5835 = vpop.permute.xlu0 %5834
  %5836 = vrot.lane.b32.xlu0 %v5673, 56
  %v5837 = vpop.permute.xlu0 %5836
  %5838 = vrot.lane.b32.xlu0 %v5443, 56
  %v5839 = vpop.permute.xlu0 %5838
  %5840 = vrot.lane.b32.xlu0 %v5470, 56
  %v5841 = vpop.permute.xlu0 %5840
  %5842 = vrot.lane.b32.xlu0 %v5473, 56
  %v5843 = vpop.permute.xlu0 %5842
  %5844 = vrot.lane.b32.xlu0 %v5476, 56
  %v5845 = vpop.permute.xlu0 %5844
  %5846 = vrot.lane.b32.xlu0 %v5479, 56
  %v5847 = vpop.permute.xlu0 %5846
  %5848 = vrot.lane.b32.xlu0 %v5482, 56
  %v5849 = vpop.permute.xlu0 %5848
  %5850 = vrot.lane.b32.xlu0 %v5485, 56
  %v5851 = vpop.permute.xlu0 %5850
  %5852 = vrot.lane.b32.xlu0 %v5676, 56
  %v5853 = vpop.permute.xlu0 %5852
  %5869 = vrot.lane.b32.xlu0 %v5537, 64
  %v5870 = vpop.permute.xlu0 %5869
  %5871 = vrot.lane.b32.xlu0 %v5540, 64
  %v5872 = vpop.permute.xlu0 %5871
  %5873 = vrot.lane.b32.xlu0 %v5543, 64
  %v5874 = vpop.permute.xlu0 %5873
  %5875 = vrot.lane.b32.xlu0 %v5546, 64
  %v5876 = vpop.permute.xlu0 %5875
  %5877 = vrot.lane.b32.xlu0 %v5549, 64
  %v5878 = vpop.permute.xlu0 %5877
  %5879 = vrot.lane.b32.xlu0 %v5552, 64
  %v5880 = vpop.permute.xlu0 %5879
  %5881 = vrot.lane.b32.xlu0 %v5727, 64
  %v5882 = vpop.permute.xlu0 %5881
  %5883 = vrot.lane.b32.xlu0 %v5531, 64
  %v5884 = vpop.permute.xlu0 %5883
  %5885 = vrot.lane.b32.xlu0 %v5558, 64
  %v5886 = vpop.permute.xlu0 %5885
  %5887 = vrot.lane.b32.xlu0 %v5561, 64
  %v5888 = vpop.permute.xlu0 %5887
  %5889 = vrot.lane.b32.xlu0 %v5564, 64
  %v5890 = vpop.permute.xlu0 %5889
  %5891 = vrot.lane.b32.xlu0 %v5567, 64
  %v5892 = vpop.permute.xlu0 %5891
  %5893 = vrot.lane.b32.xlu0 %v5570, 64
  %v5894 = vpop.permute.xlu0 %5893
  %5895 = vrot.lane.b32.xlu0 %v5573, 64
  %v5896 = vpop.permute.xlu0 %5895
  %5897 = vrot.lane.b32.xlu0 %v5730, 64
  %v5898 = vpop.permute.xlu0 %5897
  %v5914 = vsel %vm2378, %v345, %v5487
  %v5915 = vsel %vm2378, %v5383, %v5489
  %v5916 = vsel %vm2378, %v5384, %v5491
  %v5917 = vsel %vm2378, %v5385, %v5493
  %v5918 = vsel %vm2378, %v5386, %v5495
  %v5919 = vsel %vm2378, %v5387, %v5497
  %v5920 = vsel %vm2378, %v5388, %v5499
  %v5921 = vsel %vm2378, %v5389, %v5501
  %v5922 = vsel %vm2378, %v5391, %v5503
  %v5923 = vsel %vm2378, %v5392, %v5505
  %v5924 = vsel %vm2378, %v5393, %v5507
  %v5925 = vsel %vm2378, %v5394, %v5509
  %v5926 = vsel %vm2378, %v5395, %v5511
  %v5927 = vsel %vm2378, %v5396, %v5513
  %v5928 = vsel %vm2378, %v5397, %v5515
  %v5929 = vsel %vm2506, %v5914, %v5575
  %v5930 = vsel %vm2506, %v5915, %v5577
  %v5931 = vsel %vm2506, %v5916, %v5579
  %v5932 = vsel %vm2506, %v5917, %v5581
  %v5933 = vsel %vm2506, %v5918, %v5583
  %v5934 = vsel %vm2506, %v5919, %v5585
  %v5935 = vsel %vm2506, %v5920, %v5587
  %v5936 = vsel %vm2506, %v5921, %v5589
  %v5937 = vsel %vm2506, %v5922, %v5591
  %v5938 = vsel %vm2506, %v5923, %v5593
  %v5939 = vsel %vm2506, %v5924, %v5595
  %v5940 = vsel %vm2506, %v5925, %v5597
  %v5941 = vsel %vm2506, %v5926, %v5599
  %v5942 = vsel %vm2506, %v5927, %v5601
  %v5943 = vsel %vm2506, %v5928, %v5603
  %v5944 = vsel %vm2636, %v5929, %v5622
  %v5945 = vsel %vm2636, %v5930, %v5624
  %v5946 = vsel %vm2636, %v5931, %v5626
  %v5947 = vsel %vm2636, %v5932, %v5628
  %v5948 = vsel %vm2636, %v5933, %v5630
  %v5949 = vsel %vm2636, %v5934, %v5632
  %v5950 = vsel %vm2636, %v5935, %v5634
  %v5951 = vsel %vm2636, %v5936, %v5636
  %v5952 = vsel %vm2636, %v5929, %v5638
  %v5953 = vsel %vm2636, %v5937, %v5640
  %v5954 = vsel %vm2636, %v5938, %v5642
  %v5955 = vsel %vm2636, %v5939, %v5644
  %v5956 = vsel %vm2636, %v5940, %v5646
  %v5957 = vsel %vm2636, %v5941, %v5648
  %v5958 = vsel %vm2636, %v5942, %v5650
  %v5959 = vsel %vm2636, %v5943, %v5652
  %v5960 = vsel %vm2766, %v5944, %v5678
  %v5961 = vsel %vm2766, %v5945, %v5680
  %v5962 = vsel %vm2766, %v5946, %v5682
  %v5963 = vsel %vm2766, %v5947, %v5684
  %v5964 = vsel %vm2766, %v5948, %v5686
  %v5965 = vsel %vm2766, %v5949, %v5688
  %v5966 = vsel %vm2766, %v5950, %v5690
  %v5967 = vsel %vm2766, %v5951, %v5692
  %v5968 = vsel %vm2766, %v5952, %v5694
  %v5969 = vsel %vm2766, %v5953, %v5696
  %v5970 = vsel %vm2766, %v5954, %v5698
  %v5971 = vsel %vm2766, %v5955, %v5700
  %v5972 = vsel %vm2766, %v5956, %v5702
  %v5973 = vsel %vm2766, %v5957, %v5704
  %v5974 = vsel %vm2766, %v5958, %v5706
  %v5975 = vsel %vm2766, %v5959, %v5708
  %vm5976 = vcmask 326656
  %v5977 = vsel %vm5976, %v5960, %v5732
  %v5978 = vsel %vm5976, %v5961, %v5734
  %v5979 = vsel %vm5976, %v5962, %v5736
  %v5980 = vsel %vm5976, %v5963, %v5738
  %v5981 = vsel %vm5976, %v5964, %v5740
  %v5982 = vsel %vm5976, %v5965, %v5742
  %v5983 = vsel %vm5976, %v5966, %v5744
  %v5984 = vsel %vm5976, %v5967, %v5746
  %v5985 = vsel %vm5976, %v5968, %v5748
  %v5986 = vsel %vm5976, %v5969, %v5750
  %v5987 = vsel %vm5976, %v5970, %v5752
  %v5988 = vsel %vm5976, %v5971, %v5754
  %v5989 = vsel %vm5976, %v5972, %v5756
  %v5990 = vsel %vm5976, %v5973, %v5758
  %v5991 = vsel %vm5976, %v5974, %v5760
  %v5992 = vsel %vm5976, %v5975, %v5762
  %vm5993 = vcmask 392192
  %v5994 = vsel %vm5993, %v5977, %v5780
  %v5995 = vsel %vm5993, %v5978, %v5782
  %v5996 = vsel %vm5993, %v5979, %v5784
  %v5997 = vsel %vm5993, %v5980, %v5786
  %v5998 = vsel %vm5993, %v5981, %v5788
  %v5999 = vsel %vm5993, %v5982, %v5790
  %v6000 = vsel %vm5993, %v5983, %v5792
  %v6001 = vsel %vm5993, %v5984, %v5794
  %v6002 = vsel %vm5993, %v5985, %v5796
  %v6003 = vsel %vm5993, %v5986, %v5798
  %v6004 = vsel %vm5993, %v5987, %v5800
  %v6005 = vsel %vm5993, %v5988, %v5802
  %v6006 = vsel %vm5993, %v5989, %v5804
  %v6007 = vsel %vm5993, %v5990, %v5806
  %v6008 = vsel %vm5993, %v5991, %v5808
  %v6009 = vsel %vm5993, %v5992, %v5794
  %vm6010 = vcmask 457728
  %v6011 = vsel %vm6010, %v5994, %v5825
  %v6012 = vsel %vm6010, %v5995, %v5827
  %v6013 = vsel %vm6010, %v5996, %v5829
  %v6014 = vsel %vm6010, %v5997, %v5831
  %v6015 = vsel %vm6010, %v5998, %v5833
  %v6016 = vsel %vm6010, %v5999, %v5835
  %v6017 = vsel %vm6010, %v6000, %v5837
  %v6018 = vsel %vm6010, %v6001, %v5839
  %v6019 = vsel %vm6010, %v6002, %v5841
  %v6020 = vsel %vm6010, %v6003, %v5843
  %v6021 = vsel %vm6010, %v6004, %v5845
  %v6022 = vsel %vm6010, %v6005, %v5847
  %v6023 = vsel %vm6010, %v6006, %v5849
  %v6024 = vsel %vm6010, %v6007, %v5851
  %v6025 = vsel %vm6010, %v6008, %v5853
  %v6026 = vsel %vm6010, %v6009, %v5839
  %vm6027 = vcmask 523264
  %v6028 = vsel %vm6027, %v6011, %v5870
  %v6029 = vsel %vm6027, %v6012, %v5872
  %v6030 = vsel %vm6027, %v6013, %v5874
  %v6031 = vsel %vm6027, %v6014, %v5876
  %v6032 = vsel %vm6027, %v6015, %v5878
  %v6033 = vsel %vm6027, %v6016, %v5880
  %v6034 = vsel %vm6027, %v6017, %v5882
  %v6035 = vsel %vm6027, %v6018, %v5884
  %v6036 = vsel %vm6027, %v6019, %v5886
  %v6037 = vsel %vm6027, %v6020, %v5888
  %v6038 = vsel %vm6027, %v6021, %v5890
  %v6039 = vsel %vm6027, %v6022, %v5892
  %v6040 = vsel %vm6027, %v6023, %v5894
  %v6041 = vsel %vm6027, %v6024, %v5896
  %v6042 = vsel %vm6027, %v6025, %v5898
  %v6043 = vsel %vm6027, %v6026, %v5884
  %v6044 = vpack.c.bf16 %v6029, %v6028
  %v6045 = vpack.c.bf16 %v6031, %v6030
  %v6046 = vpack.c.bf16 %v6033, %v6032
  %v6047 = vpack.c.bf16 %v6035, %v6034
  %v6048 = vpack.c.bf16 %v6037, %v6036
  %v6049 = vpack.c.bf16 %v6039, %v6038
  %v6050 = vpack.c.bf16 %v6041, %v6040
  %v6051 = vpack.c.bf16 %v6043, %v6042
  %v6052 = vld [vmem:[%s3] sm:$0xf]
  %v6053 = vld [vmem:[%s3 + $0x4] sm:$0xf]
  %v6054 = vld [vmem:[%s3 + $0x8] sm:$0xf]
  %v6055 = vld [vmem:[%s3 + $0xc] sm:$0xf]
  %v6056 = vld [vmem:[%s3 + $0x10] sm:$0xf]
  %v6057 = vld [vmem:[%s3 + $0x14] sm:$0xf]
  %v6058 = vld [vmem:[%s3 + $0x18] sm:$0xf]
  %v6059 = vld [vmem:[%s3 + $0x1c] sm:$0xf]
  %v6060 = vld [vmem:[%s3 + $0x20] sm:$0xf]
  %v6061 = vld [vmem:[%s4] sm:$0x1]
  %v6063 = vlaneseq
  %v6064 = vshrl.u32 %v6063, 7
  %v6065 = vsub.s32 0, %v6064
  %v6066 = vrot.slane %v6061, %v6065
  %v6077 = vunpack.c.l.b16 %v6052
  %v6078 = vunpack.c.l.b16 %v6053
  %v6079 = vunpack.c.l.b16 %v6054
  %v6080 = vunpack.c.l.b16 %v6055
  %v6081 = vunpack.c.l.b16 %v6056
  %v6082 = vunpack.c.l.b16 %v6057
  %v6083 = vunpack.c.l.b16 %v6058
  %v6084 = vunpack.c.l.b16 %v6059
  %v6085 = vunpack.c.l.b16 %v6060
  %v6086 = vpack.c.b16 %v6078, %v6077
  %v6087 = vpack.c.b16 %v6080, %v6079
  %v6088 = vpack.c.b16 %v6082, %v6081
  %v6089 = vpack.c.b16 %v6084, %v6083
  %v6090 = vpack.c.b16 %v6085, %v6085
  %vm6095 = vcmask 588800
  %v6097 = vsel %vm6095, %v6044, 0
  %v6100 = vsel %vm6095, %v6045, 0
  %v6103 = vsel %vm6095, %v6046, 0
  %v6106 = vsel %vm6095, %v6047, 0
  %v6109 = vsel %vm6095, %v6048, 0
  %v6112 = vsel %vm6095, %v6049, 0
  %v6115 = vsel %vm6095, %v6050, 0
  %v6118 = vsel %vm6095, %v6051, 0
  %vm6120 = vcmask 1043456
  %v6122 = vsel %vm6120, %v6090, 0
  %6124 = vmatprep.subr.bf16.mxu0 0
  %6125 = vmatpush1.bf16.msra.mxu0 0
  %6126 = vmatprep.subr.bf16.mxu0 0
  %6127 = vmatpush1.bf16.msra.mxu0 0
  %6128 = vmatprep.subr.bf16.mxu0 0
  %6129 = vmatpush1.bf16.msra.mxu0 0
  %6130 = vmatprep.subr.bf16.mxu0 0
  %6131 = vmatpush1.bf16.msra.mxu0 %v6122
  %6132 = vmatprep.subr.bf16.mxu0 0
  %6133 = vmatpush1.bf16.msra.mxu0 %v6089
  %6134 = vmatprep.subr.bf16.mxu0 0
  %6135 = vmatpush1.bf16.msra.mxu0 %v6088
  %6136 = vmatprep.subr.bf16.mxu0 0
  %6137 = vmatpush1.bf16.msra.mxu0 %v6087
  %6138 = vmatprep.subr.bf16.mxu0 0
  %6139 = vmatpush1.bf16.msra.mxu0 %v6086
  %6140 = vmatprep.subr.bf16.mxu0 0
  %6141 = vmatpush2.bf16.msra.mxu0 0
  %6142 = vmatprep.subr.bf16.mxu0 0
  %6143 = vmatpush2.bf16.msra.mxu0 0
  %6144 = vmatprep.subr.bf16.mxu0 0
  %6145 = vmatpush2.bf16.msra.mxu0 0
  %6146 = vmatprep.subr.bf16.mxu0 0
  %6147 = vmatpush2.bf16.msra.mxu0 0
  %6148 = vmatprep.subr.bf16.mxu0 0
  %6149 = vmatpush2.bf16.msra.mxu0 0
  %6150 = vmatprep.subr.bf16.mxu0 0
  %6151 = vmatpush2.bf16.msra.mxu0 0
  %6152 = vmatprep.subr.bf16.mxu0 0
  %6153 = vmatpush2.bf16.msra.mxu0 0
  %6154 = vmatprep.subr.bf16.mxu0 0
  %6155 = vmatpush2.bf16.msra.mxu0 0
  %6156 = vmatprep.mubr.bf16.mxu0 0
  %6157 = vmatmul.mubr.bf16.gmra.mxu0 %v6097
  %v6158 = vpop.f32.mrf.mxu0
  %v6159 = vadd.f32 %v6066, %v6158
  %v6160 = vpop.f32.mrf.mxu0
  %v6161 = vpop.f32.mrf.mxu0
  %v6162 = vadd.f32 %v6066, %v6161
  %v6163 = vpop.f32.mrf.mxu0
  %6164 = vmatprep.mubr.bf16.mxu0 0
  %6165 = vmatmul.mubr.bf16.gmra.mxu0 %v6100
  %v6166 = vpop.f32.mrf.mxu0
  %v6167 = vadd.f32 %v6066, %v6166
  %v6168 = vpop.f32.mrf.mxu0
  %v6169 = vpop.f32.mrf.mxu0
  %v6170 = vadd.f32 %v6066, %v6169
  %v6171 = vpop.f32.mrf.mxu0
  %6172 = vmatprep.mubr.bf16.mxu0 0
  %6173 = vmatmul.mubr.bf16.gmra.mxu0 %v6103
  %v6174 = vpop.f32.mrf.mxu0
  %v6175 = vadd.f32 %v6066, %v6174
  %v6176 = vpop.f32.mrf.mxu0
  %v6177 = vpop.f32.mrf.mxu0
  %v6178 = vadd.f32 %v6066, %v6177
  %v6179 = vpop.f32.mrf.mxu0
  %6180 = vmatprep.mubr.bf16.mxu0 0
  %6181 = vmatmul.mubr.bf16.gmra.mxu0 %v6106
  %v6182 = vpop.f32.mrf.mxu0
  %v6183 = vadd.f32 %v6066, %v6182
  %v6184 = vpop.f32.mrf.mxu0
  %v6185 = vpop.f32.mrf.mxu0
  %v6186 = vadd.f32 %v6066, %v6185
  %v6187 = vpop.f32.mrf.mxu0
  %6188 = vmatprep.mubr.bf16.mxu0 0
  %6189 = vmatmul.mubr.bf16.gmra.mxu0 %v6109
  %v6190 = vpop.f32.mrf.mxu0
  %v6191 = vadd.f32 %v6066, %v6190
  %v6192 = vpop.f32.mrf.mxu0
  %v6193 = vpop.f32.mrf.mxu0
  %v6194 = vadd.f32 %v6066, %v6193
  %v6195 = vpop.f32.mrf.mxu0
  %6196 = vmatprep.mubr.bf16.mxu0 0
  %6197 = vmatmul.mubr.bf16.gmra.mxu0 %v6112
  %v6198 = vpop.f32.mrf.mxu0
  %v6199 = vadd.f32 %v6066, %v6198
  %v6200 = vpop.f32.mrf.mxu0
  %v6201 = vpop.f32.mrf.mxu0
  %v6202 = vadd.f32 %v6066, %v6201
  %v6203 = vpop.f32.mrf.mxu0
  %6204 = vmatprep.mubr.bf16.mxu0 0
  %6205 = vmatmul.mubr.bf16.gmra.mxu0 %v6115
  %v6206 = vpop.f32.mrf.mxu0
  %v6207 = vadd.f32 %v6066, %v6206
  %v6208 = vpop.f32.mrf.mxu0
  %v6209 = vpop.f32.mrf.mxu0
  %v6210 = vadd.f32 %v6066, %v6209
  %v6211 = vpop.f32.mrf.mxu0
  %6212 = vmatprep.mubr.bf16.mxu0 0
  %6213 = vmatmul.mubr.bf16.gmra.mxu0 %v6118
  %v6214 = vpop.f32.mrf.mxu0
  %v6215 = vadd.f32 %v6066, %v6214
  %v6216 = vpop.f32.mrf.mxu0
  %v6217 = vpop.f32.mrf.mxu0
  %v6218 = vadd.f32 %v6066, %v6217
  %v6219 = vpop.f32.mrf.mxu0
  %6220 = vdwg.mxu0
  %v6221 = vmax.f32 %v6159, 0.0
  %v6222 = vmax.f32 %v6162, 0.0
  %v6223 = vmax.f32 %v6167, 0.0
  %v6224 = vmax.f32 %v6170, 0.0
  %v6225 = vmax.f32 %v6175, 0.0
  %v6226 = vmax.f32 %v6178, 0.0
  %v6227 = vmax.f32 %v6183, 0.0
  %v6228 = vmax.f32 %v6186, 0.0
  %v6229 = vmax.f32 %v6191, 0.0
  %v6230 = vmax.f32 %v6194, 0.0
  %v6231 = vmax.f32 %v6199, 0.0
  %v6232 = vmax.f32 %v6202, 0.0
  %v6233 = vmax.f32 %v6207, 0.0
  %v6234 = vmax.f32 %v6210, 0.0
  %v6235 = vmax.f32 %v6215, 0.0
  %v6236 = vmax.f32 %v6218, 0.0
  %v6237 = vmax.f32 %v6221, %v6222
  %v6238 = vmax.f32 %v6223, %v6224
  %v6239 = vmax.f32 %v6225, %v6226
  %v6240 = vmax.f32 %v6227, %v6228
  %v6241 = vmax.f32 %v6229, %v6230
  %v6242 = vmax.f32 %v6231, %v6232
  %v6243 = vmax.f32 %v6233, %v6234
  %v6244 = vmax.f32 %v6235, %v6236
  %v6253 = vcombine.high %v6237, %v6237
  %v6255 = vunpack.c.l.s4 1983009808
  %v6256 = vunpack.c.0.s8 %v6255
  %v6257 = vlaneseq
  %v6258 = vshrl.u32 %v6257, 7
  %v6259 = vsub.s32 %v6256, %v6258
  %v6260 = vrot.slane %v6237, %v6259
  %v6262 = vunpack.c.l.s4 1983009808
  %v6263 = vunpack.c.0.s8 %v6262
  %v6264 = vlaneseq
  %v6265 = vshrl.u32 %v6264, 7
  %v6266 = vsub.s32 %v6263, %v6265
  %v6267 = vrot.slane %v6253, %v6266
  %v6268 = vcombine.high %v6260, %v6260
  %v6269 = vcombine.high %v6267, %v6267
  %v6270 = vcombine.high %v6238, %v6238
  %v6272 = vunpack.c.l.s4 1983009808
  %v6273 = vunpack.c.0.s8 %v6272
  %v6274 = vlaneseq
  %v6275 = vshrl.u32 %v6274, 7
  %v6276 = vsub.s32 %v6273, %v6275
  %v6277 = vrot.slane %v6238, %v6276
  %v6279 = vunpack.c.l.s4 1983009808
  %v6280 = vunpack.c.0.s8 %v6279
  %v6281 = vlaneseq
  %v6282 = vshrl.u32 %v6281, 7
  %v6283 = vsub.s32 %v6280, %v6282
  %v6284 = vrot.slane %v6270, %v6283
  %v6285 = vcombine.high %v6277, %v6277
  %v6286 = vcombine.high %v6284, %v6284
  %v6287 = vcombine.high %v6239, %v6239
  %v6289 = vunpack.c.l.s4 1983009808
  %v6290 = vunpack.c.0.s8 %v6289
  %v6291 = vlaneseq
  %v6292 = vshrl.u32 %v6291, 7
  %v6293 = vsub.s32 %v6290, %v6292
  %v6294 = vrot.slane %v6239, %v6293
  %v6296 = vunpack.c.l.s4 1983009808
  %v6297 = vunpack.c.0.s8 %v6296
  %v6298 = vlaneseq
  %v6299 = vshrl.u32 %v6298, 7
  %v6300 = vsub.s32 %v6297, %v6299
  %v6301 = vrot.slane %v6287, %v6300
  %v6302 = vcombine.high %v6294, %v6294
  %v6303 = vcombine.high %v6301, %v6301
  %v6304 = vcombine.high %v6240, %v6240
  %v6306 = vunpack.c.l.s4 1983009808
  %v6307 = vunpack.c.0.s8 %v6306
  %v6308 = vlaneseq
  %v6309 = vshrl.u32 %v6308, 7
  %v6310 = vsub.s32 %v6307, %v6309
  %v6311 = vrot.slane %v6240, %v6310
  %v6313 = vunpack.c.l.s4 1983009808
  %v6314 = vunpack.c.0.s8 %v6313
  %v6315 = vlaneseq
  %v6316 = vshrl.u32 %v6315, 7
  %v6317 = vsub.s32 %v6314, %v6316
  %v6318 = vrot.slane %v6304, %v6317
  %v6319 = vcombine.high %v6311, %v6311
  %v6320 = vcombine.high %v6318, %v6318
  %v6321 = vcombine.high %v6241, %v6241
  %v6323 = vunpack.c.l.s4 1983009808
  %v6324 = vunpack.c.0.s8 %v6323
  %v6325 = vlaneseq
  %v6326 = vshrl.u32 %v6325, 7
  %v6327 = vsub.s32 %v6324, %v6326
  %v6328 = vrot.slane %v6241, %v6327
  %v6330 = vunpack.c.l.s4 1983009808
  %v6331 = vunpack.c.0.s8 %v6330
  %v6332 = vlaneseq
  %v6333 = vshrl.u32 %v6332, 7
  %v6334 = vsub.s32 %v6331, %v6333
  %v6335 = vrot.slane %v6321, %v6334
  %v6336 = vcombine.high %v6328, %v6328
  %v6337 = vcombine.high %v6335, %v6335
  %v6338 = vcombine.high %v6242, %v6242
  %v6340 = vunpack.c.l.s4 1983009808
  %v6341 = vunpack.c.0.s8 %v6340
  %v6342 = vlaneseq
  %v6343 = vshrl.u32 %v6342, 7
  %v6344 = vsub.s32 %v6341, %v6343
  %v6345 = vrot.slane %v6242, %v6344
  %v6347 = vunpack.c.l.s4 1983009808
  %v6348 = vunpack.c.0.s8 %v6347
  %v6349 = vlaneseq
  %v6350 = vshrl.u32 %v6349, 7
  %v6351 = vsub.s32 %v6348, %v6350
  %v6352 = vrot.slane %v6338, %v6351
  %v6353 = vcombine.high %v6345, %v6345
  %v6354 = vcombine.high %v6352, %v6352
  %v6355 = vcombine.high %v6243, %v6243
  %v6357 = vunpack.c.l.s4 1983009808
  %v6358 = vunpack.c.0.s8 %v6357
  %v6359 = vlaneseq
  %v6360 = vshrl.u32 %v6359, 7
  %v6361 = vsub.s32 %v6358, %v6360
  %v6362 = vrot.slane %v6243, %v6361
  %v6364 = vunpack.c.l.s4 1983009808
  %v6365 = vunpack.c.0.s8 %v6364
  %v6366 = vlaneseq
  %v6367 = vshrl.u32 %v6366, 7
  %v6368 = vsub.s32 %v6365, %v6367
  %v6369 = vrot.slane %v6355, %v6368
  %v6370 = vcombine.high %v6362, %v6362
  %v6371 = vcombine.high %v6369, %v6369
  %v6372 = vcombine.high %v6244, %v6244
  %v6374 = vunpack.c.l.s4 1983009808
  %v6375 = vunpack.c.0.s8 %v6374
  %v6376 = vlaneseq
  %v6377 = vshrl.u32 %v6376, 7
  %v6378 = vsub.s32 %v6375, %v6377
  %v6379 = vrot.slane %v6244, %v6378
  %v6381 = vunpack.c.l.s4 1983009808
  %v6382 = vunpack.c.0.s8 %v6381
  %v6383 = vlaneseq
  %v6384 = vshrl.u32 %v6383, 7
  %v6385 = vsub.s32 %v6382, %v6384
  %v6386 = vrot.slane %v6372, %v6385
  %v6387 = vcombine.high %v6379, %v6379
  %v6388 = vcombine.high %v6386, %v6386
  %v6421 = vrot.slane %v6260, 7
  %v6422 = vrot.slane %v6421, 2
  %v6423 = vrot.slane %v6268, 7
  %v6424 = vrot.slane %v6423, 2
  %v6425 = vrot.slane %v6267, 7
  %v6426 = vrot.slane %v6425, 2
  %v6427 = vrot.slane %v6269, 7
  %v6428 = vrot.slane %v6427, 2
  %v6429 = vrot.slane %v6277, 7
  %v6430 = vrot.slane %v6429, 2
  %v6431 = vrot.slane %v6285, 7
  %v6432 = vrot.slane %v6431, 2
  %v6433 = vrot.slane %v6284, 7
  %v6434 = vrot.slane %v6433, 2
  %v6435 = vrot.slane %v6286, 7
  %v6436 = vrot.slane %v6435, 2
  %v6437 = vrot.slane %v6294, 7
  %v6438 = vrot.slane %v6437, 2
  %v6439 = vrot.slane %v6302, 7
  %v6440 = vrot.slane %v6439, 2
  %v6441 = vrot.slane %v6301, 7
  %v6442 = vrot.slane %v6441, 2
  %v6443 = vrot.slane %v6303, 7
  %v6444 = vrot.slane %v6443, 2
  %v6445 = vrot.slane %v6311, 7
  %v6446 = vrot.slane %v6445, 2
  %v6447 = vrot.slane %v6319, 7
  %v6448 = vrot.slane %v6447, 2
  %v6449 = vrot.slane %v6318, 7
  %v6450 = vrot.slane %v6449, 2
  %v6451 = vrot.slane %v6320, 7
  %v6452 = vrot.slane %v6451, 2
  %v6453 = vrot.slane %v6328, 7
  %v6454 = vrot.slane %v6453, 2
  %v6455 = vrot.slane %v6336, 7
  %v6456 = vrot.slane %v6455, 2
  %v6457 = vrot.slane %v6335, 7
  %v6458 = vrot.slane %v6457, 2
  %v6459 = vrot.slane %v6337, 7
  %v6460 = vrot.slane %v6459, 2
  %v6461 = vrot.slane %v6345, 7
  %v6462 = vrot.slane %v6461, 2
  %v6463 = vrot.slane %v6353, 7
  %v6464 = vrot.slane %v6463, 2
  %v6465 = vrot.slane %v6352, 7
  %v6466 = vrot.slane %v6465, 2
  %v6467 = vrot.slane %v6354, 7
  %v6468 = vrot.slane %v6467, 2
  %v6469 = vrot.slane %v6362, 7
  %v6470 = vrot.slane %v6469, 2
  %v6471 = vrot.slane %v6370, 7
  %v6472 = vrot.slane %v6471, 2
  %v6473 = vrot.slane %v6369, 7
  %v6474 = vrot.slane %v6473, 2
  %v6475 = vrot.slane %v6371, 7
  %v6476 = vrot.slane %v6475, 2
  %v6477 = vrot.slane %v6379, 7
  %v6478 = vrot.slane %v6477, 2
  %v6479 = vrot.slane %v6387, 7
  %v6480 = vrot.slane %v6479, 2
  %v6481 = vrot.slane %v6386, 7
  %v6482 = vrot.slane %v6481, 2
  %v6483 = vrot.slane %v6388, 7
  %v6484 = vrot.slane %v6483, 2
  %v6517 = vmax.f32 %v6260, %v6422
  %v6518 = vmax.f32 %v6268, %v6424
  %v6519 = vmax.f32 %v6267, %v6426
  %v6520 = vmax.f32 %v6269, %v6428
  %v6521 = vmax.f32 %v6277, %v6430
  %v6522 = vmax.f32 %v6285, %v6432
  %v6523 = vmax.f32 %v6284, %v6434
  %v6524 = vmax.f32 %v6286, %v6436
  %v6525 = vmax.f32 %v6294, %v6438
  %v6526 = vmax.f32 %v6302, %v6440
  %v6527 = vmax.f32 %v6301, %v6442
  %v6528 = vmax.f32 %v6303, %v6444
  %v6529 = vmax.f32 %v6311, %v6446
  %v6530 = vmax.f32 %v6319, %v6448
  %v6531 = vmax.f32 %v6318, %v6450
  %v6532 = vmax.f32 %v6320, %v6452
  %v6533 = vmax.f32 %v6328, %v6454
  %v6534 = vmax.f32 %v6336, %v6456
  %v6535 = vmax.f32 %v6335, %v6458
  %v6536 = vmax.f32 %v6337, %v6460
  %v6537 = vmax.f32 %v6345, %v6462
  %v6538 = vmax.f32 %v6353, %v6464
  %v6539 = vmax.f32 %v6352, %v6466
  %v6540 = vmax.f32 %v6354, %v6468
  %v6541 = vmax.f32 %v6362, %v6470
  %v6542 = vmax.f32 %v6370, %v6472
  %v6543 = vmax.f32 %v6369, %v6474
  %v6544 = vmax.f32 %v6371, %v6476
  %v6545 = vmax.f32 %v6379, %v6478
  %v6546 = vmax.f32 %v6387, %v6480
  %v6547 = vmax.f32 %v6386, %v6482
  %v6548 = vmax.f32 %v6388, %v6484
  %v6581 = vlaneseq
  %v6582 = vshrl.u32 %v6581, 7
  %v6583 = vsub.s32 0, %v6582
  %v6584 = vrot.slane %v6517, %v6583
  %v6585 = vlaneseq
  %v6586 = vshrl.u32 %v6585, 7
  %v6587 = vsub.s32 0, %v6586
  %v6588 = vrot.slane %v6518, %v6587
  %v6589 = vlaneseq
  %v6590 = vshrl.u32 %v6589, 7
  %v6591 = vsub.s32 0, %v6590
  %v6592 = vrot.slane %v6519, %v6591
  %v6593 = vlaneseq
  %v6594 = vshrl.u32 %v6593, 7
  %v6595 = vsub.s32 0, %v6594
  %v6596 = vrot.slane %v6520, %v6595
  %v6597 = vlaneseq
  %v6598 = vshrl.u32 %v6597, 7
  %v6599 = vsub.s32 0, %v6598
  %v6600 = vrot.slane %v6521, %v6599
  %v6601 = vlaneseq
  %v6602 = vshrl.u32 %v6601, 7
  %v6603 = vsub.s32 0, %v6602
  %v6604 = vrot.slane %v6522, %v6603
  %v6605 = vlaneseq
  %v6606 = vshrl.u32 %v6605, 7
  %v6607 = vsub.s32 0, %v6606
  %v6608 = vrot.slane %v6523, %v6607
  %v6609 = vlaneseq
  %v6610 = vshrl.u32 %v6609, 7
  %v6611 = vsub.s32 0, %v6610
  %v6612 = vrot.slane %v6524, %v6611
  %v6613 = vlaneseq
  %v6614 = vshrl.u32 %v6613, 7
  %v6615 = vsub.s32 0, %v6614
  %v6616 = vrot.slane %v6525, %v6615
  %v6617 = vlaneseq
  %v6618 = vshrl.u32 %v6617, 7
  %v6619 = vsub.s32 0, %v6618
  %v6620 = vrot.slane %v6526, %v6619
  %v6621 = vlaneseq
  %v6622 = vshrl.u32 %v6621, 7
  %v6623 = vsub.s32 0, %v6622
  %v6624 = vrot.slane %v6527, %v6623
  %v6625 = vlaneseq
  %v6626 = vshrl.u32 %v6625, 7
  %v6627 = vsub.s32 0, %v6626
  %v6628 = vrot.slane %v6528, %v6627
  %v6629 = vlaneseq
  %v6630 = vshrl.u32 %v6629, 7
  %v6631 = vsub.s32 0, %v6630
  %v6632 = vrot.slane %v6529, %v6631
  %v6633 = vlaneseq
  %v6634 = vshrl.u32 %v6633, 7
  %v6635 = vsub.s32 0, %v6634
  %v6636 = vrot.slane %v6530, %v6635
  %v6637 = vlaneseq
  %v6638 = vshrl.u32 %v6637, 7
  %v6639 = vsub.s32 0, %v6638
  %v6640 = vrot.slane %v6531, %v6639
  %v6641 = vlaneseq
  %v6642 = vshrl.u32 %v6641, 7
  %v6643 = vsub.s32 0, %v6642
  %v6644 = vrot.slane %v6532, %v6643
  %v6645 = vlaneseq
  %v6646 = vshrl.u32 %v6645, 7
  %v6647 = vsub.s32 0, %v6646
  %v6648 = vrot.slane %v6533, %v6647
  %v6649 = vlaneseq
  %v6650 = vshrl.u32 %v6649, 7
  %v6651 = vsub.s32 0, %v6650
  %v6652 = vrot.slane %v6534, %v6651
  %v6653 = vlaneseq
  %v6654 = vshrl.u32 %v6653, 7
  %v6655 = vsub.s32 0, %v6654
  %v6656 = vrot.slane %v6535, %v6655
  %v6657 = vlaneseq
  %v6658 = vshrl.u32 %v6657, 7
  %v6659 = vsub.s32 0, %v6658
  %v6660 = vrot.slane %v6536, %v6659
  %v6661 = vlaneseq
  %v6662 = vshrl.u32 %v6661, 7
  %v6663 = vsub.s32 0, %v6662
  %v6664 = vrot.slane %v6537, %v6663
  %v6665 = vlaneseq
  %v6666 = vshrl.u32 %v6665, 7
  %v6667 = vsub.s32 0, %v6666
  %v6668 = vrot.slane %v6538, %v6667
  %v6669 = vlaneseq
  %v6670 = vshrl.u32 %v6669, 7
  %v6671 = vsub.s32 0, %v6670
  %v6672 = vrot.slane %v6539, %v6671
  %v6673 = vlaneseq
  %v6674 = vshrl.u32 %v6673, 7
  %v6675 = vsub.s32 0, %v6674
  %v6676 = vrot.slane %v6540, %v6675
  %v6677 = vlaneseq
  %v6678 = vshrl.u32 %v6677, 7
  %v6679 = vsub.s32 0, %v6678
  %v6680 = vrot.slane %v6541, %v6679
  %v6681 = vlaneseq
  %v6682 = vshrl.u32 %v6681, 7
  %v6683 = vsub.s32 0, %v6682
  %v6684 = vrot.slane %v6542, %v6683
  %v6685 = vlaneseq
  %v6686 = vshrl.u32 %v6685, 7
  %v6687 = vsub.s32 0, %v6686
  %v6688 = vrot.slane %v6543, %v6687
  %v6689 = vlaneseq
  %v6690 = vshrl.u32 %v6689, 7
  %v6691 = vsub.s32 0, %v6690
  %v6692 = vrot.slane %v6544, %v6691
  %v6693 = vlaneseq
  %v6694 = vshrl.u32 %v6693, 7
  %v6695 = vsub.s32 0, %v6694
  %v6696 = vrot.slane %v6545, %v6695
  %v6697 = vlaneseq
  %v6698 = vshrl.u32 %v6697, 7
  %v6699 = vsub.s32 0, %v6698
  %v6700 = vrot.slane %v6546, %v6699
  %v6701 = vlaneseq
  %v6702 = vshrl.u32 %v6701, 7
  %v6703 = vsub.s32 0, %v6702
  %v6704 = vrot.slane %v6547, %v6703
  %v6705 = vlaneseq
  %v6706 = vshrl.u32 %v6705, 7
  %v6707 = vsub.s32 0, %v6706
  %v6708 = vrot.slane %v6548, %v6707
  %v6709 = vsel %vm5232, %v6588, %v6584
  %v6710 = vsel %vm5234, %v6592, %v6709
  %v6711 = vsel %vm5236, %v6596, %v6710
  %v6712 = vsel %vm5238, %v6600, %v6711
  %v6713 = vsel %vm5240, %v6604, %v6712
  %v6714 = vsel %vm5242, %v6608, %v6713
  %v6715 = vsel %vm5244, %v6612, %v6714
  %v6716 = vsel %vm5232, %v6620, %v6616
  %v6717 = vsel %vm5234, %v6624, %v6716
  %v6718 = vsel %vm5236, %v6628, %v6717
  %v6719 = vsel %vm5238, %v6632, %v6718
  %v6720 = vsel %vm5240, %v6636, %v6719
  %v6721 = vsel %vm5242, %v6640, %v6720
  %v6722 = vsel %vm5244, %v6644, %v6721
  %v6723 = vsel %vm5232, %v6652, %v6648
  %v6724 = vsel %vm5234, %v6656, %v6723
  %v6725 = vsel %vm5236, %v6660, %v6724
  %v6726 = vsel %vm5238, %v6664, %v6725
  %v6727 = vsel %vm5240, %v6668, %v6726
  %v6728 = vsel %vm5242, %v6672, %v6727
  %v6729 = vsel %vm5244, %v6676, %v6728
  %v6730 = vsel %vm5232, %v6684, %v6680
  %v6731 = vsel %vm5234, %v6688, %v6730
  %v6732 = vsel %vm5236, %v6692, %v6731
  %v6733 = vsel %vm5238, %v6696, %v6732
  %v6734 = vsel %vm5240, %v6700, %v6733
  %v6735 = vsel %vm5242, %v6704, %v6734
  %v6736 = vsel %vm5244, %v6708, %v6735
  %6741 = vst.msk [vmem:[%s5] sm:$0xff] %vm2766, %v6715
  %6742 = vst.msk [vmem:[%s5 + $0x8] sm:$0xff] %vm2766, %v6722
  %6743 = vst.msk [vmem:[%s5 + $0x10] sm:$0xff] %vm2766, %v6729
  %6744 = vst.msk [vmem:[%s5 + $0x18] sm:$0xff] %vm2766, %v6736
  // Predicated region
  $region22: #{conv_extractor_forward.1} parent=0 // pred_check
    _
  $region23: #{conv_extractor_forward.1} parent=0 // pred_check_branch
    %6746 = sbr.rel (0) target = $region25
  $region24: #{conv_extractor_forward.1} parent=0 // pred_region
    _
  $region25: #{conv_extractor_forward.1} parent=0 // pred_fallthru
    _
  // Predicated region
  $region26: #{conv_extractor_forward.1} parent=0 // pred_check
    _
  $region27: #{conv_extractor_forward.1} parent=0 // pred_check_branch
    %6748 = sbr.rel (0) target = $region29
  $region28: #{conv_extractor_forward.1} parent=0 // pred_region
    _
  $region29: #{conv_extractor_forward.1} parent=0 // pred_fallthru
    _

</llo_original>
